<compile_context>
chip_gen: v7x
topology: tpu7x:2x2x1
jax: 0.10.0
libtpu: 0.0.40
codegen_flags: <defaults>
</compile_context>

<pallas_src>
import functools
import numpy as np
import jax
import jax.numpy as jnp
from jax import lax
from jax.experimental import pallas as pl
from jax.experimental.pallas import tpu as pltpu


# ----------------------------- Pallas kernels ------------------------------

def _fused_s1_kernel(x_ref, w1_ref, sc1_ref, sh1_ref, wdwt_ref, sc2t_ref,
                     sh2t_ref, w2_ref, sc3_ref, sh3_ref, o_ref,
                     ypad_ref, zbuf_ref, *, h, w, inp, mid, oup, ksize, pad):
    """stride=1: pw1+BN1+ReLU -> dw KxK+BN2 -> pw2+BN3 -> +residual -> ReLU."""
    hp, wp = h + 2 * pad, w + 2 * pad
    wm = w * mid

    # ---- pw1: 1x1 grouped conv (block-diag matmul) + BN1 + ReLU (VMEM only)
    x2 = x_ref[...]                                             # (h*w, inp)
    y = jnp.dot(x2, w1_ref[...], preferred_element_type=jnp.float32)
    y = jnp.maximum(y * sc1_ref[...] + sh1_ref[...], 0.0)       # (h*w, mid)
    y3 = y.reshape(h, w, mid)

    # ---- assemble the zero-padded, lane-dense (Hp, Wp*mid) depthwise input
    # in a VMEM scratch (in-kernel padding; zeroed every step for megacore
    # safety).
    ypad_ref[...] = jnp.zeros((hp, wp * mid), jnp.float32)
    for i in range(w):
        ypad_ref[pl.ds(pad, h), pl.ds((pad + i) * mid, mid)] = y3[:, i, :]
    ypad = ypad_ref[...]

    # ---- depthwise KxK, stride 1: K*K lane-dense FMAs (512-lane occupancy)
    wdwt = wdwt_ref[...]                                        # (K, K, w*mid)
    acc = jnp.zeros((h, wm), jnp.float32)
    for kh in range(ksize):
        for kw in range(ksize):
            tap = ypad[kh:kh + h, kw * mid:kw * mid + wm]
            acc = acc + tap * wdwt[kh, kw][None, :]
    z = acc * sc2t_ref[...] + sh2t_ref[...]                     # BN2 (no relu)

    # ---- bounce to (pixels, mid) through a VMEM scratch for one MXU matmul
    for i in range(w):
        zbuf_ref[:, pl.ds(i, 1), :] = z[:, i * mid:(i + 1) * mid].reshape(h, 1, mid)
    zz = zbuf_ref[...].reshape(h * w, mid)

    # ---- pw2 (channel shuffle folded into W2 rows) + BN3 + residual + ReLU
    out = jnp.dot(zz, w2_ref[...], preferred_element_type=jnp.float32)
    out = jnp.maximum(out * sc3_ref[...] + sh3_ref[...] + x2, 0.0)  # (h*w, oup)
    out3 = out.reshape(h, w, oup)

    # ---- lane-dense output slab: fill the (h, w*oup) block, dense HBM writeback
    for i in range(w):
        o_ref[:, pl.ds(i * oup, oup)] = out3[:, i, :]


def _fused_s2_kernel(x_ref, w1_ref, sc1_ref, sh1_ref, wdw_ref, sc2_ref, sh2_ref,
                     w2_ref, sc3_ref, sh3_ref, o_ref, ypad_ref, xpad_ref, *,
                     h, w, inp, mid, oup, outputs, ksize, pad, ho, wo):
    """stride=2: pw1+BN1+ReLU -> dw KxK/s2+BN2 -> pw2+BN3+ReLU, plus the
    AvgPool2d(3,2,1) shortcut, interleaved straight into the output slab."""
    hp, wp = h + 2 * pad, w + 2 * pad

    # ---- pw1 + BN1 + ReLU
    x2 = x_ref[...]                                             # (h*w, inp)
    y = jnp.dot(x2, w1_ref[...], preferred_element_type=jnp.float32)
    y = jnp.maximum(y * sc1_ref[...] + sh1_ref[...], 0.0)       # (h*w, mid)

    # ---- zero-padded depthwise input built in VMEM (in-kernel padding)
    ypad_ref[...] = jnp.zeros((hp, wp, mid), jnp.float32)
    ypad_ref[pl.ds(pad, h), pl.ds(pad, w), :] = y.reshape(h, w, mid)
    ypad = ypad_ref[...]

    # ---- stride-2 depthwise: extract the 4 phase planes once; each tap is a
    # contiguous slice of one phase.
    ph = [[ypad[a::2, b::2, :] for b in range(2)] for a in range(2)]
    wdw = wdw_ref[...]                                          # (K, K, mid)
    acc = jnp.zeros((ho, wo, mid), jnp.float32)
    for kh in range(ksize):
        for kw in range(ksize):
            p = ph[kh % 2][kw % 2]
            tap = p[kh // 2:kh // 2 + ho, kw // 2:kw // 2 + wo, :]
            acc = acc + tap * wdw[kh, kw][None, None, :]
    z = (acc * sc2_ref[...] + sh2_ref[...]).reshape(ho * wo, mid)   # BN2

    # ---- pw2 (shuffle folded) + BN3 + ReLU
    main = jnp.dot(z, w2_ref[...], preferred_element_type=jnp.float32)
    main = jnp.maximum(main * sc3_ref[...] + sh3_ref[...], 0.0)
    main3 = main.reshape(ho, wo, outputs)

    # ---- AvgPool2d(3, stride=2, pad=1) shortcut, count_include_pad=True
    xpad_ref[...] = jnp.zeros((h + 2, w + 2, inp), jnp.float32)
    xpad_ref[pl.ds(1, h), pl.ds(1, w), :] = x2.reshape(h, w, inp)
    xpad = xpad_ref[...]
    xph = [[xpad[a::2, b::2, :] for b in range(2)] for a in range(2)]
    pacc = jnp.zeros((ho, wo, inp), jnp.float32)
    for kh in range(3):
        for kw in range(3):
            p = xph[kh % 2][kw % 2]
            pacc = pacc + p[kh // 2:kh // 2 + ho, kw // 2:kw // 2 + wo, :]
    proj3 = pacc * (1.0 / 9.0)

    # ---- write (pool | main) channel ranges straight into the lane-dense
    # output slab — no jnp.concatenate, dense HBM writeback of the block.
    for i in range(wo):
        o_ref[:, pl.ds(i * oup, inp)] = proj3[:, i, :]
        o_ref[:, pl.ds(i * oup + inp, outputs)] = main3[:, i, :]


# ------------------------------ wrappers ------------------------------------

def _vmem_limit(block_bytes, scratch_bytes):
    # Double-buffered I/O blocks + scratch + headroom; capped below v7x's
    # 64 MiB physical VMEM (v5e/v6e have 128 MiB so this is always safe).
    need = 2 * block_bytes + scratch_bytes + (4 << 20)
    return int(min(max(need, 16 << 20), 48 << 20))


def fold_bn(gamma, beta, mean, var, eps=1e-5):
    scale = gamma / jnp.sqrt(var + eps)
    shift = beta - mean * scale
    return scale, shift


def make_block_diag(w_oihw, groups):
    # PyTorch grouped-1x1-conv weight (Cout, Cin/g, 1, 1) -> (Cin, Cout) block-diag.
    cout, cin_g = w_oihw.shape[0], w_oihw.shape[1]
    cin = cin_g * groups
    oc_g = cout // groups
    W = jnp.zeros((cin, cout), jnp.float32)
    for g in range(groups):
        blk = w_oihw[g * oc_g:(g + 1) * oc_g, :, 0, 0]          # (oc_g, cin_g)
        W = W.at[g * cin_g:(g + 1) * cin_g, g * oc_g:(g + 1) * oc_g].set(blk.T)
    return W


def shuffle_block_pallas(x_nchw, params, cfg, eps=1e-5):
    inp, oup, group = cfg["inp"], cfg["oup"], cfg["group"]
    mid, ksize, stride = cfg["mid"], cfg["ksize"], cfg["stride"]
    g1 = 1 if cfg["first_group"] else group
    pad = ksize // 2
    n, cin, h, w = x_nchw.shape
    assert cin == inp
    outputs = oup - inp if stride == 2 else oup

    # NCHW <-> NHWC only at the module boundary (kept to preserve the PyTorch
    # I/O contract; a surrounding NHWC network would elide both transposes).
    x = jnp.transpose(x_nchw, (0, 2, 3, 1)).reshape(n, h * w, inp)

    W1 = make_block_diag(params["w1"], g1)                      # (inp, mid)
    W2 = make_block_diag(params["w2"], group)                   # (mid, outputs)
    # Fold the channel shuffle into W2's rows at setup time (zero runtime cost):
    # take(z, perm) @ W2 == z @ W2[argsort(perm)].
    if group > 1:
        gc = mid // group
        perm = np.arange(mid).reshape(gc, group).T.reshape(-1)
        W2 = W2[np.argsort(perm), :]
    sc1, sh1 = fold_bn(*params["bn1"], eps)
    sc2, sh2 = fold_bn(*params["bn2"], eps)
    sc3, sh3 = fold_bn(*params["bn3"], eps)
    wdw = jnp.transpose(params["wdw"][:, 0, :, :], (1, 2, 0))   # (K, K, mid)

    hp, wp = h + 2 * pad, w + 2 * pad
    sem = pltpu.CompilerParams  # alias only for line length

    # TODO(synk): for large feature maps, add an H-tile grid axis with a halo
    # (and per-group matmul tiling) so v7x's two TensorCores overlap DMA/compute.
    if stride == 1:
        assert inp == oup, "stride=1 residual requires inp == oup"
        wdwt = jnp.tile(wdw, (1, 1, w))                         # (K, K, w*mid)
        sc2t = jnp.tile(sc2, w)[None, :]
        sh2t = jnp.tile(sh2, w)[None, :]
        kern = functools.partial(_fused_s1_kernel, h=h, w=w, inp=inp, mid=mid,
                                 oup=oup, ksize=ksize, pad=pad)
        blk_bytes = 4 * (h * w * inp + h * w * oup + inp * mid + mid * oup
                         + ksize * ksize * w * mid + 2 * w * mid + 2 * mid + 2 * oup)
        scr_bytes = 4 * (hp * wp * mid + h * w * mid)
        out = pl.pallas_call(
            kern,
            out_shape=jax.ShapeDtypeStruct((n, h, w * oup), jnp.float32),
            grid=(n,),
            in_specs=[
                pl.BlockSpec((None, h * w, inp), lambda i: (i, 0, 0)),
                pl.BlockSpec((inp, mid), lambda i: (0, 0)),
                pl.BlockSpec((1, mid), lambda i: (0, 0)),
                pl.BlockSpec((1, mid), lambda i: (0, 0)),
                pl.BlockSpec((ksize, ksize, w * mid), lambda i: (0, 0, 0)),
                pl.BlockSpec((1, w * mid), lambda i: (0, 0)),
                pl.BlockSpec((1, w * mid), lambda i: (0, 0)),
                pl.BlockSpec((mid, oup), lambda i: (0, 0)),
                pl.BlockSpec((1, oup), lambda i: (0, 0)),
                pl.BlockSpec((1, oup), lambda i: (0, 0)),
            ],
            out_specs=pl.BlockSpec((None, h, w * oup), lambda i: (i, 0, 0)),
            scratch_shapes=[pltpu.VMEM((hp, wp * mid), jnp.float32),
                            pltpu.VMEM((h, w, mid), jnp.float32)],
            compiler_params=sem(
                dimension_semantics=("parallel",),
                vmem_limit_bytes=_vmem_limit(blk_bytes, scr_bytes)),
        )(x, W1, sc1[None, :], sh1[None, :], wdwt, sc2t, sh2t,
          W2, sc3[None, :], sh3[None, :])
        out = out.reshape(n, h, w, oup)
    else:
        ho = (hp - ksize) // 2 + 1
        wo = (wp - ksize) // 2 + 1
        kern = functools.partial(_fused_s2_kernel, h=h, w=w, inp=inp, mid=mid,
                                 oup=oup, outputs=outputs, ksize=ksize, pad=pad,
                                 ho=ho, wo=wo)
        blk_bytes = 4 * (h * w * inp + ho * wo * oup + inp * mid + mid * outputs
                         + ksize * ksize * mid + 4 * mid + 2 * outputs)
        scr_bytes = 4 * (hp * wp * mid + (h + 2) * (w + 2) * inp)
        out = pl.pallas_call(
            kern,
            out_shape=jax.ShapeDtypeStruct((n, ho, wo * oup), jnp.float32),
            grid=(n,),
            in_specs=[
                pl.BlockSpec((None, h * w, inp), lambda i: (i, 0, 0)),
                pl.BlockSpec((inp, mid), lambda i: (0, 0)),
                pl.BlockSpec((1, mid), lambda i: (0, 0)),
                pl.BlockSpec((1, mid), lambda i: (0, 0)),
                pl.BlockSpec((ksize, ksize, mid), lambda i: (0, 0, 0)),
                pl.BlockSpec((1, 1, mid), lambda i: (0, 0, 0)),
                pl.BlockSpec((1, 1, mid), lambda i: (0, 0, 0)),
                pl.BlockSpec((mid, outputs), lambda i: (0, 0)),
                pl.BlockSpec((1, outputs), lambda i: (0, 0)),
                pl.BlockSpec((1, outputs), lambda i: (0, 0)),
            ],
            out_specs=pl.BlockSpec((None, ho, wo * oup), lambda i: (i, 0, 0)),
            scratch_shapes=[pltpu.VMEM((hp, wp, mid), jnp.float32),
                            pltpu.VMEM((h + 2, w + 2, inp), jnp.float32)],
            compiler_params=sem(
                dimension_semantics=("parallel",),
                vmem_limit_bytes=_vmem_limit(blk_bytes, scr_bytes)),
        )(x, W1, sc1[None, :], sh1[None, :], wdw, sc2[None, None, :],
          sh2[None, None, :], W2, sc3[None, :], sh3[None, :])
        out = out.reshape(n, ho, wo, oup)
    return jnp.transpose(out, (0, 3, 1, 2))                     # back to NCHW


# --------------------------- parameters / glue ------------------------------

def init_params(key, cfg):
    inp, oup, group = cfg["inp"], cfg["oup"], cfg["group"]
    mid, ksize, stride = cfg["mid"], cfg["ksize"], cfg["stride"]
    g1 = 1 if cfg["first_group"] else group
    outputs = oup - inp if stride == 2 else oup
    ks = jax.random.split(key, 6)
    w1 = jax.random.normal(ks[0], (mid, inp // g1, 1, 1), jnp.float32) * 0.1
    wdw = jax.random.normal(ks[1], (mid, 1, ksize, ksize), jnp.float32) * 0.1
    w2 = jax.random.normal(ks[2], (outputs, mid // group, 1, 1), jnp.float32) * 0.1

    def bn(k, c):
        k1, k2, k3, k4 = jax.random.split(k, 4)
        gamma = 1.0 + 0.1 * jax.random.normal(k1, (c,), jnp.float32)
        beta = 0.1 * jax.random.normal(k2, (c,), jnp.float32)
        mean = 0.1 * jax.random.normal(k3, (c,), jnp.float32)
        var = jax.random.uniform(k4, (c,), jnp.float32, minval=0.5, maxval=1.5)
        return gamma, beta, mean, var

    return dict(w1=w1, wdw=wdw, w2=w2,
                bn1=bn(ks[3], mid), bn2=bn(ks[4], mid), bn3=bn(ks[5], outputs))


# ------------------------- pure-JAX reference --------------------------------

def shuffle_block_ref(x, params, cfg, eps=1e-5):
    def bn_apply(y, bnp):
        gamma, beta, mean, var = (v[None, :, None, None] for v in bnp)
        return (y - mean) / jnp.sqrt(var + eps) * gamma + beta

    dn = ("NCHW", "OIHW", "NCHW")
    g1 = 1 if cfg["first_group"] else cfg["group"]
    pad = cfg["ksize"] // 2
    y = lax.conv_general_dilated(x, params["w1"], (1, 1), "VALID",
                                 feature_group_count=g1, dimension_numbers=dn)
    y = jax.nn.relu(bn_apply(y, params["bn1"]))
    y = lax.conv_general_dilated(y, params["wdw"], (cfg["stride"],) * 2,
                                 [(pad, pad), (pad, pad)],
                                 feature_group_count=cfg["mid"], dimension_numbers=dn)
    y = bn_apply(y, params["bn2"])
    if cfg["group"] > 1:
        n, c, h, w = y.shape
        gc = c // cfg["group"]
        y = y.reshape(n, gc, cfg["group"], h, w).transpose(0, 2, 1, 3, 4).reshape(n, c, h, w)
    y = lax.conv_general_dilated(y, params["w2"], (1, 1), "VALID",
                                 feature_group_count=cfg["group"], dimension_numbers=dn)
    y = bn_apply(y, params["bn3"])
    if cfg["stride"] == 1:
        return jax.nn.relu(y + x)
    s = lax.reduce_window(x, 0.0, lax.add, (1, 1, 3, 3), (1, 1, 2, 2),
                          [(0, 0), (0, 0), (1, 1), (1, 1)])
    return jnp.concatenate([s / 9.0, jax.nn.relu(y)], axis=1)


# ---------------------------------- main -------------------------------------

if __name__ == "__main__":
    key = jax.random.PRNGKey(0)
    cfgs = [
        dict(inp=32, oup=32, group=4, first_group=False, mid=32, ksize=3, stride=1),
        dict(inp=16, oup=32, group=4, first_group=True, mid=32, ksize=3, stride=2),
    ]
    ok = True
    for cfg in cfgs:
        kp, kx, key = jax.random.split(key, 3)
        params = init_params(kp, cfg)
        x = jax.random.normal(kx, (2, cfg["inp"], 16, 16), jnp.float32)
        out = jax.block_until_ready(shuffle_block_pallas(x, params, cfg))
        ref = jax.block_until_ready(shuffle_block_ref(x, params, cfg))
        if not np.allclose(np.asarray(out), np.asarray(ref), atol=2e-3, rtol=2e-3):
            ok = False
            err = float(np.max(np.abs(np.asarray(out) - np.asarray(ref))))
            print(f"MISMATCH stride={cfg['stride']} max_abs_err={err}")
    if ok:
        print("KERNEL_OK")
</pallas_src>

<mosaic_0001>
module attributes {stable_mosaic.version = 11 : i64} {
  func.func @_fused_s1_kernel(%arg0: i32, %arg1: memref<1x256x32xf32, #tpu.memory_space<vmem>>, %arg2: memref<32x32xf32, #tpu.memory_space<vmem>>, %arg3: memref<1x32xf32, #tpu.memory_space<vmem>>, %arg4: memref<1x32xf32, #tpu.memory_space<vmem>>, %arg5: memref<3x3x512xf32, #tpu.memory_space<vmem>>, %arg6: memref<1x512xf32, #tpu.memory_space<vmem>>, %arg7: memref<1x512xf32, #tpu.memory_space<vmem>>, %arg8: memref<32x32xf32, #tpu.memory_space<vmem>>, %arg9: memref<1x32xf32, #tpu.memory_space<vmem>>, %arg10: memref<1x32xf32, #tpu.memory_space<vmem>>, %arg11: memref<1x16x512xf32, #tpu.memory_space<vmem>>, %arg12: memref<18x576xf32, #tpu.memory_space<vmem>>, %arg13: memref<16x16x32xf32, #tpu.memory_space<vmem>>) attributes {dimension_semantics = [#tpu.dimension_semantics<parallel>], iteration_bounds = array<i64: 2>, scalar_prefetch = 0 : i64, scratch_operands = 2 : i64, tpu.core_type = #tpu.core_type<tc>, window_params = [{transform_indices = @transform_0, window_bounds = array<i64: 1, 256, 32>}, {pipeline_mode = #tpu.pipeline_mode<synchronous>, transform_indices = @transform_1, window_bounds = array<i64: 32, 32>}, {pipeline_mode = #tpu.pipeline_mode<synchronous>, transform_indices = @transform_2, window_bounds = array<i64: 1, 32>}, {pipeline_mode = #tpu.pipeline_mode<synchronous>, transform_indices = @transform_3, window_bounds = array<i64: 1, 32>}, {pipeline_mode = #tpu.pipeline_mode<synchronous>, transform_indices = @transform_4, window_bounds = array<i64: 3, 3, 512>}, {pipeline_mode = #tpu.pipeline_mode<synchronous>, transform_indices = @transform_5, window_bounds = array<i64: 1, 512>}, {pipeline_mode = #tpu.pipeline_mode<synchronous>, transform_indices = @transform_6, window_bounds = array<i64: 1, 512>}, {pipeline_mode = #tpu.pipeline_mode<synchronous>, transform_indices = @transform_7, window_bounds = array<i64: 32, 32>}, {pipeline_mode = #tpu.pipeline_mode<synchronous>, transform_indices = @transform_8, window_bounds = array<i64: 1, 32>}, {pipeline_mode = #tpu.pipeline_mode<synchronous>, transform_indices = @transform_9, window_bounds = array<i64: 1, 32>}, {transform_indices = @transform_10, window_bounds = array<i64: 1, 16, 512>}]} {
    %c0 = arith.constant 0 : index
    %c0_0 = arith.constant 0 : index
    %c0_1 = arith.constant 0 : index
    %0 = vector.load %arg1[%c0, %c0_0, %c0_1] : memref<1x256x32xf32, #tpu.memory_space<vmem>>, vector<1x256x32xf32>
    %1 = vector.shape_cast %0 : vector<1x256x32xf32> to vector<256x32xf32>
    %c0_2 = arith.constant 0 : index
    %c0_3 = arith.constant 0 : index
    %2 = vector.load %arg2[%c0_2, %c0_3] : memref<32x32xf32, #tpu.memory_space<vmem>>, vector<32x32xf32>
    %cst = arith.constant dense<0.000000e+00> : vector<256x32xf32>
    %3 = tpu.matmul %1, %2, %cst {dimension_numbers = #tpu.dot_dimension_numbers<[1], [0], [0], [1], [0, 0, 1, 1], [], []>} : vector<256x32xf32>, vector<32x32xf32>, vector<256x32xf32> -> vector<256x32xf32>
    %c0_4 = arith.constant 0 : index
    %c0_5 = arith.constant 0 : index
    %4 = vector.load %arg3[%c0_4, %c0_5] : memref<1x32xf32, #tpu.memory_space<vmem>>, vector<1x32xf32>
    %5 = vector.broadcast %4 : vector<1x32xf32> to vector<256x32xf32>
    %6 = arith.mulf %3, %5 : vector<256x32xf32>
    %c0_6 = arith.constant 0 : index
    %c0_7 = arith.constant 0 : index
    %7 = vector.load %arg4[%c0_6, %c0_7] : memref<1x32xf32, #tpu.memory_space<vmem>>, vector<1x32xf32>
    %8 = vector.broadcast %7 : vector<1x32xf32> to vector<256x32xf32>
    %9 = arith.addf %6, %8 : vector<256x32xf32>
    %cst_8 = arith.constant 0.000000e+00 : f32
    %10 = vector.broadcast %cst_8 : f32 to vector<256x32xf32>
    %11 = arith.maximumf %9, %10 : vector<256x32xf32>
    %12 = vector.shape_cast %11 : vector<256x32xf32> to vector<16x16x32xf32>
    %cst_9 = arith.constant 0.000000e+00 : f32
    %13 = vector.broadcast %cst_9 : f32 to vector<18x576xf32>
    %c0_10 = arith.constant 0 : index
    %c0_11 = arith.constant 0 : index
    %14 = vector.load %arg12[%c0_10, %c0_11] : memref<18x576xf32, #tpu.memory_space<vmem>>, vector<18x576xf32>
    tpu.vector_store %arg12[%c0_10, %c0_11], %13 {strides = array<i32>} : memref<18x576xf32, #tpu.memory_space<vmem>>, vector<18x576xf32>,
    %15 = vector.extract_strided_slice %12 {offsets = [0, 0, 0], sizes = [16, 1, 32], strides = [1, 1, 1]} : vector<16x16x32xf32> to vector<16x1x32xf32>
    %16 = vector.shape_cast %15 : vector<16x1x32xf32> to vector<16x32xf32>
    %c1 = arith.constant 1 : index
    %c32 = arith.constant 32 : index
    %17 = vector.load %arg12[%c1, %c32] : memref<18x576xf32, #tpu.memory_space<vmem>>, vector<16x32xf32>
    tpu.vector_store %arg12[%c1, %c32], %16 {strides = array<i32>} : memref<18x576xf32, #tpu.memory_space<vmem>>, vector<16x32xf32>,
    %18 = vector.extract_strided_slice %12 {offsets = [0, 1, 0], sizes = [16, 1, 32], strides = [1, 1, 1]} : vector<16x16x32xf32> to vector<16x1x32xf32>
    %19 = vector.shape_cast %18 : vector<16x1x32xf32> to vector<16x32xf32>
    %c1_12 = arith.constant 1 : index
    %c64 = arith.constant 64 : index
    %20 = vector.load %arg12[%c1_12, %c64] : memref<18x576xf32, #tpu.memory_space<vmem>>, vector<16x32xf32>
    tpu.vector_store %arg12[%c1_12, %c64], %19 {strides = array<i32>} : memref<18x576xf32, #tpu.memory_space<vmem>>, vector<16x32xf32>,
    %21 = vector.extract_strided_slice %12 {offsets = [0, 2, 0], sizes = [16, 1, 32], strides = [1, 1, 1]} : vector<16x16x32xf32> to vector<16x1x32xf32>
    %22 = vector.shape_cast %21 : vector<16x1x32xf32> to vector<16x32xf32>
    %c1_13 = arith.constant 1 : index
    %c96 = arith.constant 96 : index
    %23 = vector.load %arg12[%c1_13, %c96] : memref<18x576xf32, #tpu.memory_space<vmem>>, vector<16x32xf32>
    tpu.vector_store %arg12[%c1_13, %c96], %22 {strides = array<i32>} : memref<18x576xf32, #tpu.memory_space<vmem>>, vector<16x32xf32>,
    %24 = vector.extract_strided_slice %12 {offsets = [0, 3, 0], sizes = [16, 1, 32], strides = [1, 1, 1]} : vector<16x16x32xf32> to vector<16x1x32xf32>
    %25 = vector.shape_cast %24 : vector<16x1x32xf32> to vector<16x32xf32>
    %c1_14 = arith.constant 1 : index
    %c128 = arith.constant 128 : index
    %26 = vector.load %arg12[%c1_14, %c128] : memref<18x576xf32, #tpu.memory_space<vmem>>, vector<16x32xf32>
    tpu.vector_store %arg12[%c1_14, %c128], %25 {strides = array<i32>} : memref<18x576xf32, #tpu.memory_space<vmem>>, vector<16x32xf32>,
    %27 = vector.extract_strided_slice %12 {offsets = [0, 4, 0], sizes = [16, 1, 32], strides = [1, 1, 1]} : vector<16x16x32xf32> to vector<16x1x32xf32>
    %28 = vector.shape_cast %27 : vector<16x1x32xf32> to vector<16x32xf32>
    %c1_15 = arith.constant 1 : index
    %c160 = arith.constant 160 : index
    %29 = vector.load %arg12[%c1_15, %c160] : memref<18x576xf32, #tpu.memory_space<vmem>>, vector<16x32xf32>
    tpu.vector_store %arg12[%c1_15, %c160], %28 {strides = array<i32>} : memref<18x576xf32, #tpu.memory_space<vmem>>, vector<16x32xf32>,
    %30 = vector.extract_strided_slice %12 {offsets = [0, 5, 0], sizes = [16, 1, 32], strides = [1, 1, 1]} : vector<16x16x32xf32> to vector<16x1x32xf32>
    %31 = vector.shape_cast %30 : vector<16x1x32xf32> to vector<16x32xf32>
    %c1_16 = arith.constant 1 : index
    %c192 = arith.constant 192 : index
    %32 = vector.load %arg12[%c1_16, %c192] : memref<18x576xf32, #tpu.memory_space<vmem>>, vector<16x32xf32>
    tpu.vector_store %arg12[%c1_16, %c192], %31 {strides = array<i32>} : memref<18x576xf32, #tpu.memory_space<vmem>>, vector<16x32xf32>,
    %33 = vector.extract_strided_slice %12 {offsets = [0, 6, 0], sizes = [16, 1, 32], strides = [1, 1, 1]} : vector<16x16x32xf32> to vector<16x1x32xf32>
    %34 = vector.shape_cast %33 : vector<16x1x32xf32> to vector<16x32xf32>
    %c1_17 = arith.constant 1 : index
    %c224 = arith.constant 224 : index
    %35 = vector.load %arg12[%c1_17, %c224] : memref<18x576xf32, #tpu.memory_space<vmem>>, vector<16x32xf32>
    tpu.vector_store %arg12[%c1_17, %c224], %34 {strides = array<i32>} : memref<18x576xf32, #tpu.memory_space<vmem>>, vector<16x32xf32>,
    %36 = vector.extract_strided_slice %12 {offsets = [0, 7, 0], sizes = [16, 1, 32], strides = [1, 1, 1]} : vector<16x16x32xf32> to vector<16x1x32xf32>
    %37 = vector.shape_cast %36 : vector<16x1x32xf32> to vector<16x32xf32>
    %c1_18 = arith.constant 1 : index
    %c256 = arith.constant 256 : index
    %38 = vector.load %arg12[%c1_18, %c256] : memref<18x576xf32, #tpu.memory_space<vmem>>, vector<16x32xf32>
    tpu.vector_store %arg12[%c1_18, %c256], %37 {strides = array<i32>} : memref<18x576xf32, #tpu.memory_space<vmem>>, vector<16x32xf32>,
    %39 = vector.extract_strided_slice %12 {offsets = [0, 8, 0], sizes = [16, 1, 32], strides = [1, 1, 1]} : vector<16x16x32xf32> to vector<16x1x32xf32>
    %40 = vector.shape_cast %39 : vector<16x1x32xf32> to vector<16x32xf32>
    %c1_19 = arith.constant 1 : index
    %c288 = arith.constant 288 : index
    %41 = vector.load %arg12[%c1_19, %c288] : memref<18x576xf32, #tpu.memory_space<vmem>>, vector<16x32xf32>
    tpu.vector_store %arg12[%c1_19, %c288], %40 {strides = array<i32>} : memref<18x576xf32, #tpu.memory_space<vmem>>, vector<16x32xf32>,
    %42 = vector.extract_strided_slice %12 {offsets = [0, 9, 0], sizes = [16, 1, 32], strides = [1, 1, 1]} : vector<16x16x32xf32> to vector<16x1x32xf32>
    %43 = vector.shape_cast %42 : vector<16x1x32xf32> to vector<16x32xf32>
    %c1_20 = arith.constant 1 : index
    %c320 = arith.constant 320 : index
    %44 = vector.load %arg12[%c1_20, %c320] : memref<18x576xf32, #tpu.memory_space<vmem>>, vector<16x32xf32>
    tpu.vector_store %arg12[%c1_20, %c320], %43 {strides = array<i32>} : memref<18x576xf32, #tpu.memory_space<vmem>>, vector<16x32xf32>,
    %45 = vector.extract_strided_slice %12 {offsets = [0, 10, 0], sizes = [16, 1, 32], strides = [1, 1, 1]} : vector<16x16x32xf32> to vector<16x1x32xf32>
    %46 = vector.shape_cast %45 : vector<16x1x32xf32> to vector<16x32xf32>
    %c1_21 = arith.constant 1 : index
    %c352 = arith.constant 352 : index
    %47 = vector.load %arg12[%c1_21, %c352] : memref<18x576xf32, #tpu.memory_space<vmem>>, vector<16x32xf32>
    tpu.vector_store %arg12[%c1_21, %c352], %46 {strides = array<i32>} : memref<18x576xf32, #tpu.memory_space<vmem>>, vector<16x32xf32>,
    %48 = vector.extract_strided_slice %12 {offsets = [0, 11, 0], sizes = [16, 1, 32], strides = [1, 1, 1]} : vector<16x16x32xf32> to vector<16x1x32xf32>
    %49 = vector.shape_cast %48 : vector<16x1x32xf32> to vector<16x32xf32>
    %c1_22 = arith.constant 1 : index
    %c384 = arith.constant 384 : index
    %50 = vector.load %arg12[%c1_22, %c384] : memref<18x576xf32, #tpu.memory_space<vmem>>, vector<16x32xf32>
    tpu.vector_store %arg12[%c1_22, %c384], %49 {strides = array<i32>} : memref<18x576xf32, #tpu.memory_space<vmem>>, vector<16x32xf32>,
    %51 = vector.extract_strided_slice %12 {offsets = [0, 12, 0], sizes = [16, 1, 32], strides = [1, 1, 1]} : vector<16x16x32xf32> to vector<16x1x32xf32>
    %52 = vector.shape_cast %51 : vector<16x1x32xf32> to vector<16x32xf32>
    %c1_23 = arith.constant 1 : index
    %c416 = arith.constant 416 : index
    %53 = vector.load %arg12[%c1_23, %c416] : memref<18x576xf32, #tpu.memory_space<vmem>>, vector<16x32xf32>
    tpu.vector_store %arg12[%c1_23, %c416], %52 {strides = array<i32>} : memref<18x576xf32, #tpu.memory_space<vmem>>, vector<16x32xf32>,
    %54 = vector.extract_strided_slice %12 {offsets = [0, 13, 0], sizes = [16, 1, 32], strides = [1, 1, 1]} : vector<16x16x32xf32> to vector<16x1x32xf32>
    %55 = vector.shape_cast %54 : vector<16x1x32xf32> to vector<16x32xf32>
    %c1_24 = arith.constant 1 : index
    %c448 = arith.constant 448 : index
    %56 = vector.load %arg12[%c1_24, %c448] : memref<18x576xf32, #tpu.memory_space<vmem>>, vector<16x32xf32>
    tpu.vector_store %arg12[%c1_24, %c448], %55 {strides = array<i32>} : memref<18x576xf32, #tpu.memory_space<vmem>>, vector<16x32xf32>,
    %57 = vector.extract_strided_slice %12 {offsets = [0, 14, 0], sizes = [16, 1, 32], strides = [1, 1, 1]} : vector<16x16x32xf32> to vector<16x1x32xf32>
    %58 = vector.shape_cast %57 : vector<16x1x32xf32> to vector<16x32xf32>
    %c1_25 = arith.constant 1 : index
    %c480 = arith.constant 480 : index
    %59 = vector.load %arg12[%c1_25, %c480] : memref<18x576xf32, #tpu.memory_space<vmem>>, vector<16x32xf32>
    tpu.vector_store %arg12[%c1_25, %c480], %58 {strides = array<i32>} : memref<18x576xf32, #tpu.memory_space<vmem>>, vector<16x32xf32>,
    %60 = vector.extract_strided_slice %12 {offsets = [0, 15, 0], sizes = [16, 1, 32], strides = [1, 1, 1]} : vector<16x16x32xf32> to vector<16x1x32xf32>
    %61 = vector.shape_cast %60 : vector<16x1x32xf32> to vector<16x32xf32>
    %c1_26 = arith.constant 1 : index
    %c512 = arith.constant 512 : index
    %62 = vector.load %arg12[%c1_26, %c512] : memref<18x576xf32, #tpu.memory_space<vmem>>, vector<16x32xf32>
    tpu.vector_store %arg12[%c1_26, %c512], %61 {strides = array<i32>} : memref<18x576xf32, #tpu.memory_space<vmem>>, vector<16x32xf32>,
    %c0_27 = arith.constant 0 : index
    %c0_28 = arith.constant 0 : index
    %63 = vector.load %arg12[%c0_27, %c0_28] : memref<18x576xf32, #tpu.memory_space<vmem>>, vector<18x576xf32>
    %c0_29 = arith.constant 0 : index
    %c0_30 = arith.constant 0 : index
    %c0_31 = arith.constant 0 : index
    %64 = vector.load %arg5[%c0_29, %c0_30, %c0_31] : memref<3x3x512xf32, #tpu.memory_space<vmem>>, vector<3x3x512xf32>
    %cst_32 = arith.constant 0.000000e+00 : f32
    %65 = vector.broadcast %cst_32 : f32 to vector<16x512xf32>
    %66 = vector.extract_strided_slice %63 {offsets = [0, 0], sizes = [16, 512], strides = [1, 1]} : vector<18x576xf32> to vector<16x512xf32>
    %67 = vector.extract_strided_slice %64 {offsets = [0, 0, 0], sizes = [1, 1, 512], strides = [1, 1, 1]} : vector<3x3x512xf32> to vector<1x1x512xf32>
    %68 = vector.shape_cast %67 : vector<1x1x512xf32> to vector<512xf32>
    %69 = vector.shape_cast %68 : vector<512xf32> to vector<1x512xf32>
    %70 = vector.broadcast %69 : vector<1x512xf32> to vector<16x512xf32>
    %71 = arith.mulf %66, %70 : vector<16x512xf32>
    %72 = arith.addf %65, %71 : vector<16x512xf32>
    %73 = vector.extract_strided_slice %63 {offsets = [0, 32], sizes = [16, 512], strides = [1, 1]} : vector<18x576xf32> to vector<16x512xf32>
    %74 = vector.extract_strided_slice %64 {offsets = [0, 1, 0], sizes = [1, 1, 512], strides = [1, 1, 1]} : vector<3x3x512xf32> to vector<1x1x512xf32>
    %75 = vector.shape_cast %74 : vector<1x1x512xf32> to vector<512xf32>
    %76 = vector.shape_cast %75 : vector<512xf32> to vector<1x512xf32>
    %77 = vector.broadcast %76 : vector<1x512xf32> to vector<16x512xf32>
    %78 = arith.mulf %73, %77 : vector<16x512xf32>
    %79 = arith.addf %72, %78 : vector<16x512xf32>
    %80 = vector.extract_strided_slice %63 {offsets = [0, 64], sizes = [16, 512], strides = [1, 1]} : vector<18x576xf32> to vector<16x512xf32>
    %81 = vector.extract_strided_slice %64 {offsets = [0, 2, 0], sizes = [1, 1, 512], strides = [1, 1, 1]} : vector<3x3x512xf32> to vector<1x1x512xf32>
    %82 = vector.shape_cast %81 : vector<1x1x512xf32> to vector<512xf32>
    %83 = vector.shape_cast %82 : vector<512xf32> to vector<1x512xf32>
    %84 = vector.broadcast %83 : vector<1x512xf32> to vector<16x512xf32>
    %85 = arith.mulf %80, %84 : vector<16x512xf32>
    %86 = arith.addf %79, %85 : vector<16x512xf32>
    %87 = vector.extract_strided_slice %63 {offsets = [1, 0], sizes = [16, 512], strides = [1, 1]} : vector<18x576xf32> to vector<16x512xf32>
    %88 = vector.extract_strided_slice %64 {offsets = [1, 0, 0], sizes = [1, 1, 512], strides = [1, 1, 1]} : vector<3x3x512xf32> to vector<1x1x512xf32>
    %89 = vector.shape_cast %88 : vector<1x1x512xf32> to vector<512xf32>
    %90 = vector.shape_cast %89 : vector<512xf32> to vector<1x512xf32>
    %91 = vector.broadcast %90 : vector<1x512xf32> to vector<16x512xf32>
    %92 = arith.mulf %87, %91 : vector<16x512xf32>
    %93 = arith.addf %86, %92 : vector<16x512xf32>
    %94 = vector.extract_strided_slice %63 {offsets = [1, 32], sizes = [16, 512], strides = [1, 1]} : vector<18x576xf32> to vector<16x512xf32>
    %95 = vector.extract_strided_slice %64 {offsets = [1, 1, 0], sizes = [1, 1, 512], strides = [1, 1, 1]} : vector<3x3x512xf32> to vector<1x1x512xf32>
    %96 = vector.shape_cast %95 : vector<1x1x512xf32> to vector<512xf32>
    %97 = vector.shape_cast %96 : vector<512xf32> to vector<1x512xf32>
    %98 = vector.broadcast %97 : vector<1x512xf32> to vector<16x512xf32>
    %99 = arith.mulf %94, %98 : vector<16x512xf32>
    %100 = arith.addf %93, %99 : vector<16x512xf32>
    %101 = vector.extract_strided_slice %63 {offsets = [1, 64], sizes = [16, 512], strides = [1, 1]} : vector<18x576xf32> to vector<16x512xf32>
    %102 = vector.extract_strided_slice %64 {offsets = [1, 2, 0], sizes = [1, 1, 512], strides = [1, 1, 1]} : vector<3x3x512xf32> to vector<1x1x512xf32>
    %103 = vector.shape_cast %102 : vector<1x1x512xf32> to vector<512xf32>
    %104 = vector.shape_cast %103 : vector<512xf32> to vector<1x512xf32>
    %105 = vector.broadcast %104 : vector<1x512xf32> to vector<16x512xf32>
    %106 = arith.mulf %101, %105 : vector<16x512xf32>
    %107 = arith.addf %100, %106 : vector<16x512xf32>
    %108 = vector.extract_strided_slice %63 {offsets = [2, 0], sizes = [16, 512], strides = [1, 1]} : vector<18x576xf32> to vector<16x512xf32>
    %109 = vector.extract_strided_slice %64 {offsets = [2, 0, 0], sizes = [1, 1, 512], strides = [1, 1, 1]} : vector<3x3x512xf32> to vector<1x1x512xf32>
    %110 = vector.shape_cast %109 : vector<1x1x512xf32> to vector<512xf32>
    %111 = vector.shape_cast %110 : vector<512xf32> to vector<1x512xf32>
    %112 = vector.broadcast %111 : vector<1x512xf32> to vector<16x512xf32>
    %113 = arith.mulf %108, %112 : vector<16x512xf32>
    %114 = arith.addf %107, %113 : vector<16x512xf32>
    %115 = vector.extract_strided_slice %63 {offsets = [2, 32], sizes = [16, 512], strides = [1, 1]} : vector<18x576xf32> to vector<16x512xf32>
    %116 = vector.extract_strided_slice %64 {offsets = [2, 1, 0], sizes = [1, 1, 512], strides = [1, 1, 1]} : vector<3x3x512xf32> to vector<1x1x512xf32>
    %117 = vector.shape_cast %116 : vector<1x1x512xf32> to vector<512xf32>
    %118 = vector.shape_cast %117 : vector<512xf32> to vector<1x512xf32>
    %119 = vector.broadcast %118 : vector<1x512xf32> to vector<16x512xf32>
    %120 = arith.mulf %115, %119 : vector<16x512xf32>
    %121 = arith.addf %114, %120 : vector<16x512xf32>
    %122 = vector.extract_strided_slice %63 {offsets = [2, 64], sizes = [16, 512], strides = [1, 1]} : vector<18x576xf32> to vector<16x512xf32>
    %123 = vector.extract_strided_slice %64 {offsets = [2, 2, 0], sizes = [1, 1, 512], strides = [1, 1, 1]} : vector<3x3x512xf32> to vector<1x1x512xf32>
    %124 = vector.shape_cast %123 : vector<1x1x512xf32> to vector<512xf32>
    %125 = vector.shape_cast %124 : vector<512xf32> to vector<1x512xf32>
    %126 = vector.broadcast %125 : vector<1x512xf32> to vector<16x512xf32>
    %127 = arith.mulf %122, %126 : vector<16x512xf32>
    %128 = arith.addf %121, %127 : vector<16x512xf32>
    %c0_33 = arith.constant 0 : index
    %c0_34 = arith.constant 0 : index
    %129 = vector.load %arg6[%c0_33, %c0_34] : memref<1x512xf32, #tpu.memory_space<vmem>>, vector<1x512xf32>
    %130 = vector.broadcast %129 : vector<1x512xf32> to vector<16x512xf32>
    %131 = arith.mulf %128, %130 : vector<16x512xf32>
    %c0_35 = arith.constant 0 : index
    %c0_36 = arith.constant 0 : index
    %132 = vector.load %arg7[%c0_35, %c0_36] : memref<1x512xf32, #tpu.memory_space<vmem>>, vector<1x512xf32>
    %133 = vector.broadcast %132 : vector<1x512xf32> to vector<16x512xf32>
    %134 = arith.addf %131, %133 : vector<16x512xf32>
    %135 = vector.extract_strided_slice %134 {offsets = [0, 0], sizes = [16, 32], strides = [1, 1]} : vector<16x512xf32> to vector<16x32xf32>
    %136 = vector.shape_cast %135 : vector<16x32xf32> to vector<16x1x32xf32>
    %c0_37 = arith.constant 0 : index
    %c0_38 = arith.constant 0 : index
    %c0_39 = arith.constant 0 : index
    %137 = vector.load %arg13[%c0_37, %c0_38, %c0_39] : memref<16x16x32xf32, #tpu.memory_space<vmem>>, vector<16x1x32xf32>
    tpu.vector_store %arg13[%c0_37, %c0_38, %c0_39], %136 {strides = array<i32>} : memref<16x16x32xf32, #tpu.memory_space<vmem>>, vector<16x1x32xf32>,
    %138 = vector.extract_strided_slice %134 {offsets = [0, 32], sizes = [16, 32], strides = [1, 1]} : vector<16x512xf32> to vector<16x32xf32>
    %139 = vector.shape_cast %138 : vector<16x32xf32> to vector<16x1x32xf32>
    %c0_40 = arith.constant 0 : index
    %c1_41 = arith.constant 1 : index
    %c0_42 = arith.constant 0 : index
    %140 = vector.load %arg13[%c0_40, %c1_41, %c0_42] : memref<16x16x32xf32, #tpu.memory_space<vmem>>, vector<16x1x32xf32>
    tpu.vector_store %arg13[%c0_40, %c1_41, %c0_42], %139 {strides = array<i32>} : memref<16x16x32xf32, #tpu.memory_space<vmem>>, vector<16x1x32xf32>,
    %141 = vector.extract_strided_slice %134 {offsets = [0, 64], sizes = [16, 32], strides = [1, 1]} : vector<16x512xf32> to vector<16x32xf32>
    %142 = vector.shape_cast %141 : vector<16x32xf32> to vector<16x1x32xf32>
    %c0_43 = arith.constant 0 : index
    %c2 = arith.constant 2 : index
    %c0_44 = arith.constant 0 : index
    %143 = vector.load %arg13[%c0_43, %c2, %c0_44] : memref<16x16x32xf32, #tpu.memory_space<vmem>>, vector<16x1x32xf32>
    tpu.vector_store %arg13[%c0_43, %c2, %c0_44], %142 {strides = array<i32>} : memref<16x16x32xf32, #tpu.memory_space<vmem>>, vector<16x1x32xf32>,
    %144 = vector.extract_strided_slice %134 {offsets = [0, 96], sizes = [16, 32], strides = [1, 1]} : vector<16x512xf32> to vector<16x32xf32>
    %145 = vector.shape_cast %144 : vector<16x32xf32> to vector<16x1x32xf32>
    %c0_45 = arith.constant 0 : index
    %c3 = arith.constant 3 : index
    %c0_46 = arith.constant 0 : index
    %146 = vector.load %arg13[%c0_45, %c3, %c0_46] : memref<16x16x32xf32, #tpu.memory_space<vmem>>, vector<16x1x32xf32>
    tpu.vector_store %arg13[%c0_45, %c3, %c0_46], %145 {strides = array<i32>} : memref<16x16x32xf32, #tpu.memory_space<vmem>>, vector<16x1x32xf32>,
    %147 = vector.extract_strided_slice %134 {offsets = [0, 128], sizes = [16, 32], strides = [1, 1]} : vector<16x512xf32> to vector<16x32xf32>
    %148 = vector.shape_cast %147 : vector<16x32xf32> to vector<16x1x32xf32>
    %c0_47 = arith.constant 0 : index
    %c4 = arith.constant 4 : index
    %c0_48 = arith.constant 0 : index
    %149 = vector.load %arg13[%c0_47, %c4, %c0_48] : memref<16x16x32xf32, #tpu.memory_space<vmem>>, vector<16x1x32xf32>
    tpu.vector_store %arg13[%c0_47, %c4, %c0_48], %148 {strides = array<i32>} : memref<16x16x32xf32, #tpu.memory_space<vmem>>, vector<16x1x32xf32>,
    %150 = vector.extract_strided_slice %134 {offsets = [0, 160], sizes = [16, 32], strides = [1, 1]} : vector<16x512xf32> to vector<16x32xf32>
    %151 = vector.shape_cast %150 : vector<16x32xf32> to vector<16x1x32xf32>
    %c0_49 = arith.constant 0 : index
    %c5 = arith.constant 5 : index
    %c0_50 = arith.constant 0 : index
    %152 = vector.load %arg13[%c0_49, %c5, %c0_50] : memref<16x16x32xf32, #tpu.memory_space<vmem>>, vector<16x1x32xf32>
    tpu.vector_store %arg13[%c0_49, %c5, %c0_50], %151 {strides = array<i32>} : memref<16x16x32xf32, #tpu.memory_space<vmem>>, vector<16x1x32xf32>,
    %153 = vector.extract_strided_slice %134 {offsets = [0, 192], sizes = [16, 32], strides = [1, 1]} : vector<16x512xf32> to vector<16x32xf32>
    %154 = vector.shape_cast %153 : vector<16x32xf32> to vector<16x1x32xf32>
    %c0_51 = arith.constant 0 : index
    %c6 = arith.constant 6 : index
    %c0_52 = arith.constant 0 : index
    %155 = vector.load %arg13[%c0_51, %c6, %c0_52] : memref<16x16x32xf32, #tpu.memory_space<vmem>>, vector<16x1x32xf32>
    tpu.vector_store %arg13[%c0_51, %c6, %c0_52], %154 {strides = array<i32>} : memref<16x16x32xf32, #tpu.memory_space<vmem>>, vector<16x1x32xf32>,
    %156 = vector.extract_strided_slice %134 {offsets = [0, 224], sizes = [16, 32], strides = [1, 1]} : vector<16x512xf32> to vector<16x32xf32>
    %157 = vector.shape_cast %156 : vector<16x32xf32> to vector<16x1x32xf32>
    %c0_53 = arith.constant 0 : index
    %c7 = arith.constant 7 : index
    %c0_54 = arith.constant 0 : index
    %158 = vector.load %arg13[%c0_53, %c7, %c0_54] : memref<16x16x32xf32, #tpu.memory_space<vmem>>, vector<16x1x32xf32>
    tpu.vector_store %arg13[%c0_53, %c7, %c0_54], %157 {strides = array<i32>} : memref<16x16x32xf32, #tpu.memory_space<vmem>>, vector<16x1x32xf32>,
    %159 = vector.extract_strided_slice %134 {offsets = [0, 256], sizes = [16, 32], strides = [1, 1]} : vector<16x512xf32> to vector<16x32xf32>
    %160 = vector.shape_cast %159 : vector<16x32xf32> to vector<16x1x32xf32>
    %c0_55 = arith.constant 0 : index
    %c8 = arith.constant 8 : index
    %c0_56 = arith.constant 0 : index
    %161 = vector.load %arg13[%c0_55, %c8, %c0_56] : memref<16x16x32xf32, #tpu.memory_space<vmem>>, vector<16x1x32xf32>
    tpu.vector_store %arg13[%c0_55, %c8, %c0_56], %160 {strides = array<i32>} : memref<16x16x32xf32, #tpu.memory_space<vmem>>, vector<16x1x32xf32>,
    %162 = vector.extract_strided_slice %134 {offsets = [0, 288], sizes = [16, 32], strides = [1, 1]} : vector<16x512xf32> to vector<16x32xf32>
    %163 = vector.shape_cast %162 : vector<16x32xf32> to vector<16x1x32xf32>
    %c0_57 = arith.constant 0 : index
    %c9 = arith.constant 9 : index
    %c0_58 = arith.constant 0 : index
    %164 = vector.load %arg13[%c0_57, %c9, %c0_58] : memref<16x16x32xf32, #tpu.memory_space<vmem>>, vector<16x1x32xf32>
    tpu.vector_store %arg13[%c0_57, %c9, %c0_58], %163 {strides = array<i32>} : memref<16x16x32xf32, #tpu.memory_space<vmem>>, vector<16x1x32xf32>,
    %165 = vector.extract_strided_slice %134 {offsets = [0, 320], sizes = [16, 32], strides = [1, 1]} : vector<16x512xf32> to vector<16x32xf32>
    %166 = vector.shape_cast %165 : vector<16x32xf32> to vector<16x1x32xf32>
    %c0_59 = arith.constant 0 : index
    %c10 = arith.constant 10 : index
    %c0_60 = arith.constant 0 : index
    %167 = vector.load %arg13[%c0_59, %c10, %c0_60] : memref<16x16x32xf32, #tpu.memory_space<vmem>>, vector<16x1x32xf32>
    tpu.vector_store %arg13[%c0_59, %c10, %c0_60], %166 {strides = array<i32>} : memref<16x16x32xf32, #tpu.memory_space<vmem>>, vector<16x1x32xf32>,
    %168 = vector.extract_strided_slice %134 {offsets = [0, 352], sizes = [16, 32], strides = [1, 1]} : vector<16x512xf32> to vector<16x32xf32>
    %169 = vector.shape_cast %168 : vector<16x32xf32> to vector<16x1x32xf32>
    %c0_61 = arith.constant 0 : index
    %c11 = arith.constant 11 : index
    %c0_62 = arith.constant 0 : index
    %170 = vector.load %arg13[%c0_61, %c11, %c0_62] : memref<16x16x32xf32, #tpu.memory_space<vmem>>, vector<16x1x32xf32>
    tpu.vector_store %arg13[%c0_61, %c11, %c0_62], %169 {strides = array<i32>} : memref<16x16x32xf32, #tpu.memory_space<vmem>>, vector<16x1x32xf32>,
    %171 = vector.extract_strided_slice %134 {offsets = [0, 384], sizes = [16, 32], strides = [1, 1]} : vector<16x512xf32> to vector<16x32xf32>
    %172 = vector.shape_cast %171 : vector<16x32xf32> to vector<16x1x32xf32>
    %c0_63 = arith.constant 0 : index
    %c12 = arith.constant 12 : index
    %c0_64 = arith.constant 0 : index
    %173 = vector.load %arg13[%c0_63, %c12, %c0_64] : memref<16x16x32xf32, #tpu.memory_space<vmem>>, vector<16x1x32xf32>
    tpu.vector_store %arg13[%c0_63, %c12, %c0_64], %172 {strides = array<i32>} : memref<16x16x32xf32, #tpu.memory_space<vmem>>, vector<16x1x32xf32>,
    %174 = vector.extract_strided_slice %134 {offsets = [0, 416], sizes = [16, 32], strides = [1, 1]} : vector<16x512xf32> to vector<16x32xf32>
    %175 = vector.shape_cast %174 : vector<16x32xf32> to vector<16x1x32xf32>
    %c0_65 = arith.constant 0 : index
    %c13 = arith.constant 13 : index
    %c0_66 = arith.constant 0 : index
    %176 = vector.load %arg13[%c0_65, %c13, %c0_66] : memref<16x16x32xf32, #tpu.memory_space<vmem>>, vector<16x1x32xf32>
    tpu.vector_store %arg13[%c0_65, %c13, %c0_66], %175 {strides = array<i32>} : memref<16x16x32xf32, #tpu.memory_space<vmem>>, vector<16x1x32xf32>,
    %177 = vector.extract_strided_slice %134 {offsets = [0, 448], sizes = [16, 32], strides = [1, 1]} : vector<16x512xf32> to vector<16x32xf32>
    %178 = vector.shape_cast %177 : vector<16x32xf32> to vector<16x1x32xf32>
    %c0_67 = arith.constant 0 : index
    %c14 = arith.constant 14 : index
    %c0_68 = arith.constant 0 : index
    %179 = vector.load %arg13[%c0_67, %c14, %c0_68] : memref<16x16x32xf32, #tpu.memory_space<vmem>>, vector<16x1x32xf32>
    tpu.vector_store %arg13[%c0_67, %c14, %c0_68], %178 {strides = array<i32>} : memref<16x16x32xf32, #tpu.memory_space<vmem>>, vector<16x1x32xf32>,
    %180 = vector.extract_strided_slice %134 {offsets = [0, 480], sizes = [16, 32], strides = [1, 1]} : vector<16x512xf32> to vector<16x32xf32>
    %181 = vector.shape_cast %180 : vector<16x32xf32> to vector<16x1x32xf32>
    %c0_69 = arith.constant 0 : index
    %c15 = arith.constant 15 : index
    %c0_70 = arith.constant 0 : index
    %182 = vector.load %arg13[%c0_69, %c15, %c0_70] : memref<16x16x32xf32, #tpu.memory_space<vmem>>, vector<16x1x32xf32>
    tpu.vector_store %arg13[%c0_69, %c15, %c0_70], %181 {strides = array<i32>} : memref<16x16x32xf32, #tpu.memory_space<vmem>>, vector<16x1x32xf32>,
    %c0_71 = arith.constant 0 : index
    %c0_72 = arith.constant 0 : index
    %c0_73 = arith.constant 0 : index
    %183 = vector.load %arg13[%c0_71, %c0_72, %c0_73] : memref<16x16x32xf32, #tpu.memory_space<vmem>>, vector<16x16x32xf32>
    %184 = vector.shape_cast %183 : vector<16x16x32xf32> to vector<256x32xf32>
    %c0_74 = arith.constant 0 : index
    %c0_75 = arith.constant 0 : index
    %185 = vector.load %arg8[%c0_74, %c0_75] : memref<32x32xf32, #tpu.memory_space<vmem>>, vector<32x32xf32>
    %cst_76 = arith.constant dense<0.000000e+00> : vector<256x32xf32>
    %186 = tpu.matmul %184, %185, %cst_76 {dimension_numbers = #tpu.dot_dimension_numbers<[1], [0], [0], [1], [0, 0, 1, 1], [], []>} : vector<256x32xf32>, vector<32x32xf32>, vector<256x32xf32> -> vector<256x32xf32>
    %c0_77 = arith.constant 0 : index
    %c0_78 = arith.constant 0 : index
    %187 = vector.load %arg9[%c0_77, %c0_78] : memref<1x32xf32, #tpu.memory_space<vmem>>, vector<1x32xf32>
    %188 = vector.broadcast %187 : vector<1x32xf32> to vector<256x32xf32>
    %189 = arith.mulf %186, %188 : vector<256x32xf32>
    %c0_79 = arith.constant 0 : index
    %c0_80 = arith.constant 0 : index
    %190 = vector.load %arg10[%c0_79, %c0_80] : memref<1x32xf32, #tpu.memory_space<vmem>>, vector<1x32xf32>
    %191 = vector.broadcast %190 : vector<1x32xf32> to vector<256x32xf32>
    %192 = arith.addf %189, %191 : vector<256x32xf32>
    %193 = arith.addf %192, %1 : vector<256x32xf32>
    %cst_81 = arith.constant 0.000000e+00 : f32
    %194 = vector.broadcast %cst_81 : f32 to vector<256x32xf32>
    %195 = arith.maximumf %193, %194 : vector<256x32xf32>
    %196 = vector.shape_cast %195 : vector<256x32xf32> to vector<16x16x32xf32>
    %197 = vector.extract_strided_slice %196 {offsets = [0, 0, 0], sizes = [16, 1, 32], strides = [1, 1, 1]} : vector<16x16x32xf32> to vector<16x1x32xf32>
    %198 = vector.shape_cast %197 : vector<16x1x32xf32> to vector<16x32xf32>
    %c0_82 = arith.constant 0 : index
    %c0_83 = arith.constant 0 : index
    %c0_84 = arith.constant 0 : index
    %199 = vector.load %arg11[%c0_82, %c0_83, %c0_84] : memref<1x16x512xf32, #tpu.memory_space<vmem>>, vector<1x16x32xf32>
    %200 = vector.shape_cast %199 : vector<1x16x32xf32> to vector<16x32xf32>
    %201 = vector.shape_cast %198 : vector<16x32xf32> to vector<1x16x32xf32>
    tpu.vector_store %arg11[%c0_82, %c0_83, %c0_84], %201 {strides = array<i32>} : memref<1x16x512xf32, #tpu.memory_space<vmem>>, vector<1x16x32xf32>,
    %202 = vector.extract_strided_slice %196 {offsets = [0, 1, 0], sizes = [16, 1, 32], strides = [1, 1, 1]} : vector<16x16x32xf32> to vector<16x1x32xf32>
    %203 = vector.shape_cast %202 : vector<16x1x32xf32> to vector<16x32xf32>
    %c0_85 = arith.constant 0 : index
    %c0_86 = arith.constant 0 : index
    %c32_87 = arith.constant 32 : index
    %204 = vector.load %arg11[%c0_85, %c0_86, %c32_87] : memref<1x16x512xf32, #tpu.memory_space<vmem>>, vector<1x16x32xf32>
    %205 = vector.shape_cast %204 : vector<1x16x32xf32> to vector<16x32xf32>
    %206 = vector.shape_cast %203 : vector<16x32xf32> to vector<1x16x32xf32>
    tpu.vector_store %arg11[%c0_85, %c0_86, %c32_87], %206 {strides = array<i32>} : memref<1x16x512xf32, #tpu.memory_space<vmem>>, vector<1x16x32xf32>,
    %207 = vector.extract_strided_slice %196 {offsets = [0, 2, 0], sizes = [16, 1, 32], strides = [1, 1, 1]} : vector<16x16x32xf32> to vector<16x1x32xf32>
    %208 = vector.shape_cast %207 : vector<16x1x32xf32> to vector<16x32xf32>
    %c0_88 = arith.constant 0 : index
    %c0_89 = arith.constant 0 : index
    %c64_90 = arith.constant 64 : index
    %209 = vector.load %arg11[%c0_88, %c0_89, %c64_90] : memref<1x16x512xf32, #tpu.memory_space<vmem>>, vector<1x16x32xf32>
    %210 = vector.shape_cast %209 : vector<1x16x32xf32> to vector<16x32xf32>
    %211 = vector.shape_cast %208 : vector<16x32xf32> to vector<1x16x32xf32>
    tpu.vector_store %arg11[%c0_88, %c0_89, %c64_90], %211 {strides = array<i32>} : memref<1x16x512xf32, #tpu.memory_space<vmem>>, vector<1x16x32xf32>,
    %212 = vector.extract_strided_slice %196 {offsets = [0, 3, 0], sizes = [16, 1, 32], strides = [1, 1, 1]} : vector<16x16x32xf32> to vector<16x1x32xf32>
    %213 = vector.shape_cast %212 : vector<16x1x32xf32> to vector<16x32xf32>
    %c0_91 = arith.constant 0 : index
    %c0_92 = arith.constant 0 : index
    %c96_93 = arith.constant 96 : index
    %214 = vector.load %arg11[%c0_91, %c0_92, %c96_93] : memref<1x16x512xf32, #tpu.memory_space<vmem>>, vector<1x16x32xf32>
    %215 = vector.shape_cast %214 : vector<1x16x32xf32> to vector<16x32xf32>
    %216 = vector.shape_cast %213 : vector<16x32xf32> to vector<1x16x32xf32>
    tpu.vector_store %arg11[%c0_91, %c0_92, %c96_93], %216 {strides = array<i32>} : memref<1x16x512xf32, #tpu.memory_space<vmem>>, vector<1x16x32xf32>,
    %217 = vector.extract_strided_slice %196 {offsets = [0, 4, 0], sizes = [16, 1, 32], strides = [1, 1, 1]} : vector<16x16x32xf32> to vector<16x1x32xf32>
    %218 = vector.shape_cast %217 : vector<16x1x32xf32> to vector<16x32xf32>
    %c0_94 = arith.constant 0 : index
    %c0_95 = arith.constant 0 : index
    %c128_96 = arith.constant 128 : index
    %219 = vector.load %arg11[%c0_94, %c0_95, %c128_96] : memref<1x16x512xf32, #tpu.memory_space<vmem>>, vector<1x16x32xf32>
    %220 = vector.shape_cast %219 : vector<1x16x32xf32> to vector<16x32xf32>
    %221 = vector.shape_cast %218 : vector<16x32xf32> to vector<1x16x32xf32>
    tpu.vector_store %arg11[%c0_94, %c0_95, %c128_96], %221 {strides = array<i32>} : memref<1x16x512xf32, #tpu.memory_space<vmem>>, vector<1x16x32xf32>,
    %222 = vector.extract_strided_slice %196 {offsets = [0, 5, 0], sizes = [16, 1, 32], strides = [1, 1, 1]} : vector<16x16x32xf32> to vector<16x1x32xf32>
    %223 = vector.shape_cast %222 : vector<16x1x32xf32> to vector<16x32xf32>
    %c0_97 = arith.constant 0 : index
    %c0_98 = arith.constant 0 : index
    %c160_99 = arith.constant 160 : index
    %224 = vector.load %arg11[%c0_97, %c0_98, %c160_99] : memref<1x16x512xf32, #tpu.memory_space<vmem>>, vector<1x16x32xf32>
    %225 = vector.shape_cast %224 : vector<1x16x32xf32> to vector<16x32xf32>
    %226 = vector.shape_cast %223 : vector<16x32xf32> to vector<1x16x32xf32>
    tpu.vector_store %arg11[%c0_97, %c0_98, %c160_99], %226 {strides = array<i32>} : memref<1x16x512xf32, #tpu.memory_space<vmem>>, vector<1x16x32xf32>,
    %227 = vector.extract_strided_slice %196 {offsets = [0, 6, 0], sizes = [16, 1, 32], strides = [1, 1, 1]} : vector<16x16x32xf32> to vector<16x1x32xf32>
    %228 = vector.shape_cast %227 : vector<16x1x32xf32> to vector<16x32xf32>
    %c0_100 = arith.constant 0 : index
    %c0_101 = arith.constant 0 : index
    %c192_102 = arith.constant 192 : index
    %229 = vector.load %arg11[%c0_100, %c0_101, %c192_102] : memref<1x16x512xf32, #tpu.memory_space<vmem>>, vector<1x16x32xf32>
    %230 = vector.shape_cast %229 : vector<1x16x32xf32> to vector<16x32xf32>
    %231 = vector.shape_cast %228 : vector<16x32xf32> to vector<1x16x32xf32>
    tpu.vector_store %arg11[%c0_100, %c0_101, %c192_102], %231 {strides = array<i32>} : memref<1x16x512xf32, #tpu.memory_space<vmem>>, vector<1x16x32xf32>,
    %232 = vector.extract_strided_slice %196 {offsets = [0, 7, 0], sizes = [16, 1, 32], strides = [1, 1, 1]} : vector<16x16x32xf32> to vector<16x1x32xf32>
    %233 = vector.shape_cast %232 : vector<16x1x32xf32> to vector<16x32xf32>
    %c0_103 = arith.constant 0 : index
    %c0_104 = arith.constant 0 : index
    %c224_105 = arith.constant 224 : index
    %234 = vector.load %arg11[%c0_103, %c0_104, %c224_105] : memref<1x16x512xf32, #tpu.memory_space<vmem>>, vector<1x16x32xf32>
    %235 = vector.shape_cast %234 : vector<1x16x32xf32> to vector<16x32xf32>
    %236 = vector.shape_cast %233 : vector<16x32xf32> to vector<1x16x32xf32>
    tpu.vector_store %arg11[%c0_103, %c0_104, %c224_105], %236 {strides = array<i32>} : memref<1x16x512xf32, #tpu.memory_space<vmem>>, vector<1x16x32xf32>,
    %237 = vector.extract_strided_slice %196 {offsets = [0, 8, 0], sizes = [16, 1, 32], strides = [1, 1, 1]} : vector<16x16x32xf32> to vector<16x1x32xf32>
    %238 = vector.shape_cast %237 : vector<16x1x32xf32> to vector<16x32xf32>
    %c0_106 = arith.constant 0 : index
    %c0_107 = arith.constant 0 : index
    %c256_108 = arith.constant 256 : index
    %239 = vector.load %arg11[%c0_106, %c0_107, %c256_108] : memref<1x16x512xf32, #tpu.memory_space<vmem>>, vector<1x16x32xf32>
    %240 = vector.shape_cast %239 : vector<1x16x32xf32> to vector<16x32xf32>
    %241 = vector.shape_cast %238 : vector<16x32xf32> to vector<1x16x32xf32>
    tpu.vector_store %arg11[%c0_106, %c0_107, %c256_108], %241 {strides = array<i32>} : memref<1x16x512xf32, #tpu.memory_space<vmem>>, vector<1x16x32xf32>,
    %242 = vector.extract_strided_slice %196 {offsets = [0, 9, 0], sizes = [16, 1, 32], strides = [1, 1, 1]} : vector<16x16x32xf32> to vector<16x1x32xf32>
    %243 = vector.shape_cast %242 : vector<16x1x32xf32> to vector<16x32xf32>
    %c0_109 = arith.constant 0 : index
    %c0_110 = arith.constant 0 : index
    %c288_111 = arith.constant 288 : index
    %244 = vector.load %arg11[%c0_109, %c0_110, %c288_111] : memref<1x16x512xf32, #tpu.memory_space<vmem>>, vector<1x16x32xf32>
    %245 = vector.shape_cast %244 : vector<1x16x32xf32> to vector<16x32xf32>
    %246 = vector.shape_cast %243 : vector<16x32xf32> to vector<1x16x32xf32>
    tpu.vector_store %arg11[%c0_109, %c0_110, %c288_111], %246 {strides = array<i32>} : memref<1x16x512xf32, #tpu.memory_space<vmem>>, vector<1x16x32xf32>,
    %247 = vector.extract_strided_slice %196 {offsets = [0, 10, 0], sizes = [16, 1, 32], strides = [1, 1, 1]} : vector<16x16x32xf32> to vector<16x1x32xf32>
    %248 = vector.shape_cast %247 : vector<16x1x32xf32> to vector<16x32xf32>
    %c0_112 = arith.constant 0 : index
    %c0_113 = arith.constant 0 : index
    %c320_114 = arith.constant 320 : index
    %249 = vector.load %arg11[%c0_112, %c0_113, %c320_114] : memref<1x16x512xf32, #tpu.memory_space<vmem>>, vector<1x16x32xf32>
    %250 = vector.shape_cast %249 : vector<1x16x32xf32> to vector<16x32xf32>
    %251 = vector.shape_cast %248 : vector<16x32xf32> to vector<1x16x32xf32>
    tpu.vector_store %arg11[%c0_112, %c0_113, %c320_114], %251 {strides = array<i32>} : memref<1x16x512xf32, #tpu.memory_space<vmem>>, vector<1x16x32xf32>,
    %252 = vector.extract_strided_slice %196 {offsets = [0, 11, 0], sizes = [16, 1, 32], strides = [1, 1, 1]} : vector<16x16x32xf32> to vector<16x1x32xf32>
    %253 = vector.shape_cast %252 : vector<16x1x32xf32> to vector<16x32xf32>
    %c0_115 = arith.constant 0 : index
    %c0_116 = arith.constant 0 : index
    %c352_117 = arith.constant 352 : index
    %254 = vector.load %arg11[%c0_115, %c0_116, %c352_117] : memref<1x16x512xf32, #tpu.memory_space<vmem>>, vector<1x16x32xf32>
    %255 = vector.shape_cast %254 : vector<1x16x32xf32> to vector<16x32xf32>
    %256 = vector.shape_cast %253 : vector<16x32xf32> to vector<1x16x32xf32>
    tpu.vector_store %arg11[%c0_115, %c0_116, %c352_117], %256 {strides = array<i32>} : memref<1x16x512xf32, #tpu.memory_space<vmem>>, vector<1x16x32xf32>,
    %257 = vector.extract_strided_slice %196 {offsets = [0, 12, 0], sizes = [16, 1, 32], strides = [1, 1, 1]} : vector<16x16x32xf32> to vector<16x1x32xf32>
    %258 = vector.shape_cast %257 : vector<16x1x32xf32> to vector<16x32xf32>
    %c0_118 = arith.constant 0 : index
    %c0_119 = arith.constant 0 : index
    %c384_120 = arith.constant 384 : index
    %259 = vector.load %arg11[%c0_118, %c0_119, %c384_120] : memref<1x16x512xf32, #tpu.memory_space<vmem>>, vector<1x16x32xf32>
    %260 = vector.shape_cast %259 : vector<1x16x32xf32> to vector<16x32xf32>
    %261 = vector.shape_cast %258 : vector<16x32xf32> to vector<1x16x32xf32>
    tpu.vector_store %arg11[%c0_118, %c0_119, %c384_120], %261 {strides = array<i32>} : memref<1x16x512xf32, #tpu.memory_space<vmem>>, vector<1x16x32xf32>,
    %262 = vector.extract_strided_slice %196 {offsets = [0, 13, 0], sizes = [16, 1, 32], strides = [1, 1, 1]} : vector<16x16x32xf32> to vector<16x1x32xf32>
    %263 = vector.shape_cast %262 : vector<16x1x32xf32> to vector<16x32xf32>
    %c0_121 = arith.constant 0 : index
    %c0_122 = arith.constant 0 : index
    %c416_123 = arith.constant 416 : index
    %264 = vector.load %arg11[%c0_121, %c0_122, %c416_123] : memref<1x16x512xf32, #tpu.memory_space<vmem>>, vector<1x16x32xf32>
    %265 = vector.shape_cast %264 : vector<1x16x32xf32> to vector<16x32xf32>
    %266 = vector.shape_cast %263 : vector<16x32xf32> to vector<1x16x32xf32>
    tpu.vector_store %arg11[%c0_121, %c0_122, %c416_123], %266 {strides = array<i32>} : memref<1x16x512xf32, #tpu.memory_space<vmem>>, vector<1x16x32xf32>,
    %267 = vector.extract_strided_slice %196 {offsets = [0, 14, 0], sizes = [16, 1, 32], strides = [1, 1, 1]} : vector<16x16x32xf32> to vector<16x1x32xf32>
    %268 = vector.shape_cast %267 : vector<16x1x32xf32> to vector<16x32xf32>
    %c0_124 = arith.constant 0 : index
    %c0_125 = arith.constant 0 : index
    %c448_126 = arith.constant 448 : index
    %269 = vector.load %arg11[%c0_124, %c0_125, %c448_126] : memref<1x16x512xf32, #tpu.memory_space<vmem>>, vector<1x16x32xf32>
    %270 = vector.shape_cast %269 : vector<1x16x32xf32> to vector<16x32xf32>
    %271 = vector.shape_cast %268 : vector<16x32xf32> to vector<1x16x32xf32>
    tpu.vector_store %arg11[%c0_124, %c0_125, %c448_126], %271 {strides = array<i32>} : memref<1x16x512xf32, #tpu.memory_space<vmem>>, vector<1x16x32xf32>,
    %272 = vector.extract_strided_slice %196 {offsets = [0, 15, 0], sizes = [16, 1, 32], strides = [1, 1, 1]} : vector<16x16x32xf32> to vector<16x1x32xf32>
    %273 = vector.shape_cast %272 : vector<16x1x32xf32> to vector<16x32xf32>
    %c0_127 = arith.constant 0 : index
    %c0_128 = arith.constant 0 : index
    %c480_129 = arith.constant 480 : index
    %274 = vector.load %arg11[%c0_127, %c0_128, %c480_129] : memref<1x16x512xf32, #tpu.memory_space<vmem>>, vector<1x16x32xf32>
    %275 = vector.shape_cast %274 : vector<1x16x32xf32> to vector<16x32xf32>
    %276 = vector.shape_cast %273 : vector<16x32xf32> to vector<1x16x32xf32>
    tpu.vector_store %arg11[%c0_127, %c0_128, %c480_129], %276 {strides = array<i32>} : memref<1x16x512xf32, #tpu.memory_space<vmem>>, vector<1x16x32xf32>,
    return
  }
  func.func @transform_0(%arg0: i32) -> (i32, i32, i32) {
    %c0_i32 = arith.constant 0 : i32
    %c0_i32_0 = arith.constant 0 : i32
    %c0_i32_1 = arith.constant 0 : i32
    return %arg0, %c0_i32, %c0_i32_0 : i32, i32, i32
  }
  func.func @transform_1(%arg0: i32) -> (i32, i32) {
    %c0_i32 = arith.constant 0 : i32
    %c0_i32_0 = arith.constant 0 : i32
    %c0_i32_1 = arith.constant 0 : i32
    return %c0_i32, %c0_i32_0 : i32, i32
  }
  func.func @transform_2(%arg0: i32) -> (i32, i32) {
    %c0_i32 = arith.constant 0 : i32
    %c0_i32_0 = arith.constant 0 : i32
    %c0_i32_1 = arith.constant 0 : i32
    return %c0_i32, %c0_i32_0 : i32, i32
  }
  func.func @transform_3(%arg0: i32) -> (i32, i32) {
    %c0_i32 = arith.constant 0 : i32
    %c0_i32_0 = arith.constant 0 : i32
    %c0_i32_1 = arith.constant 0 : i32
    return %c0_i32, %c0_i32_0 : i32, i32
  }
  func.func @transform_4(%arg0: i32) -> (i32, i32, i32) {
    %c0_i32 = arith.constant 0 : i32
    %c0_i32_0 = arith.constant 0 : i32
    %c0_i32_1 = arith.constant 0 : i32
    %c0_i32_2 = arith.constant 0 : i32
    return %c0_i32, %c0_i32_0, %c0_i32_1 : i32, i32, i32
  }
  func.func @transform_5(%arg0: i32) -> (i32, i32) {
    %c0_i32 = arith.constant 0 : i32
    %c0_i32_0 = arith.constant 0 : i32
    %c0_i32_1 = arith.constant 0 : i32
    return %c0_i32, %c0_i32_0 : i32, i32
  }
  func.func @transform_6(%arg0: i32) -> (i32, i32) {
    %c0_i32 = arith.constant 0 : i32
    %c0_i32_0 = arith.constant 0 : i32
    %c0_i32_1 = arith.constant 0 : i32
    return %c0_i32, %c0_i32_0 : i32, i32
  }
  func.func @transform_7(%arg0: i32) -> (i32, i32) {
    %c0_i32 = arith.constant 0 : i32
    %c0_i32_0 = arith.constant 0 : i32
    %c0_i32_1 = arith.constant 0 : i32
    return %c0_i32, %c0_i32_0 : i32, i32
  }
  func.func @transform_8(%arg0: i32) -> (i32, i32) {
    %c0_i32 = arith.constant 0 : i32
    %c0_i32_0 = arith.constant 0 : i32
    %c0_i32_1 = arith.constant 0 : i32
    return %c0_i32, %c0_i32_0 : i32, i32
  }
  func.func @transform_9(%arg0: i32) -> (i32, i32) {
    %c0_i32 = arith.constant 0 : i32
    %c0_i32_0 = arith.constant 0 : i32
    %c0_i32_1 = arith.constant 0 : i32
    return %c0_i32, %c0_i32_0 : i32, i32
  }
  func.func @transform_10(%arg0: i32) -> (i32, i32, i32) {
    %c0_i32 = arith.constant 0 : i32
    %c0_i32_0 = arith.constant 0 : i32
    %c0_i32_1 = arith.constant 0 : i32
    return %arg0, %c0_i32, %c0_i32_0 : i32, i32, i32
  }
}

</mosaic_0001>

<llo_original>
// kernel: tpu_custom_call.1
$region0: #{tpu_custom_call.1}
  #allocation0 [shape = 'u32[]', space=smem, size = 0x4, offset = 0x4, fixed_abs, tag = 'smem constant byte address 0x4 - core index']
  #allocation1 [shape = 'u32[144,128]{1,0:T(1,128)}', space=vmem, size = 0x12000, scoped, tag = 'internal scratch']
  #allocation2 [shape = 'f32[18,576]{1,0:T(8,128)}', space=vmem, size = 0xf000, scoped, tag = 'scratch operand']
  #allocation3 [shape = 'f32[16,16,32]{2,1,0:T(8,128)}', space=vmem, size = 0x20000, scoped, tag = 'scratch operand']
  %s0 = inlined_call_operand.vmem [shape: f32[2,256,32], index: 0, kind: input, shape index: {}]
  %s1 = inlined_call_operand.vmem [shape: f32[32,32], index: 1, kind: input, shape index: {}]
  %s2 = inlined_call_operand.vmem [shape: f32[1,32], index: 2, kind: input, shape index: {}]
  %s3 = inlined_call_operand.vmem [shape: f32[1,32], index: 3, kind: input, shape index: {}]
  %s4 = inlined_call_operand.vmem [shape: f32[3,3,512], index: 4, kind: input, shape index: {}]
  %s5 = inlined_call_operand.vmem [shape: f32[1,512], index: 5, kind: input, shape index: {}]
  %s6 = inlined_call_operand.vmem [shape: f32[1,512], index: 6, kind: input, shape index: {}]
  %s7 = inlined_call_operand.vmem [shape: f32[32,32], index: 7, kind: input, shape index: {}]
  %s8 = inlined_call_operand.vmem [shape: f32[1,32], index: 8, kind: input, shape index: {}]
  %s9 = inlined_call_operand.vmem [shape: f32[1,32], index: 9, kind: input, shape index: {}]
  %s10 = inlined_call_operand.hbm [shape: f32[2,16,512], index: 10, kind: output, shape index: {}]
  %s11 = sld [smem:[#allocation0]]
  $region73: #{tpu_custom_call.1} parent=0
    _
  %s13 = ssub.s32 1, %s11
  %s14 = scalar_select 0, %s13, %s11
  $region1: #{tpu_custom_call.1} parent=0
    #allocation4 [shape = 'u8[65536]{0}', space=vmem, size = 0x10000, scoped, tag = 'output window, operand 0']
    #allocation5 [shape = 's32[2]{0}', space=sflag, size = 0x8, scoped, tag = 'scoped memory for tpu_custom_call.1']
    %15 = vsyncpa [#allocation5], 0
    %s16 = scalar_lea.sflag [#allocation5], 1
    %17 = vsyncpa %s16, 0
    loop: start=0, step=1, limit=4
    $region2: #{tpu_custom_call.1} parent=1 // loop_pre_header
      _
    $region3: #{tpu_custom_call.1} parent=1 // loop_header
      %s19 = sphi 0, %s23
      %p20 = scmp.ge.s32.totalorder %s19, 4
      %s29 = sphi 0, %s31
      %s32 = sphi 0, %s29
      %s33 = sphi 0, %s32
      %s49 = sphi 0, %s33
      %s53 = sphi 0, %s53
      %s55 = sphi 0, %s53
      %s56 = sphi 0, %s55
      %s70 = sphi 0, %s56
      %s74 = sphi 0, %s74
      %s76 = sphi 0, %s74
      %s77 = sphi 0, %s76
      %s91 = sphi 0, %s77
      %s95 = sphi 0, %s95
      %s97 = sphi 0, %s95
      %s98 = sphi 0, %s97
      %s112 = sphi 0, %s98
      %s116 = sphi 0, %s116
      %s118 = sphi 0, %s116
      %s119 = sphi 0, %s118
      %s133 = sphi 0, %s119
      %s137 = sphi 0, %s137
      %s139 = sphi 0, %s137
      %s140 = sphi 0, %s139
      %s154 = sphi 0, %s140
      %s158 = sphi 0, %s158
      %s160 = sphi 0, %s158
      %s161 = sphi 0, %s160
      %s175 = sphi 0, %s161
      %s179 = sphi 0, %s179
      %s181 = sphi 0, %s179
      %s182 = sphi 0, %s181
      %s196 = sphi 0, %s182
      %s200 = sphi 0, %s200
      %s202 = sphi 0, %s200
      %s203 = sphi 0, %s202
      %s217 = sphi 0, %s203
      %s221 = sphi 0, %s221
      %s223 = sphi 0, %s221
      %s224 = sphi 0, %s223
      %s238 = sphi 0, %s224
      %s244 = sphi 0, %s246
      %s247 = sphi 0, %s244
      %s248 = sphi 0, %s247
      %s264 = sphi 0, %s248
    $region4: #{tpu_custom_call.1} parent=1 // loop_header_branch
      %22 = sbr.rel (%p20) target = $region8
    $region5: #{tpu_custom_call.1} parent=1 // loop_body
      %s24 = ssub.s32 %s19, 1
      %s25 = ssub.s32 %s19, 2
      %s26 = sadd.s32 %s19, 1
      %s27 = ssub.s32 %s19, %s26
      %p28 = scmp.eq.s32.totalorder %s27, 0
      %s30 = sadd.s32 %s29, 1
      %s31 = scalar_select %p28, %s29, %s30
      %p34 = pneg %p28
      %p35 = scmp.eq.s32.totalorder %s19, 1
      %p36 = por %p34, %p35
      %p37 = scmp.ne.s32.totalorder %s29, %s32
      %p38 = scmp.eq.s32.totalorder %s19, 0
      %p39 = por %p37, %p38
      %p40 = scmp.ne.s32.totalorder %s29, %s32
      %p41 = scmp.eq.s32.totalorder %s24, 1
      %p42 = por %p40, %p41
      %p43 = scmp.ne.s32.totalorder %s32, %s33
      %p44 = scmp.eq.s32.totalorder %s24, 0
      %p45 = por %p43, %p44
      %p46 = scmp.ne.s32.totalorder %s32, %s33
      %p47 = scmp.eq.s32.totalorder %s25, 1
      %p48 = por %p46, %p47
      %p50 = scmp.ne.s32.totalorder %s33, %s49
      %p51 = scmp.eq.s32.totalorder %s25, 0
      %p52 = por %p50, %p51
      %s54 = sadd.s32 %s53, 1
      %p57 = scmp.eq.s32.totalorder %s19, 1
      %p58 = scmp.ne.s32.totalorder %s53, %s55
      %p59 = scmp.eq.s32.totalorder %s19, 0
      %p60 = por %p58, %p59
      %p61 = scmp.ne.s32.totalorder %s53, %s55
      %p62 = scmp.eq.s32.totalorder %s24, 1
      %p63 = por %p61, %p62
      %p64 = scmp.ne.s32.totalorder %s55, %s56
      %p65 = scmp.eq.s32.totalorder %s24, 0
      %p66 = por %p64, %p65
      %p67 = scmp.ne.s32.totalorder %s55, %s56
      %p68 = scmp.eq.s32.totalorder %s25, 1
      %p69 = por %p67, %p68
      %p71 = scmp.ne.s32.totalorder %s56, %s70
      %p72 = scmp.eq.s32.totalorder %s25, 0
      %p73 = por %p71, %p72
      %s75 = sadd.s32 %s74, 1
      %p78 = scmp.eq.s32.totalorder %s19, 1
      %p79 = scmp.ne.s32.totalorder %s74, %s76
      %p80 = scmp.eq.s32.totalorder %s19, 0
      %p81 = por %p79, %p80
      %p82 = scmp.ne.s32.totalorder %s74, %s76
      %p83 = scmp.eq.s32.totalorder %s24, 1
      %p84 = por %p82, %p83
      %p85 = scmp.ne.s32.totalorder %s76, %s77
      %p86 = scmp.eq.s32.totalorder %s24, 0
      %p87 = por %p85, %p86
      %p88 = scmp.ne.s32.totalorder %s76, %s77
      %p89 = scmp.eq.s32.totalorder %s25, 1
      %p90 = por %p88, %p89
      %p92 = scmp.ne.s32.totalorder %s77, %s91
      %p93 = scmp.eq.s32.totalorder %s25, 0
      %p94 = por %p92, %p93
      %s96 = sadd.s32 %s95, 1
      %p99 = scmp.eq.s32.totalorder %s19, 1
      %p100 = scmp.ne.s32.totalorder %s95, %s97
      %p101 = scmp.eq.s32.totalorder %s19, 0
      %p102 = por %p100, %p101
      %p103 = scmp.ne.s32.totalorder %s95, %s97
      %p104 = scmp.eq.s32.totalorder %s24, 1
      %p105 = por %p103, %p104
      %p106 = scmp.ne.s32.totalorder %s97, %s98
      %p107 = scmp.eq.s32.totalorder %s24, 0
      %p108 = por %p106, %p107
      %p109 = scmp.ne.s32.totalorder %s97, %s98
      %p110 = scmp.eq.s32.totalorder %s25, 1
      %p111 = por %p109, %p110
      %p113 = scmp.ne.s32.totalorder %s98, %s112
      %p114 = scmp.eq.s32.totalorder %s25, 0
      %p115 = por %p113, %p114
      %s117 = sadd.s32 %s116, 1
      %p120 = scmp.eq.s32.totalorder %s19, 1
      %p121 = scmp.ne.s32.totalorder %s116, %s118
      %p122 = scmp.eq.s32.totalorder %s19, 0
      %p123 = por %p121, %p122
      %p124 = scmp.ne.s32.totalorder %s116, %s118
      %p125 = scmp.eq.s32.totalorder %s24, 1
      %p126 = por %p124, %p125
      %p127 = scmp.ne.s32.totalorder %s118, %s119
      %p128 = scmp.eq.s32.totalorder %s24, 0
      %p129 = por %p127, %p128
      %p130 = scmp.ne.s32.totalorder %s118, %s119
      %p131 = scmp.eq.s32.totalorder %s25, 1
      %p132 = por %p130, %p131
      %p134 = scmp.ne.s32.totalorder %s119, %s133
      %p135 = scmp.eq.s32.totalorder %s25, 0
      %p136 = por %p134, %p135
      %s138 = sadd.s32 %s137, 1
      %p141 = scmp.eq.s32.totalorder %s19, 1
      %p142 = scmp.ne.s32.totalorder %s137, %s139
      %p143 = scmp.eq.s32.totalorder %s19, 0
      %p144 = por %p142, %p143
      %p145 = scmp.ne.s32.totalorder %s137, %s139
      %p146 = scmp.eq.s32.totalorder %s24, 1
      %p147 = por %p145, %p146
      %p148 = scmp.ne.s32.totalorder %s139, %s140
      %p149 = scmp.eq.s32.totalorder %s24, 0
      %p150 = por %p148, %p149
      %p151 = scmp.ne.s32.totalorder %s139, %s140
      %p152 = scmp.eq.s32.totalorder %s25, 1
      %p153 = por %p151, %p152
      %p155 = scmp.ne.s32.totalorder %s140, %s154
      %p156 = scmp.eq.s32.totalorder %s25, 0
      %p157 = por %p155, %p156
      %s159 = sadd.s32 %s158, 1
      %p162 = scmp.eq.s32.totalorder %s19, 1
      %p163 = scmp.ne.s32.totalorder %s158, %s160
      %p164 = scmp.eq.s32.totalorder %s19, 0
      %p165 = por %p163, %p164
      %p166 = scmp.ne.s32.totalorder %s158, %s160
      %p167 = scmp.eq.s32.totalorder %s24, 1
      %p168 = por %p166, %p167
      %p169 = scmp.ne.s32.totalorder %s160, %s161
      %p170 = scmp.eq.s32.totalorder %s24, 0
      %p171 = por %p169, %p170
      %p172 = scmp.ne.s32.totalorder %s160, %s161
      %p173 = scmp.eq.s32.totalorder %s25, 1
      %p174 = por %p172, %p173
      %p176 = scmp.ne.s32.totalorder %s161, %s175
      %p177 = scmp.eq.s32.totalorder %s25, 0
      %p178 = por %p176, %p177
      %s180 = sadd.s32 %s179, 1
      %p183 = scmp.eq.s32.totalorder %s19, 1
      %p184 = scmp.ne.s32.totalorder %s179, %s181
      %p185 = scmp.eq.s32.totalorder %s19, 0
      %p186 = por %p184, %p185
      %p187 = scmp.ne.s32.totalorder %s179, %s181
      %p188 = scmp.eq.s32.totalorder %s24, 1
      %p189 = por %p187, %p188
      %p190 = scmp.ne.s32.totalorder %s181, %s182
      %p191 = scmp.eq.s32.totalorder %s24, 0
      %p192 = por %p190, %p191
      %p193 = scmp.ne.s32.totalorder %s181, %s182
      %p194 = scmp.eq.s32.totalorder %s25, 1
      %p195 = por %p193, %p194
      %p197 = scmp.ne.s32.totalorder %s182, %s196
      %p198 = scmp.eq.s32.totalorder %s25, 0
      %p199 = por %p197, %p198
      %s201 = sadd.s32 %s200, 1
      %p204 = scmp.eq.s32.totalorder %s19, 1
      %p205 = scmp.ne.s32.totalorder %s200, %s202
      %p206 = scmp.eq.s32.totalorder %s19, 0
      %p207 = por %p205, %p206
      %p208 = scmp.ne.s32.totalorder %s200, %s202
      %p209 = scmp.eq.s32.totalorder %s24, 1
      %p210 = por %p208, %p209
      %p211 = scmp.ne.s32.totalorder %s202, %s203
      %p212 = scmp.eq.s32.totalorder %s24, 0
      %p213 = por %p211, %p212
      %p214 = scmp.ne.s32.totalorder %s202, %s203
      %p215 = scmp.eq.s32.totalorder %s25, 1
      %p216 = por %p214, %p215
      %p218 = scmp.ne.s32.totalorder %s203, %s217
      %p219 = scmp.eq.s32.totalorder %s25, 0
      %p220 = por %p218, %p219
      %s222 = sadd.s32 %s221, 1
      %p225 = scmp.eq.s32.totalorder %s19, 1
      %p226 = scmp.ne.s32.totalorder %s221, %s223
      %p227 = scmp.eq.s32.totalorder %s19, 0
      %p228 = por %p226, %p227
      %p229 = scmp.ne.s32.totalorder %s221, %s223
      %p230 = scmp.eq.s32.totalorder %s24, 1
      %p231 = por %p229, %p230
      %p232 = scmp.ne.s32.totalorder %s223, %s224
      %p233 = scmp.eq.s32.totalorder %s24, 0
      %p234 = por %p232, %p233
      %p235 = scmp.ne.s32.totalorder %s223, %s224
      %p236 = scmp.eq.s32.totalorder %s25, 1
      %p237 = por %p235, %p236
      %p239 = scmp.ne.s32.totalorder %s224, %s238
      %p240 = scmp.eq.s32.totalorder %s25, 0
      %p241 = por %p239, %p240
      %s242 = ssub.s32 %s19, %s26
      %p243 = scmp.eq.s32.totalorder %s242, 0
      %s245 = sadd.s32 %s244, 1
      %s246 = scalar_select %p243, %s244, %s245
      %p249 = pneg %p243
      %p250 = scmp.eq.s32.totalorder %s19, 1
      %p251 = por %p249, %p250
      %p252 = scmp.ne.s32.totalorder %s244, %s247
      %p253 = scmp.eq.s32.totalorder %s19, 0
      %p254 = por %p252, %p253
      %p255 = scmp.ne.s32.totalorder %s244, %s247
      %p256 = scmp.eq.s32.totalorder %s24, 1
      %p257 = por %p255, %p256
      %p258 = scmp.ne.s32.totalorder %s247, %s248
      %p259 = scmp.eq.s32.totalorder %s24, 0
      %p260 = por %p258, %p259
      %p261 = scmp.ne.s32.totalorder %s247, %s248
      %p262 = scmp.eq.s32.totalorder %s25, 1
      %p263 = por %p261, %p262
      %p265 = scmp.ne.s32.totalorder %s248, %s264
      %p266 = scmp.eq.s32.totalorder %s25, 0
      %p267 = por %p265, %p266
      %p268 = scmp.le.s32.totalorder 1, %s19
      %p269 = scmp.lt.s32.totalorder %s19, 3
      %p270 = pnand %p268, %p269
      %p271 = pneg %p270
      // Predicated region
      $region9: #{tpu_custom_call.1} parent=5 // pred_check
        _
      $region10: #{tpu_custom_call.1} parent=5 // pred_check_branch
        %273 = sbr.rel (%p270) target = $region12
      $region11: #{tpu_custom_call.1} parent=5 // pred_region
        %s274 = ssub.s32 %s19, 1
        // Predicated region
        $region13: #{tpu_custom_call.1} parent=11 // pred_check
          %p275 = pneg %p66
        $region14: #{tpu_custom_call.1} parent=11 // pred_check_branch
          %277 = sbr.rel (%p275) target = $region16
        $region15: #{tpu_custom_call.1} parent=11 // pred_region
          _
        $region16: #{tpu_custom_call.1} parent=11 // pred_fallthru
          _
        // Predicated region
        $region17: #{tpu_custom_call.1} parent=11 // pred_check
          %p278 = pneg %p87
        $region18: #{tpu_custom_call.1} parent=11 // pred_check_branch
          %280 = sbr.rel (%p278) target = $region20
        $region19: #{tpu_custom_call.1} parent=11 // pred_region
          _
        $region20: #{tpu_custom_call.1} parent=11 // pred_fallthru
          _
        // Predicated region
        $region21: #{tpu_custom_call.1} parent=11 // pred_check
          %p281 = pneg %p108
        $region22: #{tpu_custom_call.1} parent=11 // pred_check_branch
          %283 = sbr.rel (%p281) target = $region24
        $region23: #{tpu_custom_call.1} parent=11 // pred_region
          _
        $region24: #{tpu_custom_call.1} parent=11 // pred_fallthru
          _
        // Predicated region
        $region25: #{tpu_custom_call.1} parent=11 // pred_check
          %p284 = pneg %p129
        $region26: #{tpu_custom_call.1} parent=11 // pred_check_branch
          %286 = sbr.rel (%p284) target = $region28
        $region27: #{tpu_custom_call.1} parent=11 // pred_region
          _
        $region28: #{tpu_custom_call.1} parent=11 // pred_fallthru
          _
        // Predicated region
        $region29: #{tpu_custom_call.1} parent=11 // pred_check
          %p287 = pneg %p150
        $region30: #{tpu_custom_call.1} parent=11 // pred_check_branch
          %289 = sbr.rel (%p287) target = $region32
        $region31: #{tpu_custom_call.1} parent=11 // pred_region
          _
        $region32: #{tpu_custom_call.1} parent=11 // pred_fallthru
          _
        // Predicated region
        $region33: #{tpu_custom_call.1} parent=11 // pred_check
          %p290 = pneg %p171
        $region34: #{tpu_custom_call.1} parent=11 // pred_check_branch
          %292 = sbr.rel (%p290) target = $region36
        $region35: #{tpu_custom_call.1} parent=11 // pred_region
          _
        $region36: #{tpu_custom_call.1} parent=11 // pred_fallthru
          _
        // Predicated region
        $region37: #{tpu_custom_call.1} parent=11 // pred_check
          %p293 = pneg %p192
        $region38: #{tpu_custom_call.1} parent=11 // pred_check_branch
          %295 = sbr.rel (%p293) target = $region40
        $region39: #{tpu_custom_call.1} parent=11 // pred_region
          _
        $region40: #{tpu_custom_call.1} parent=11 // pred_fallthru
          _
        // Predicated region
        $region41: #{tpu_custom_call.1} parent=11 // pred_check
          %p296 = pneg %p213
        $region42: #{tpu_custom_call.1} parent=11 // pred_check_branch
          %298 = sbr.rel (%p296) target = $region44
        $region43: #{tpu_custom_call.1} parent=11 // pred_region
          _
        $region44: #{tpu_custom_call.1} parent=11 // pred_fallthru
          _
        // Predicated region
        $region45: #{tpu_custom_call.1} parent=11 // pred_check
          %p299 = pneg %p234
        $region46: #{tpu_custom_call.1} parent=11 // pred_check_branch
          %301 = sbr.rel (%p299) target = $region48
        $region47: #{tpu_custom_call.1} parent=11 // pred_region
          _
        $region48: #{tpu_custom_call.1} parent=11 // pred_fallthru
          _
      $region12: #{tpu_custom_call.1} parent=5 // pred_fallthru
        _
      %p302 = scmp.lt.s32.totalorder %s19, 2
      // Predicated region
      $region49: #{tpu_custom_call.1} parent=5 // pred_check
        %p303 = pneg %p302
      $region50: #{tpu_custom_call.1} parent=5 // pred_check_branch
        %305 = sbr.rel (%p303) target = $region52
      $region51: #{tpu_custom_call.1} parent=5 // pred_region
        // Predicated region
        $region53: #{tpu_custom_call.1} parent=51 // pred_check
          %p306 = pneg %p39
        $region54: #{tpu_custom_call.1} parent=51 // pred_check_branch
          %308 = sbr.rel (%p306) target = $region56
        $region55: #{tpu_custom_call.1} parent=51 // pred_region
          %p309 = scmp.lt.s32.totalorder %s19, 1
          %s310 = scalar_select %p309, %s19, 1
          %s311 = smul.addr %s310, 32
          %s312 = smul.addr %s311, 8
          %s313 = scalar_lea.vmem %s0, %s312
        $region56: #{tpu_custom_call.1} parent=51 // pred_fallthru
          _
      $region52: #{tpu_custom_call.1} parent=5 // pred_fallthru
        _
      %p314 = scmp.le.s32.totalorder 1, %s19
      %p315 = scmp.lt.s32.totalorder %s19, 3
      %p316 = pnand %p314, %p315
      %p317 = pneg %p316
      // Predicated region
      $region57: #{tpu_custom_call.1} parent=5 // pred_check
        _
      $region58: #{tpu_custom_call.1} parent=5 // pred_check_branch
        %319 = sbr.rel (%p316) target = $region60
      $region59: #{tpu_custom_call.1} parent=5 // pred_region
        %s320 = ssub.s32 %s19, 1
        %p321 = scmp.lt.s32.totalorder %s24, 1
        %s322 = scalar_select %p321, %s24, 1
        %s323 = smul.addr %s322, 32
        %s324 = smul.addr %s323, 8
        %s325 = scalar_lea.vmem %s0, %s324
        %p326 = pneg %p45
        %p327 = pneg %p42
        %p328 = pneg %p66
        %p329 = pneg %p63
        %p330 = pneg %p87
        %p331 = pneg %p84
        %p332 = pneg %p108
        %p333 = pneg %p105
        %p334 = pneg %p129
        %p335 = pneg %p126
        %p336 = pneg %p150
        %p337 = pneg %p147
        %p338 = pneg %p171
        %p339 = pneg %p168
        %p340 = pneg %p192
        %p341 = pneg %p189
        %p342 = pneg %p213
        %p343 = pneg %p210
        %p344 = pneg %p234
        %p345 = pneg %p231
        %p346 = pneg %p260
        %p347 = pneg %p257
        %s348 = sand.u32 %s247, 1
        %s349 = scalar_lea.sflag [#allocation5], %s348
        %s350 = sand.u32 %s247, 1
        %s351 = smul.addr %s350, 64
        %s352 = scalar_lea.vmem [#allocation4], %s351
        %p353 = scmp.lt.s32.totalorder %s24, 1
        %s354 = scalar_select %p353, %s24, 1
        %s355 = smul.addr %s354, 32
        %s356 = smul.addr %s355, 8
        %s357 = scalar_lea.vmem %s0, %s356
        %v358 = vld [vmem:[%s357] sm:$0xff]
        %v359 = vld [vmem:[%s357 + $0x8] sm:$0xff]
        %v360 = vld [vmem:[%s357 + $0x10] sm:$0xff]
        %v361 = vld [vmem:[%s357 + $0x18] sm:$0xff]
        %v362 = vld [vmem:[%s357 + $0x20] sm:$0xff]
        %v363 = vld [vmem:[%s357 + $0x28] sm:$0xff]
        %v364 = vld [vmem:[%s357 + $0x30] sm:$0xff]
        %v365 = vld [vmem:[%s357 + $0x38] sm:$0xff]
        %v366 = vld [vmem:[%s357 + $0x40] sm:$0xff]
        %v367 = vld [vmem:[%s357 + $0x48] sm:$0xff]
        %v368 = vld [vmem:[%s357 + $0x50] sm:$0xff]
        %v369 = vld [vmem:[%s357 + $0x58] sm:$0xff]
        %v370 = vld [vmem:[%s357 + $0x60] sm:$0xff]
        %v371 = vld [vmem:[%s357 + $0x68] sm:$0xff]
        %v372 = vld [vmem:[%s357 + $0x70] sm:$0xff]
        %v373 = vld [vmem:[%s357 + $0x78] sm:$0xff]
        %v374 = vld [vmem:[%s357 + $0x80] sm:$0xff]
        %v375 = vld [vmem:[%s357 + $0x88] sm:$0xff]
        %v376 = vld [vmem:[%s357 + $0x90] sm:$0xff]
        %v377 = vld [vmem:[%s357 + $0x98] sm:$0xff]
        %v378 = vld [vmem:[%s357 + $0xa0] sm:$0xff]
        %v379 = vld [vmem:[%s357 + $0xa8] sm:$0xff]
        %v380 = vld [vmem:[%s357 + $0xb0] sm:$0xff]
        %v381 = vld [vmem:[%s357 + $0xb8] sm:$0xff]
        %v382 = vld [vmem:[%s357 + $0xc0] sm:$0xff]
        %v383 = vld [vmem:[%s357 + $0xc8] sm:$0xff]
        %v384 = vld [vmem:[%s357 + $0xd0] sm:$0xff]
        %v385 = vld [vmem:[%s357 + $0xd8] sm:$0xff]
        %v386 = vld [vmem:[%s357 + $0xe0] sm:$0xff]
        %v387 = vld [vmem:[%s357 + $0xe8] sm:$0xff]
        %v388 = vld [vmem:[%s357 + $0xf0] sm:$0xff]
        %v389 = vld [vmem:[%s357 + $0xf8] sm:$0xff]
        %v390 = vld [vmem:[%s1] sm:$0xff]
        %v391 = vld [vmem:[%s1 + $0x8] sm:$0xff]
        %v392 = vld [vmem:[%s1 + $0x10] sm:$0xff]
        %v393 = vld [vmem:[%s1 + $0x18] sm:$0xff]
        %vm394 = vcmask 261120
        %v396 = vsel %vm394, %v358, 0
        %v399 = vsel %vm394, %v359, 0
        %v402 = vsel %vm394, %v360, 0
        %v405 = vsel %vm394, %v361, 0
        %v408 = vsel %vm394, %v362, 0
        %v411 = vsel %vm394, %v363, 0
        %v414 = vsel %vm394, %v364, 0
        %v417 = vsel %vm394, %v365, 0
        %v420 = vsel %vm394, %v366, 0
        %v423 = vsel %vm394, %v367, 0
        %v426 = vsel %vm394, %v368, 0
        %v429 = vsel %vm394, %v369, 0
        %v432 = vsel %vm394, %v370, 0
        %v435 = vsel %vm394, %v371, 0
        %v438 = vsel %vm394, %v372, 0
        %v441 = vsel %vm394, %v373, 0
        %v444 = vsel %vm394, %v374, 0
        %v447 = vsel %vm394, %v375, 0
        %v450 = vsel %vm394, %v376, 0
        %v453 = vsel %vm394, %v377, 0
        %v456 = vsel %vm394, %v378, 0
        %v459 = vsel %vm394, %v379, 0
        %v462 = vsel %vm394, %v380, 0
        %v465 = vsel %vm394, %v381, 0
        %v468 = vsel %vm394, %v382, 0
        %v471 = vsel %vm394, %v383, 0
        %v474 = vsel %vm394, %v384, 0
        %v477 = vsel %vm394, %v385, 0
        %v480 = vsel %vm394, %v386, 0
        %v483 = vsel %vm394, %v387, 0
        %v486 = vsel %vm394, %v388, 0
        %v489 = vsel %vm394, %v389, 0
        %491 = vmatprep.subr.mxu0 0.0
        %492 = vmatpush1.msra.mxu0 %v390
        %493 = vmatprep.subr.mxu0 0.0
        %494 = vmatpush1.msra.mxu0 %v391
        %495 = vmatprep.subr.mxu0 0.0
        %496 = vmatpush1.msra.mxu0 %v392
        %497 = vmatprep.subr.mxu0 0.0
        %498 = vmatpush1.msra.mxu0 %v393
        %499 = vmatprep.subr.mxu0 0.0
        %500 = vmatpush1.msra.mxu0 0.0
        %501 = vmatprep.subr.mxu0 0.0
        %502 = vmatpush1.msra.mxu0 0.0
        %503 = vmatprep.subr.mxu0 0.0
        %504 = vmatpush1.msra.mxu0 0.0
        %505 = vmatprep.subr.mxu0 0.0
        %506 = vmatpush1.msra.mxu0 0.0
        %507 = vmatprep.subr.mxu0 0.0
        %508 = vmatpush1.msra.mxu0 0.0
        %509 = vmatprep.subr.mxu0 0.0
        %510 = vmatpush1.msra.mxu0 0.0
        %511 = vmatprep.subr.mxu0 0.0
        %512 = vmatpush1.msra.mxu0 0.0
        %513 = vmatprep.subr.mxu0 0.0
        %514 = vmatpush1.msra.mxu0 0.0
        %515 = vmatprep.subr.mxu0 0.0
        %516 = vmatpush1.msra.mxu0 0.0
        %517 = vmatprep.subr.mxu0 0.0
        %518 = vmatpush1.msra.mxu0 0.0
        %519 = vmatprep.subr.mxu0 0.0
        %520 = vmatpush1.msra.mxu0 0.0
        %521 = vmatprep.subr.mxu0 0.0
        %522 = vmatpush1.msra.mxu0 0.0
        %523 = vmatprep.subr.mxu0 0.0
        %524 = vmatpush1.msra.mxu0 0.0
        %525 = vmatprep.subr.mxu0 0.0
        %526 = vmatpush1.msra.mxu0 0.0
        %527 = vmatprep.subr.mxu0 0.0
        %528 = vmatpush1.msra.mxu0 0.0
        %529 = vmatprep.subr.mxu0 0.0
        %530 = vmatpush1.msra.mxu0 0.0
        %531 = vmatprep.subr.mxu0 0.0
        %532 = vmatpush1.msra.mxu0 0.0
        %533 = vmatprep.subr.mxu0 0.0
        %534 = vmatpush1.msra.mxu0 0.0
        %535 = vmatprep.subr.mxu0 0.0
        %536 = vmatpush1.msra.mxu0 0.0
        %537 = vmatprep.subr.mxu0 0.0
        %538 = vmatpush1.msra.mxu0 0.0
        %539 = vmatprep.subr.mxu0 0.0
        %540 = vmatpush1.msra.mxu0 0.0
        %541 = vmatprep.subr.mxu0 0.0
        %542 = vmatpush1.msra.mxu0 0.0
        %543 = vmatprep.subr.mxu0 0.0
        %544 = vmatpush1.msra.mxu0 0.0
        %545 = vmatprep.subr.mxu0 0.0
        %546 = vmatpush1.msra.mxu0 0.0
        %547 = vmatprep.subr.mxu0 0.0
        %548 = vmatpush1.msra.mxu0 0.0
        %549 = vmatprep.subr.mxu0 0.0
        %550 = vmatpush1.msra.mxu0 0.0
        %551 = vmatprep.subr.mxu0 0.0
        %552 = vmatpush1.msra.mxu0 0.0
        %553 = vmatprep.subr.mxu0 0.0
        %554 = vmatpush1.msra.mxu0 0.0
        %555 = vmatprep.mubr.f32.mxu0 0.0
        %556 = vmatmul.mubr.f32.gmra.mrb[0].mxu0 %v396
        %v557 = vpop.f32.mrb[0].mxu0
        %v558 = vadd.f32 0.0, %v557
        %v559 = vpop.f32.mrb[0].mxu0
        %560 = vmatprep.mubr.f32.mxu0 0.0
        %561 = vmatmul.mubr.f32.gmra.mrb[0].mxu0 %v399
        %v562 = vpop.f32.mrb[0].mxu0
        %v563 = vadd.f32 0.0, %v562
        %v564 = vpop.f32.mrb[0].mxu0
        %565 = vmatprep.mubr.f32.mxu0 0.0
        %566 = vmatmul.mubr.f32.gmra.mrb[0].mxu0 %v402
        %v567 = vpop.f32.mrb[0].mxu0
        %v568 = vadd.f32 0.0, %v567
        %v569 = vpop.f32.mrb[0].mxu0
        %570 = vmatprep.mubr.f32.mxu0 0.0
        %571 = vmatmul.mubr.f32.gmra.mrb[0].mxu0 %v405
        %v572 = vpop.f32.mrb[0].mxu0
        %v573 = vadd.f32 0.0, %v572
        %v574 = vpop.f32.mrb[0].mxu0
        %575 = vmatprep.mubr.f32.mxu0 0.0
        %576 = vmatmul.mubr.f32.gmra.mrb[0].mxu0 %v408
        %v577 = vpop.f32.mrb[0].mxu0
        %v578 = vadd.f32 0.0, %v577
        %v579 = vpop.f32.mrb[0].mxu0
        %580 = vmatprep.mubr.f32.mxu0 0.0
        %581 = vmatmul.mubr.f32.gmra.mrb[0].mxu0 %v411
        %v582 = vpop.f32.mrb[0].mxu0
        %v583 = vadd.f32 0.0, %v582
        %v584 = vpop.f32.mrb[0].mxu0
        %585 = vmatprep.mubr.f32.mxu0 0.0
        %586 = vmatmul.mubr.f32.gmra.mrb[0].mxu0 %v414
        %v587 = vpop.f32.mrb[0].mxu0
        %v588 = vadd.f32 0.0, %v587
        %v589 = vpop.f32.mrb[0].mxu0
        %590 = vmatprep.mubr.f32.mxu0 0.0
        %591 = vmatmul.mubr.f32.gmra.mrb[0].mxu0 %v417
        %v592 = vpop.f32.mrb[0].mxu0
        %v593 = vadd.f32 0.0, %v592
        %v594 = vpop.f32.mrb[0].mxu0
        %595 = vmatprep.mubr.f32.mxu0 0.0
        %596 = vmatmul.mubr.f32.gmra.mrb[0].mxu0 %v420
        %v597 = vpop.f32.mrb[0].mxu0
        %v598 = vadd.f32 0.0, %v597
        %v599 = vpop.f32.mrb[0].mxu0
        %600 = vmatprep.mubr.f32.mxu0 0.0
        %601 = vmatmul.mubr.f32.gmra.mrb[0].mxu0 %v423
        %v602 = vpop.f32.mrb[0].mxu0
        %v603 = vadd.f32 0.0, %v602
        %v604 = vpop.f32.mrb[0].mxu0
        %605 = vmatprep.mubr.f32.mxu0 0.0
        %606 = vmatmul.mubr.f32.gmra.mrb[0].mxu0 %v426
        %v607 = vpop.f32.mrb[0].mxu0
        %v608 = vadd.f32 0.0, %v607
        %v609 = vpop.f32.mrb[0].mxu0
        %610 = vmatprep.mubr.f32.mxu0 0.0
        %611 = vmatmul.mubr.f32.gmra.mrb[0].mxu0 %v429
        %v612 = vpop.f32.mrb[0].mxu0
        %v613 = vadd.f32 0.0, %v612
        %v614 = vpop.f32.mrb[0].mxu0
        %615 = vmatprep.mubr.f32.mxu0 0.0
        %616 = vmatmul.mubr.f32.gmra.mrb[0].mxu0 %v432
        %v617 = vpop.f32.mrb[0].mxu0
        %v618 = vadd.f32 0.0, %v617
        %v619 = vpop.f32.mrb[0].mxu0
        %620 = vmatprep.mubr.f32.mxu0 0.0
        %621 = vmatmul.mubr.f32.gmra.mrb[0].mxu0 %v435
        %v622 = vpop.f32.mrb[0].mxu0
        %v623 = vadd.f32 0.0, %v622
        %v624 = vpop.f32.mrb[0].mxu0
        %625 = vmatprep.mubr.f32.mxu0 0.0
        %626 = vmatmul.mubr.f32.gmra.mrb[0].mxu0 %v438
        %v627 = vpop.f32.mrb[0].mxu0
        %v628 = vadd.f32 0.0, %v627
        %v629 = vpop.f32.mrb[0].mxu0
        %630 = vmatprep.mubr.f32.mxu0 0.0
        %631 = vmatmul.mubr.f32.gmra.mrb[0].mxu0 %v441
        %v632 = vpop.f32.mrb[0].mxu0
        %v633 = vadd.f32 0.0, %v632
        %v634 = vpop.f32.mrb[0].mxu0
        %635 = vmatprep.mubr.f32.mxu0 0.0
        %636 = vmatmul.mubr.f32.gmra.mrb[0].mxu0 %v444
        %v637 = vpop.f32.mrb[0].mxu0
        %v638 = vadd.f32 0.0, %v637
        %v639 = vpop.f32.mrb[0].mxu0
        %640 = vmatprep.mubr.f32.mxu0 0.0
        %641 = vmatmul.mubr.f32.gmra.mrb[0].mxu0 %v447
        %v642 = vpop.f32.mrb[0].mxu0
        %v643 = vadd.f32 0.0, %v642
        %v644 = vpop.f32.mrb[0].mxu0
        %645 = vmatprep.mubr.f32.mxu0 0.0
        %646 = vmatmul.mubr.f32.gmra.mrb[0].mxu0 %v450
        %v647 = vpop.f32.mrb[0].mxu0
        %v648 = vadd.f32 0.0, %v647
        %v649 = vpop.f32.mrb[0].mxu0
        %650 = vmatprep.mubr.f32.mxu0 0.0
        %651 = vmatmul.mubr.f32.gmra.mrb[0].mxu0 %v453
        %v652 = vpop.f32.mrb[0].mxu0
        %v653 = vadd.f32 0.0, %v652
        %v654 = vpop.f32.mrb[0].mxu0
        %655 = vmatprep.mubr.f32.mxu0 0.0
        %656 = vmatmul.mubr.f32.gmra.mrb[0].mxu0 %v456
        %v657 = vpop.f32.mrb[0].mxu0
        %v658 = vadd.f32 0.0, %v657
        %v659 = vpop.f32.mrb[0].mxu0
        %660 = vmatprep.mubr.f32.mxu0 0.0
        %661 = vmatmul.mubr.f32.gmra.mrb[0].mxu0 %v459
        %v662 = vpop.f32.mrb[0].mxu0
        %v663 = vadd.f32 0.0, %v662
        %v664 = vpop.f32.mrb[0].mxu0
        %665 = vmatprep.mubr.f32.mxu0 0.0
        %666 = vmatmul.mubr.f32.gmra.mrb[0].mxu0 %v462
        %v667 = vpop.f32.mrb[0].mxu0
        %v668 = vadd.f32 0.0, %v667
        %v669 = vpop.f32.mrb[0].mxu0
        %670 = vmatprep.mubr.f32.mxu0 0.0
        %671 = vmatmul.mubr.f32.gmra.mrb[0].mxu0 %v465
        %v672 = vpop.f32.mrb[0].mxu0
        %v673 = vadd.f32 0.0, %v672
        %v674 = vpop.f32.mrb[0].mxu0
        %675 = vmatprep.mubr.f32.mxu0 0.0
        %676 = vmatmul.mubr.f32.gmra.mrb[0].mxu0 %v468
        %v677 = vpop.f32.mrb[0].mxu0
        %v678 = vadd.f32 0.0, %v677
        %v679 = vpop.f32.mrb[0].mxu0
        %680 = vmatprep.mubr.f32.mxu0 0.0
        %681 = vmatmul.mubr.f32.gmra.mrb[0].mxu0 %v471
        %v682 = vpop.f32.mrb[0].mxu0
        %v683 = vadd.f32 0.0, %v682
        %v684 = vpop.f32.mrb[0].mxu0
        %685 = vmatprep.mubr.f32.mxu0 0.0
        %686 = vmatmul.mubr.f32.gmra.mrb[0].mxu0 %v474
        %v687 = vpop.f32.mrb[0].mxu0
        %v688 = vadd.f32 0.0, %v687
        %v689 = vpop.f32.mrb[0].mxu0
        %690 = vmatprep.mubr.f32.mxu0 0.0
        %691 = vmatmul.mubr.f32.gmra.mrb[0].mxu0 %v477
        %v692 = vpop.f32.mrb[0].mxu0
        %v693 = vadd.f32 0.0, %v692
        %v694 = vpop.f32.mrb[0].mxu0
        %695 = vmatprep.mubr.f32.mxu0 0.0
        %696 = vmatmul.mubr.f32.gmra.mrb[0].mxu0 %v480
        %v697 = vpop.f32.mrb[0].mxu0
        %v698 = vadd.f32 0.0, %v697
        %v699 = vpop.f32.mrb[0].mxu0
        %700 = vmatprep.mubr.f32.mxu0 0.0
        %701 = vmatmul.mubr.f32.gmra.mrb[0].mxu0 %v483
        %v702 = vpop.f32.mrb[0].mxu0
        %v703 = vadd.f32 0.0, %v702
        %v704 = vpop.f32.mrb[0].mxu0
        %705 = vmatprep.mubr.f32.mxu0 0.0
        %706 = vmatmul.mubr.f32.gmra.mrb[0].mxu0 %v486
        %v707 = vpop.f32.mrb[0].mxu0
        %v708 = vadd.f32 0.0, %v707
        %v709 = vpop.f32.mrb[0].mxu0
        %710 = vmatprep.mubr.f32.mxu0 0.0
        %711 = vmatmul.mubr.f32.gmra.mrb[0].mxu0 %v489
        %v712 = vpop.f32.mrb[0].mxu0
        %v713 = vadd.f32 0.0, %v712
        %v714 = vpop.f32.mrb[0].mxu0
        %715 = vdwg.mxu0
        %v716 = vld [vmem:[%s2] sm:$0x1]
        %v718 = vlaneseq
        %v719 = vshrl.u32 %v718, 7
        %v720 = vsub.s32 0, %v719
        %v721 = vrot.slane %v716, %v720
        %v723 = vmul.f32 %v558, %v721
        %v724 = vmul.f32 %v563, %v721
        %v725 = vmul.f32 %v568, %v721
        %v726 = vmul.f32 %v573, %v721
        %v727 = vmul.f32 %v578, %v721
        %v728 = vmul.f32 %v583, %v721
        %v729 = vmul.f32 %v588, %v721
        %v730 = vmul.f32 %v593, %v721
        %v731 = vmul.f32 %v598, %v721
        %v732 = vmul.f32 %v603, %v721
        %v733 = vmul.f32 %v608, %v721
        %v734 = vmul.f32 %v613, %v721
        %v735 = vmul.f32 %v618, %v721
        %v736 = vmul.f32 %v623, %v721
        %v737 = vmul.f32 %v628, %v721
        %v738 = vmul.f32 %v633, %v721
        %v739 = vmul.f32 %v638, %v721
        %v740 = vmul.f32 %v643, %v721
        %v741 = vmul.f32 %v648, %v721
        %v742 = vmul.f32 %v653, %v721
        %v743 = vmul.f32 %v658, %v721
        %v744 = vmul.f32 %v663, %v721
        %v745 = vmul.f32 %v668, %v721
        %v746 = vmul.f32 %v673, %v721
        %v747 = vmul.f32 %v678, %v721
        %v748 = vmul.f32 %v683, %v721
        %v749 = vmul.f32 %v688, %v721
        %v750 = vmul.f32 %v693, %v721
        %v751 = vmul.f32 %v698, %v721
        %v752 = vmul.f32 %v703, %v721
        %v753 = vmul.f32 %v708, %v721
        %v754 = vmul.f32 %v713, %v721
        %v755 = vld [vmem:[%s3] sm:$0x1]
        %v757 = vlaneseq
        %v758 = vshrl.u32 %v757, 7
        %v759 = vsub.s32 0, %v758
        %v760 = vrot.slane %v755, %v759
        %v762 = vadd.f32 %v723, %v760
        %v763 = vadd.f32 %v724, %v760
        %v764 = vadd.f32 %v725, %v760
        %v765 = vadd.f32 %v726, %v760
        %v766 = vadd.f32 %v727, %v760
        %v767 = vadd.f32 %v728, %v760
        %v768 = vadd.f32 %v729, %v760
        %v769 = vadd.f32 %v730, %v760
        %v770 = vadd.f32 %v731, %v760
        %v771 = vadd.f32 %v732, %v760
        %v772 = vadd.f32 %v733, %v760
        %v773 = vadd.f32 %v734, %v760
        %v774 = vadd.f32 %v735, %v760
        %v775 = vadd.f32 %v736, %v760
        %v776 = vadd.f32 %v737, %v760
        %v777 = vadd.f32 %v738, %v760
        %v778 = vadd.f32 %v739, %v760
        %v779 = vadd.f32 %v740, %v760
        %v780 = vadd.f32 %v741, %v760
        %v781 = vadd.f32 %v742, %v760
        %v782 = vadd.f32 %v743, %v760
        %v783 = vadd.f32 %v744, %v760
        %v784 = vadd.f32 %v745, %v760
        %v785 = vadd.f32 %v746, %v760
        %v786 = vadd.f32 %v747, %v760
        %v787 = vadd.f32 %v748, %v760
        %v788 = vadd.f32 %v749, %v760
        %v789 = vadd.f32 %v750, %v760
        %v790 = vadd.f32 %v751, %v760
        %v791 = vadd.f32 %v752, %v760
        %v792 = vadd.f32 %v753, %v760
        %v793 = vadd.f32 %v754, %v760
        %v794 = vmax.f32 %v762, 0.0
        %v795 = vmax.f32 %v763, 0.0
        %v796 = vmax.f32 %v764, 0.0
        %v797 = vmax.f32 %v765, 0.0
        %v798 = vmax.f32 %v766, 0.0
        %v799 = vmax.f32 %v767, 0.0
        %v800 = vmax.f32 %v768, 0.0
        %v801 = vmax.f32 %v769, 0.0
        %v802 = vmax.f32 %v770, 0.0
        %v803 = vmax.f32 %v771, 0.0
        %v804 = vmax.f32 %v772, 0.0
        %v805 = vmax.f32 %v773, 0.0
        %v806 = vmax.f32 %v774, 0.0
        %v807 = vmax.f32 %v775, 0.0
        %v808 = vmax.f32 %v776, 0.0
        %v809 = vmax.f32 %v777, 0.0
        %v810 = vmax.f32 %v778, 0.0
        %v811 = vmax.f32 %v779, 0.0
        %v812 = vmax.f32 %v780, 0.0
        %v813 = vmax.f32 %v781, 0.0
        %v814 = vmax.f32 %v782, 0.0
        %v815 = vmax.f32 %v783, 0.0
        %v816 = vmax.f32 %v784, 0.0
        %v817 = vmax.f32 %v785, 0.0
        %v818 = vmax.f32 %v786, 0.0
        %v819 = vmax.f32 %v787, 0.0
        %v820 = vmax.f32 %v788, 0.0
        %v821 = vmax.f32 %v789, 0.0
        %v822 = vmax.f32 %v790, 0.0
        %v823 = vmax.f32 %v791, 0.0
        %v824 = vmax.f32 %v792, 0.0
        %v825 = vmax.f32 %v793, 0.0
        %826 = vst [vmem:[#allocation2] sm:$0xff] 0.0
        %827 = vst [vmem:[#allocation2 + $0x8] sm:$0xff] 0.0
        %828 = vst [vmem:[#allocation2 + $0x10] sm:$0xff] 0.0
        %829 = vst [vmem:[#allocation2 + $0x18] sm:$0xff] 0.0
        %vm830 = vcmask 523264
        %831 = vst.msk [vmem:[#allocation2 + $0x20] sm:$0xff] %vm830, 0.0
        %832 = vst [vmem:[#allocation2 + $0x28] sm:$0xff] 0.0
        %833 = vst [vmem:[#allocation2 + $0x30] sm:$0xff] 0.0
        %834 = vst [vmem:[#allocation2 + $0x38] sm:$0xff] 0.0
        %835 = vst [vmem:[#allocation2 + $0x40] sm:$0xff] 0.0
        %836 = vst.msk [vmem:[#allocation2 + $0x48] sm:$0xff] %vm830, 0.0
        %837 = vst [vmem:[#allocation2 + $0x50] sm:$0x3] 0.0
        %838 = vst [vmem:[#allocation2 + $0x58] sm:$0x3] 0.0
        %839 = vst [vmem:[#allocation2 + $0x60] sm:$0x3] 0.0
        %840 = vst [vmem:[#allocation2 + $0x68] sm:$0x3] 0.0
        %vm841 = vcmask 517120
        %842 = vst.msk [vmem:[#allocation2 + $0x70] sm:$0x3] %vm841, 0.0
        %v859 = vrot.slane %v794, 7
        %v860 = vrot.slane %v796, 6
        %vm861 = vcmask 1042434
        %v862 = vsel %vm861, %v860, %v859
        %v863 = vrot.slane %v798, 5
        %vm864 = vcmask 1043459
        %v865 = vsel %vm864, %v863, %v862
        %v866 = vrot.slane %v800, 4
        %vm867 = vcmask 1044484
        %v868 = vsel %vm867, %v866, %v865
        %v869 = vrot.slane %v802, 3
        %vm870 = vcmask 1045509
        %v871 = vsel %vm870, %v869, %v868
        %v872 = vrot.slane %v804, 2
        %vm873 = vcmask 1046534
        %v874 = vsel %vm873, %v872, %v871
        %v875 = vrot.slane %v806, 1
        %vm876 = vcmask 1047559
        %v877 = vsel %vm876, %v875, %v874
        %v878 = vrot.slane %v810, 7
        %vm879 = vcmask 1041409
        %v880 = vsel %vm879, %v878, %v808
        %v881 = vrot.slane %v812, 6
        %v882 = vsel %vm861, %v881, %v880
        %v883 = vrot.slane %v814, 5
        %v884 = vsel %vm864, %v883, %v882
        %v885 = vrot.slane %v816, 4
        %v886 = vsel %vm867, %v885, %v884
        %v887 = vrot.slane %v818, 3
        %v888 = vsel %vm870, %v887, %v886
        %v889 = vrot.slane %v820, 2
        %v890 = vsel %vm873, %v889, %v888
        %v891 = vrot.slane %v822, 1
        %v892 = vsel %vm876, %v891, %v890
        %893 = vrot.lane.b32.xlu0 %v877, 32
        %v894 = vpop.permute.xlu0 %893
        %895 = vrot.lane.b32.xlu0 %v892, 32
        %v896 = vpop.permute.xlu0 %895
        %897 = vrot.lane.b32.xlu0 %v824, 32
        %v898 = vpop.permute.xlu0 %897
        %vm902 = vcmask 523521
        %903 = vst.msk [vmem:[#allocation2] sm:$0xfe] %vm902, %v894
        %vm904 = vcmask 523520
        %905 = vst.msk [vmem:[#allocation2 + $0x28] sm:$0xff] %vm904, %v896
        %vm906 = vcmask 516352
        %907 = vst.msk [vmem:[#allocation2 + $0x50] sm:$0x1] %vm906, %v898
        %v908 = vrot.slane %v796, 7
        %v909 = vsel %vm861, %v908, %v794
        %v910 = vrot.slane %v798, 6
        %v911 = vsel %vm864, %v910, %v909
        %v912 = vrot.slane %v800, 5
        %v913 = vsel %vm867, %v912, %v911
        %v914 = vrot.slane %v802, 4
        %v915 = vsel %vm870, %v914, %v913
        %v916 = vrot.slane %v804, 3
        %v917 = vsel %vm873, %v916, %v915
        %v918 = vrot.slane %v806, 2
        %v919 = vsel %vm876, %v918, %v917
        %v920 = vrot.slane %v808, 1
        %v921 = vsel %vm879, %v810, %v920
        %v922 = vrot.slane %v812, 7
        %v923 = vsel %vm861, %v922, %v921
        %v924 = vrot.slane %v814, 6
        %v925 = vsel %vm864, %v924, %v923
        %v926 = vrot.slane %v816, 5
        %v927 = vsel %vm867, %v926, %v925
        %v928 = vrot.slane %v818, 4
        %v929 = vsel %vm870, %v928, %v927
        %v930 = vrot.slane %v820, 3
        %v931 = vsel %vm873, %v930, %v929
        %v932 = vrot.slane %v822, 2
        %v933 = vsel %vm876, %v932, %v931
        %v934 = vrot.slane %v824, 1
        %935 = vrot.lane.b32.xlu0 %v919, 64
        %v936 = vpop.permute.xlu0 %935
        %937 = vrot.lane.b32.xlu0 %v933, 64
        %v938 = vpop.permute.xlu0 %937
        %939 = vrot.lane.b32.xlu0 %v934, 64
        %v940 = vpop.permute.xlu0 %939
        %vm944 = vcmask 785921
        %945 = vst.msk [vmem:[#allocation2] sm:$0xfe] %vm944, %v936
        %vm946 = vcmask 785920
        %947 = vst.msk [vmem:[#allocation2 + $0x28] sm:$0xff] %vm946, %v938
        %vm948 = vcmask 778752
        %949 = vst.msk [vmem:[#allocation2 + $0x50] sm:$0x1] %vm948, %v940
        %v950 = vrot.slane %v794, 1
        %v951 = vsel %vm861, %v796, %v950
        %v952 = vrot.slane %v798, 7
        %v953 = vsel %vm864, %v952, %v951
        %v954 = vrot.slane %v800, 6
        %v955 = vsel %vm867, %v954, %v953
        %v956 = vrot.slane %v802, 5
        %v957 = vsel %vm870, %v956, %v955
        %v958 = vrot.slane %v804, 4
        %v959 = vsel %vm873, %v958, %v957
        %v960 = vrot.slane %v806, 3
        %v961 = vsel %vm876, %v960, %v959
        %v962 = vrot.slane %v808, 2
        %v963 = vrot.slane %v810, 1
        %v964 = vsel %vm879, %v963, %v962
        %v965 = vsel %vm861, %v812, %v964
        %v966 = vrot.slane %v814, 7
        %v967 = vsel %vm864, %v966, %v965
        %v968 = vrot.slane %v816, 6
        %v969 = vsel %vm867, %v968, %v967
        %v970 = vrot.slane %v818, 5
        %v971 = vsel %vm870, %v970, %v969
        %v972 = vrot.slane %v820, 4
        %v973 = vsel %vm873, %v972, %v971
        %v974 = vrot.slane %v822, 3
        %v975 = vsel %vm876, %v974, %v973
        %v976 = vrot.slane %v824, 2
        %977 = vrot.lane.b32.xlu0 %v961, 96
        %v978 = vpop.permute.xlu0 %977
        %979 = vrot.lane.b32.xlu0 %v975, 96
        %v980 = vpop.permute.xlu0 %979
        %981 = vrot.lane.b32.xlu0 %v976, 96
        %v982 = vpop.permute.xlu0 %981
        %vm986 = vcmask 1048321
        %987 = vst.msk [vmem:[#allocation2] sm:$0xfe] %vm986, %v978
        %vm988 = vcmask 1048320
        %989 = vst.msk [vmem:[#allocation2 + $0x28] sm:$0xff] %vm988, %v980
        %vm990 = vcmask 1041152
        %991 = vst.msk [vmem:[#allocation2 + $0x50] sm:$0x1] %vm990, %v982
        %v992 = vrot.slane %v794, 2
        %v993 = vrot.slane %v796, 1
        %v994 = vsel %vm861, %v993, %v992
        %v995 = vsel %vm864, %v798, %v994
        %v996 = vrot.slane %v800, 7
        %v997 = vsel %vm867, %v996, %v995
        %v998 = vrot.slane %v802, 6
        %v999 = vsel %vm870, %v998, %v997
        %v1000 = vrot.slane %v804, 5
        %v1001 = vsel %vm873, %v1000, %v999
        %v1002 = vrot.slane %v806, 4
        %v1003 = vsel %vm876, %v1002, %v1001
        %v1004 = vrot.slane %v808, 3
        %v1005 = vrot.slane %v810, 2
        %v1006 = vsel %vm879, %v1005, %v1004
        %v1007 = vrot.slane %v812, 1
        %v1008 = vsel %vm861, %v1007, %v1006
        %v1009 = vsel %vm864, %v814, %v1008
        %v1010 = vrot.slane %v816, 7
        %v1011 = vsel %vm867, %v1010, %v1009
        %v1012 = vrot.slane %v818, 6
        %v1013 = vsel %vm870, %v1012, %v1011
        %v1014 = vrot.slane %v820, 5
        %v1015 = vsel %vm873, %v1014, %v1013
        %v1016 = vrot.slane %v822, 4
        %v1017 = vsel %vm876, %v1016, %v1015
        %v1018 = vrot.slane %v824, 3
        %vm1022 = vcmask 261121
        %1023 = vst.msk [vmem:[#allocation2 + $0x8] sm:$0xfe] %vm1022, %v1003
        %1024 = vst.msk [vmem:[#allocation2 + $0x30] sm:$0xff] %vm394, %v1017
        %vm1025 = vcmask 253952
        %1026 = vst.msk [vmem:[#allocation2 + $0x58] sm:$0x1] %vm1025, %v1018
        %v1027 = vrot.slane %v794, 3
        %v1028 = vrot.slane %v796, 2
        %v1029 = vsel %vm861, %v1028, %v1027
        %v1030 = vrot.slane %v798, 1
        %v1031 = vsel %vm864, %v1030, %v1029
        %v1032 = vsel %vm867, %v800, %v1031
        %v1033 = vrot.slane %v802, 7
        %v1034 = vsel %vm870, %v1033, %v1032
        %v1035 = vrot.slane %v804, 6
        %v1036 = vsel %vm873, %v1035, %v1034
        %v1037 = vrot.slane %v806, 5
        %v1038 = vsel %vm876, %v1037, %v1036
        %v1039 = vrot.slane %v808, 4
        %v1040 = vrot.slane %v810, 3
        %v1041 = vsel %vm879, %v1040, %v1039
        %v1042 = vrot.slane %v812, 2
        %v1043 = vsel %vm861, %v1042, %v1041
        %v1044 = vrot.slane %v814, 1
        %v1045 = vsel %vm864, %v1044, %v1043
        %v1046 = vsel %vm867, %v816, %v1045
        %v1047 = vrot.slane %v818, 7
        %v1048 = vsel %vm870, %v1047, %v1046
        %v1049 = vrot.slane %v820, 6
        %v1050 = vsel %vm873, %v1049, %v1048
        %v1051 = vrot.slane %v822, 5
        %v1052 = vsel %vm876, %v1051, %v1050
        %v1053 = vrot.slane %v824, 4
        %1054 = vrot.lane.b32.xlu0 %v1038, 32
        %v1055 = vpop.permute.xlu0 %1054
        %1056 = vrot.lane.b32.xlu0 %v1052, 32
        %v1057 = vpop.permute.xlu0 %1056
        %1058 = vrot.lane.b32.xlu0 %v1053, 32
        %v1059 = vpop.permute.xlu0 %1058
        %1063 = vst.msk [vmem:[#allocation2 + $0x8] sm:$0xfe] %vm902, %v1055
        %1064 = vst.msk [vmem:[#allocation2 + $0x30] sm:$0xff] %vm904, %v1057
        %1065 = vst.msk [vmem:[#allocation2 + $0x58] sm:$0x1] %vm906, %v1059
        %v1066 = vrot.slane %v794, 4
        %v1067 = vrot.slane %v796, 3
        %v1068 = vsel %vm861, %v1067, %v1066
        %v1069 = vrot.slane %v798, 2
        %v1070 = vsel %vm864, %v1069, %v1068
        %v1071 = vrot.slane %v800, 1
        %v1072 = vsel %vm867, %v1071, %v1070
        %v1073 = vsel %vm870, %v802, %v1072
        %v1074 = vrot.slane %v804, 7
        %v1075 = vsel %vm873, %v1074, %v1073
        %v1076 = vrot.slane %v806, 6
        %v1077 = vsel %vm876, %v1076, %v1075
        %v1078 = vrot.slane %v808, 5
        %v1079 = vrot.slane %v810, 4
        %v1080 = vsel %vm879, %v1079, %v1078
        %v1081 = vrot.slane %v812, 3
        %v1082 = vsel %vm861, %v1081, %v1080
        %v1083 = vrot.slane %v814, 2
        %v1084 = vsel %vm864, %v1083, %v1082
        %v1085 = vrot.slane %v816, 1
        %v1086 = vsel %vm867, %v1085, %v1084
        %v1087 = vsel %vm870, %v818, %v1086
        %v1088 = vrot.slane %v820, 7
        %v1089 = vsel %vm873, %v1088, %v1087
        %v1090 = vrot.slane %v822, 6
        %v1091 = vsel %vm876, %v1090, %v1089
        %v1092 = vrot.slane %v824, 5
        %1093 = vrot.lane.b32.xlu0 %v1077, 64
        %v1094 = vpop.permute.xlu0 %1093
        %1095 = vrot.lane.b32.xlu0 %v1091, 64
        %v1096 = vpop.permute.xlu0 %1095
        %1097 = vrot.lane.b32.xlu0 %v1092, 64
        %v1098 = vpop.permute.xlu0 %1097
        %1102 = vst.msk [vmem:[#allocation2 + $0x8] sm:$0xfe] %vm944, %v1094
        %1103 = vst.msk [vmem:[#allocation2 + $0x30] sm:$0xff] %vm946, %v1096
        %1104 = vst.msk [vmem:[#allocation2 + $0x58] sm:$0x1] %vm948, %v1098
        %v1105 = vrot.slane %v794, 5
        %v1106 = vrot.slane %v796, 4
        %v1107 = vsel %vm861, %v1106, %v1105
        %v1108 = vrot.slane %v798, 3
        %v1109 = vsel %vm864, %v1108, %v1107
        %v1110 = vrot.slane %v800, 2
        %v1111 = vsel %vm867, %v1110, %v1109
        %v1112 = vrot.slane %v802, 1
        %v1113 = vsel %vm870, %v1112, %v1111
        %v1114 = vsel %vm873, %v804, %v1113
        %v1115 = vrot.slane %v806, 7
        %v1116 = vsel %vm876, %v1115, %v1114
        %v1117 = vrot.slane %v808, 6
        %v1118 = vrot.slane %v810, 5
        %v1119 = vsel %vm879, %v1118, %v1117
        %v1120 = vrot.slane %v812, 4
        %v1121 = vsel %vm861, %v1120, %v1119
        %v1122 = vrot.slane %v814, 3
        %v1123 = vsel %vm864, %v1122, %v1121
        %v1124 = vrot.slane %v816, 2
        %v1125 = vsel %vm867, %v1124, %v1123
        %v1126 = vrot.slane %v818, 1
        %v1127 = vsel %vm870, %v1126, %v1125
        %v1128 = vsel %vm873, %v820, %v1127
        %v1129 = vrot.slane %v822, 7
        %v1130 = vsel %vm876, %v1129, %v1128
        %v1131 = vrot.slane %v824, 6
        %1132 = vrot.lane.b32.xlu0 %v1116, 96
        %v1133 = vpop.permute.xlu0 %1132
        %1134 = vrot.lane.b32.xlu0 %v1130, 96
        %v1135 = vpop.permute.xlu0 %1134
        %1136 = vrot.lane.b32.xlu0 %v1131, 96
        %v1137 = vpop.permute.xlu0 %1136
        %1141 = vst.msk [vmem:[#allocation2 + $0x8] sm:$0xfe] %vm986, %v1133
        %1142 = vst.msk [vmem:[#allocation2 + $0x30] sm:$0xff] %vm988, %v1135
        %1143 = vst.msk [vmem:[#allocation2 + $0x58] sm:$0x1] %vm990, %v1137
        %v1144 = vrot.slane %v794, 6
        %v1145 = vrot.slane %v796, 5
        %v1146 = vsel %vm861, %v1145, %v1144
        %v1147 = vrot.slane %v798, 4
        %v1148 = vsel %vm864, %v1147, %v1146
        %v1149 = vrot.slane %v800, 3
        %v1150 = vsel %vm867, %v1149, %v1148
        %v1151 = vrot.slane %v802, 2
        %v1152 = vsel %vm870, %v1151, %v1150
        %v1153 = vrot.slane %v804, 1
        %v1154 = vsel %vm873, %v1153, %v1152
        %v1155 = vsel %vm876, %v806, %v1154
        %v1156 = vrot.slane %v808, 7
        %v1157 = vrot.slane %v810, 6
        %v1158 = vsel %vm879, %v1157, %v1156
        %v1159 = vrot.slane %v812, 5
        %v1160 = vsel %vm861, %v1159, %v1158
        %v1161 = vrot.slane %v814, 4
        %v1162 = vsel %vm864, %v1161, %v1160
        %v1163 = vrot.slane %v816, 3
        %v1164 = vsel %vm867, %v1163, %v1162
        %v1165 = vrot.slane %v818, 2
        %v1166 = vsel %vm870, %v1165, %v1164
        %v1167 = vrot.slane %v820, 1
        %v1168 = vsel %vm873, %v1167, %v1166
        %v1169 = vsel %vm876, %v822, %v1168
        %v1170 = vrot.slane %v824, 7
        %1174 = vst.msk [vmem:[#allocation2 + $0x10] sm:$0xfe] %vm1022, %v1155
        %1175 = vst.msk [vmem:[#allocation2 + $0x38] sm:$0xff] %vm394, %v1169
        %1176 = vst.msk [vmem:[#allocation2 + $0x60] sm:$0x1] %vm1025, %v1170
        %v1193 = vrot.slane %v795, 7
        %v1194 = vrot.slane %v797, 6
        %v1195 = vsel %vm861, %v1194, %v1193
        %v1196 = vrot.slane %v799, 5
        %v1197 = vsel %vm864, %v1196, %v1195
        %v1198 = vrot.slane %v801, 4
        %v1199 = vsel %vm867, %v1198, %v1197
        %v1200 = vrot.slane %v803, 3
        %v1201 = vsel %vm870, %v1200, %v1199
        %v1202 = vrot.slane %v805, 2
        %v1203 = vsel %vm873, %v1202, %v1201
        %v1204 = vrot.slane %v807, 1
        %v1205 = vsel %vm876, %v1204, %v1203
        %v1206 = vrot.slane %v811, 7
        %v1207 = vsel %vm879, %v1206, %v809
        %v1208 = vrot.slane %v813, 6
        %v1209 = vsel %vm861, %v1208, %v1207
        %v1210 = vrot.slane %v815, 5
        %v1211 = vsel %vm864, %v1210, %v1209
        %v1212 = vrot.slane %v817, 4
        %v1213 = vsel %vm867, %v1212, %v1211
        %v1214 = vrot.slane %v819, 3
        %v1215 = vsel %vm870, %v1214, %v1213
        %v1216 = vrot.slane %v821, 2
        %v1217 = vsel %vm873, %v1216, %v1215
        %v1218 = vrot.slane %v823, 1
        %v1219 = vsel %vm876, %v1218, %v1217
        %1220 = vrot.lane.b32.xlu0 %v1205, 32
        %v1221 = vpop.permute.xlu0 %1220
        %1222 = vrot.lane.b32.xlu0 %v1219, 32
        %v1223 = vpop.permute.xlu0 %1222
        %1224 = vrot.lane.b32.xlu0 %v825, 32
        %v1225 = vpop.permute.xlu0 %1224
        %1229 = vst.msk [vmem:[#allocation2 + $0x10] sm:$0xfe] %vm902, %v1221
        %1230 = vst.msk [vmem:[#allocation2 + $0x38] sm:$0xff] %vm904, %v1223
        %1231 = vst.msk [vmem:[#allocation2 + $0x60] sm:$0x1] %vm906, %v1225
        %v1232 = vrot.slane %v797, 7
        %v1233 = vsel %vm861, %v1232, %v795
        %v1234 = vrot.slane %v799, 6
        %v1235 = vsel %vm864, %v1234, %v1233
        %v1236 = vrot.slane %v801, 5
        %v1237 = vsel %vm867, %v1236, %v1235
        %v1238 = vrot.slane %v803, 4
        %v1239 = vsel %vm870, %v1238, %v1237
        %v1240 = vrot.slane %v805, 3
        %v1241 = vsel %vm873, %v1240, %v1239
        %v1242 = vrot.slane %v807, 2
        %v1243 = vsel %vm876, %v1242, %v1241
        %v1244 = vrot.slane %v809, 1
        %v1245 = vsel %vm879, %v811, %v1244
        %v1246 = vrot.slane %v813, 7
        %v1247 = vsel %vm861, %v1246, %v1245
        %v1248 = vrot.slane %v815, 6
        %v1249 = vsel %vm864, %v1248, %v1247
        %v1250 = vrot.slane %v817, 5
        %v1251 = vsel %vm867, %v1250, %v1249
        %v1252 = vrot.slane %v819, 4
        %v1253 = vsel %vm870, %v1252, %v1251
        %v1254 = vrot.slane %v821, 3
        %v1255 = vsel %vm873, %v1254, %v1253
        %v1256 = vrot.slane %v823, 2
        %v1257 = vsel %vm876, %v1256, %v1255
        %v1258 = vrot.slane %v825, 1
        %1259 = vrot.lane.b32.xlu0 %v1243, 64
        %v1260 = vpop.permute.xlu0 %1259
        %1261 = vrot.lane.b32.xlu0 %v1257, 64
        %v1262 = vpop.permute.xlu0 %1261
        %1263 = vrot.lane.b32.xlu0 %v1258, 64
        %v1264 = vpop.permute.xlu0 %1263
        %1268 = vst.msk [vmem:[#allocation2 + $0x10] sm:$0xfe] %vm944, %v1260
        %1269 = vst.msk [vmem:[#allocation2 + $0x38] sm:$0xff] %vm946, %v1262
        %1270 = vst.msk [vmem:[#allocation2 + $0x60] sm:$0x1] %vm948, %v1264
        %v1271 = vrot.slane %v795, 1
        %v1272 = vsel %vm861, %v797, %v1271
        %v1273 = vrot.slane %v799, 7
        %v1274 = vsel %vm864, %v1273, %v1272
        %v1275 = vrot.slane %v801, 6
        %v1276 = vsel %vm867, %v1275, %v1274
        %v1277 = vrot.slane %v803, 5
        %v1278 = vsel %vm870, %v1277, %v1276
        %v1279 = vrot.slane %v805, 4
        %v1280 = vsel %vm873, %v1279, %v1278
        %v1281 = vrot.slane %v807, 3
        %v1282 = vsel %vm876, %v1281, %v1280
        %v1283 = vrot.slane %v809, 2
        %v1284 = vrot.slane %v811, 1
        %v1285 = vsel %vm879, %v1284, %v1283
        %v1286 = vsel %vm861, %v813, %v1285
        %v1287 = vrot.slane %v815, 7
        %v1288 = vsel %vm864, %v1287, %v1286
        %v1289 = vrot.slane %v817, 6
        %v1290 = vsel %vm867, %v1289, %v1288
        %v1291 = vrot.slane %v819, 5
        %v1292 = vsel %vm870, %v1291, %v1290
        %v1293 = vrot.slane %v821, 4
        %v1294 = vsel %vm873, %v1293, %v1292
        %v1295 = vrot.slane %v823, 3
        %v1296 = vsel %vm876, %v1295, %v1294
        %v1297 = vrot.slane %v825, 2
        %1298 = vrot.lane.b32.xlu0 %v1282, 96
        %v1299 = vpop.permute.xlu0 %1298
        %1300 = vrot.lane.b32.xlu0 %v1296, 96
        %v1301 = vpop.permute.xlu0 %1300
        %1302 = vrot.lane.b32.xlu0 %v1297, 96
        %v1303 = vpop.permute.xlu0 %1302
        %1307 = vst.msk [vmem:[#allocation2 + $0x10] sm:$0xfe] %vm986, %v1299
        %1308 = vst.msk [vmem:[#allocation2 + $0x38] sm:$0xff] %vm988, %v1301
        %1309 = vst.msk [vmem:[#allocation2 + $0x60] sm:$0x1] %vm990, %v1303
        %v1310 = vrot.slane %v795, 2
        %v1311 = vrot.slane %v797, 1
        %v1312 = vsel %vm861, %v1311, %v1310
        %v1313 = vsel %vm864, %v799, %v1312
        %v1314 = vrot.slane %v801, 7
        %v1315 = vsel %vm867, %v1314, %v1313
        %v1316 = vrot.slane %v803, 6
        %v1317 = vsel %vm870, %v1316, %v1315
        %v1318 = vrot.slane %v805, 5
        %v1319 = vsel %vm873, %v1318, %v1317
        %v1320 = vrot.slane %v807, 4
        %v1321 = vsel %vm876, %v1320, %v1319
        %v1322 = vrot.slane %v809, 3
        %v1323 = vrot.slane %v811, 2
        %v1324 = vsel %vm879, %v1323, %v1322
        %v1325 = vrot.slane %v813, 1
        %v1326 = vsel %vm861, %v1325, %v1324
        %v1327 = vsel %vm864, %v815, %v1326
        %v1328 = vrot.slane %v817, 7
        %v1329 = vsel %vm867, %v1328, %v1327
        %v1330 = vrot.slane %v819, 6
        %v1331 = vsel %vm870, %v1330, %v1329
        %v1332 = vrot.slane %v821, 5
        %v1333 = vsel %vm873, %v1332, %v1331
        %v1334 = vrot.slane %v823, 4
        %v1335 = vsel %vm876, %v1334, %v1333
        %v1336 = vrot.slane %v825, 3
        %1340 = vst.msk [vmem:[#allocation2 + $0x18] sm:$0xfe] %vm1022, %v1321
        %1341 = vst.msk [vmem:[#allocation2 + $0x40] sm:$0xff] %vm394, %v1335
        %1342 = vst.msk [vmem:[#allocation2 + $0x68] sm:$0x1] %vm1025, %v1336
        %v1343 = vrot.slane %v795, 3
        %v1344 = vrot.slane %v797, 2
        %v1345 = vsel %vm861, %v1344, %v1343
        %v1346 = vrot.slane %v799, 1
        %v1347 = vsel %vm864, %v1346, %v1345
        %v1348 = vsel %vm867, %v801, %v1347
        %v1349 = vrot.slane %v803, 7
        %v1350 = vsel %vm870, %v1349, %v1348
        %v1351 = vrot.slane %v805, 6
        %v1352 = vsel %vm873, %v1351, %v1350
        %v1353 = vrot.slane %v807, 5
        %v1354 = vsel %vm876, %v1353, %v1352
        %v1355 = vrot.slane %v809, 4
        %v1356 = vrot.slane %v811, 3
        %v1357 = vsel %vm879, %v1356, %v1355
        %v1358 = vrot.slane %v813, 2
        %v1359 = vsel %vm861, %v1358, %v1357
        %v1360 = vrot.slane %v815, 1
        %v1361 = vsel %vm864, %v1360, %v1359
        %v1362 = vsel %vm867, %v817, %v1361
        %v1363 = vrot.slane %v819, 7
        %v1364 = vsel %vm870, %v1363, %v1362
        %v1365 = vrot.slane %v821, 6
        %v1366 = vsel %vm873, %v1365, %v1364
        %v1367 = vrot.slane %v823, 5
        %v1368 = vsel %vm876, %v1367, %v1366
        %v1369 = vrot.slane %v825, 4
        %1370 = vrot.lane.b32.xlu0 %v1354, 32
        %v1371 = vpop.permute.xlu0 %1370
        %1372 = vrot.lane.b32.xlu0 %v1368, 32
        %v1373 = vpop.permute.xlu0 %1372
        %1374 = vrot.lane.b32.xlu0 %v1369, 32
        %v1375 = vpop.permute.xlu0 %1374
        %1379 = vst.msk [vmem:[#allocation2 + $0x18] sm:$0xfe] %vm902, %v1371
        %1380 = vst.msk [vmem:[#allocation2 + $0x40] sm:$0xff] %vm904, %v1373
        %1381 = vst.msk [vmem:[#allocation2 + $0x68] sm:$0x1] %vm906, %v1375
        %v1382 = vrot.slane %v795, 4
        %v1383 = vrot.slane %v797, 3
        %v1384 = vsel %vm861, %v1383, %v1382
        %v1385 = vrot.slane %v799, 2
        %v1386 = vsel %vm864, %v1385, %v1384
        %v1387 = vrot.slane %v801, 1
        %v1388 = vsel %vm867, %v1387, %v1386
        %v1389 = vsel %vm870, %v803, %v1388
        %v1390 = vrot.slane %v805, 7
        %v1391 = vsel %vm873, %v1390, %v1389
        %v1392 = vrot.slane %v807, 6
        %v1393 = vsel %vm876, %v1392, %v1391
        %v1394 = vrot.slane %v809, 5
        %v1395 = vrot.slane %v811, 4
        %v1396 = vsel %vm879, %v1395, %v1394
        %v1397 = vrot.slane %v813, 3
        %v1398 = vsel %vm861, %v1397, %v1396
        %v1399 = vrot.slane %v815, 2
        %v1400 = vsel %vm864, %v1399, %v1398
        %v1401 = vrot.slane %v817, 1
        %v1402 = vsel %vm867, %v1401, %v1400
        %v1403 = vsel %vm870, %v819, %v1402
        %v1404 = vrot.slane %v821, 7
        %v1405 = vsel %vm873, %v1404, %v1403
        %v1406 = vrot.slane %v823, 6
        %v1407 = vsel %vm876, %v1406, %v1405
        %v1408 = vrot.slane %v825, 5
        %1409 = vrot.lane.b32.xlu0 %v1393, 64
        %v1410 = vpop.permute.xlu0 %1409
        %1411 = vrot.lane.b32.xlu0 %v1407, 64
        %v1412 = vpop.permute.xlu0 %1411
        %1413 = vrot.lane.b32.xlu0 %v1408, 64
        %v1414 = vpop.permute.xlu0 %1413
        %1418 = vst.msk [vmem:[#allocation2 + $0x18] sm:$0xfe] %vm944, %v1410
        %1419 = vst.msk [vmem:[#allocation2 + $0x40] sm:$0xff] %vm946, %v1412
        %1420 = vst.msk [vmem:[#allocation2 + $0x68] sm:$0x1] %vm948, %v1414
        %v1421 = vrot.slane %v795, 5
        %v1422 = vrot.slane %v797, 4
        %v1423 = vsel %vm861, %v1422, %v1421
        %v1424 = vrot.slane %v799, 3
        %v1425 = vsel %vm864, %v1424, %v1423
        %v1426 = vrot.slane %v801, 2
        %v1427 = vsel %vm867, %v1426, %v1425
        %v1428 = vrot.slane %v803, 1
        %v1429 = vsel %vm870, %v1428, %v1427
        %v1430 = vsel %vm873, %v805, %v1429
        %v1431 = vrot.slane %v807, 7
        %v1432 = vsel %vm876, %v1431, %v1430
        %v1433 = vrot.slane %v809, 6
        %v1434 = vrot.slane %v811, 5
        %v1435 = vsel %vm879, %v1434, %v1433
        %v1436 = vrot.slane %v813, 4
        %v1437 = vsel %vm861, %v1436, %v1435
        %v1438 = vrot.slane %v815, 3
        %v1439 = vsel %vm864, %v1438, %v1437
        %v1440 = vrot.slane %v817, 2
        %v1441 = vsel %vm867, %v1440, %v1439
        %v1442 = vrot.slane %v819, 1
        %v1443 = vsel %vm870, %v1442, %v1441
        %v1444 = vsel %vm873, %v821, %v1443
        %v1445 = vrot.slane %v823, 7
        %v1446 = vsel %vm876, %v1445, %v1444
        %v1447 = vrot.slane %v825, 6
        %1448 = vrot.lane.b32.xlu0 %v1432, 96
        %v1449 = vpop.permute.xlu0 %1448
        %1450 = vrot.lane.b32.xlu0 %v1446, 96
        %v1451 = vpop.permute.xlu0 %1450
        %1452 = vrot.lane.b32.xlu0 %v1447, 96
        %v1453 = vpop.permute.xlu0 %1452
        %1457 = vst.msk [vmem:[#allocation2 + $0x18] sm:$0xfe] %vm986, %v1449
        %1458 = vst.msk [vmem:[#allocation2 + $0x40] sm:$0xff] %vm988, %v1451
        %1459 = vst.msk [vmem:[#allocation2 + $0x68] sm:$0x1] %vm990, %v1453
        %v1460 = vrot.slane %v795, 6
        %v1461 = vrot.slane %v797, 5
        %v1462 = vsel %vm861, %v1461, %v1460
        %v1463 = vrot.slane %v799, 4
        %v1464 = vsel %vm864, %v1463, %v1462
        %v1465 = vrot.slane %v801, 3
        %v1466 = vsel %vm867, %v1465, %v1464
        %v1467 = vrot.slane %v803, 2
        %v1468 = vsel %vm870, %v1467, %v1466
        %v1469 = vrot.slane %v805, 1
        %v1470 = vsel %vm873, %v1469, %v1468
        %v1471 = vsel %vm876, %v807, %v1470
        %v1472 = vrot.slane %v809, 7
        %v1473 = vrot.slane %v811, 6
        %v1474 = vsel %vm879, %v1473, %v1472
        %v1475 = vrot.slane %v813, 5
        %v1476 = vsel %vm861, %v1475, %v1474
        %v1477 = vrot.slane %v815, 4
        %v1478 = vsel %vm864, %v1477, %v1476
        %v1479 = vrot.slane %v817, 3
        %v1480 = vsel %vm867, %v1479, %v1478
        %v1481 = vrot.slane %v819, 2
        %v1482 = vsel %vm870, %v1481, %v1480
        %v1483 = vrot.slane %v821, 1
        %v1484 = vsel %vm873, %v1483, %v1482
        %v1485 = vsel %vm876, %v823, %v1484
        %v1486 = vrot.slane %v825, 7
        %1490 = vst.msk [vmem:[#allocation2 + $0x20] sm:$0xfe] %vm1022, %v1471
        %1491 = vst.msk [vmem:[#allocation2 + $0x48] sm:$0xff] %vm394, %v1485
        %1492 = vst.msk [vmem:[#allocation2 + $0x70] sm:$0x1] %vm1025, %v1486
        %v1493 = vld [vmem:[#allocation2] sm:$0xff]
        %v1494 = vld [vmem:[#allocation2 + $0x8] sm:$0xff]
        %v1495 = vld [vmem:[#allocation2 + $0x10] sm:$0xff]
        %v1496 = vld [vmem:[#allocation2 + $0x18] sm:$0xff]
        %v1497 = vld [vmem:[#allocation2 + $0x20] sm:$0xff]
        %v1498 = vld [vmem:[#allocation2 + $0x28] sm:$0xff]
        %v1499 = vld [vmem:[#allocation2 + $0x30] sm:$0xff]
        %v1500 = vld [vmem:[#allocation2 + $0x38] sm:$0xff]
        %v1501 = vld [vmem:[#allocation2 + $0x40] sm:$0xff]
        %v1502 = vld [vmem:[#allocation2 + $0x48] sm:$0xff]
        %v1503 = vld [vmem:[#allocation2 + $0x50] sm:$0x3]
        %v1504 = vld [vmem:[#allocation2 + $0x58] sm:$0x3]
        %v1505 = vld [vmem:[#allocation2 + $0x60] sm:$0x3]
        %v1506 = vld [vmem:[#allocation2 + $0x68] sm:$0x3]
        %v1507 = vld [vmem:[#allocation2 + $0x70] sm:$0x3]
        %v1508 = vld [vmem:[%s4] sm:$0x77]
        %v1509 = vld [vmem:[%s4 + $0x8] sm:$0x77]
        %v1510 = vld [vmem:[%s4 + $0x10] sm:$0x77]
        %v1511 = vld [vmem:[%s4 + $0x18] sm:$0x77]
        %v1512 = vld [vmem:[%s4 + $0x20] sm:$0x77]
        %v1513 = vld [vmem:[%s4 + $0x28] sm:$0x77]
        %v1516 = vlaneseq
        %v1517 = vshrl.u32 %v1516, 7
        %v1518 = vsub.s32 0, %v1517
        %v1519 = vrot.slane %v1508, %v1518
        %v1520 = vlaneseq
        %v1521 = vshrl.u32 %v1520, 7
        %v1522 = vsub.s32 4, %v1521
        %v1523 = vrot.slane %v1508, %v1522
        %v1524 = vlaneseq
        %v1525 = vshrl.u32 %v1524, 7
        %v1526 = vsub.s32 0, %v1525
        %v1527 = vrot.slane %v1509, %v1526
        %v1528 = vlaneseq
        %v1529 = vshrl.u32 %v1528, 7
        %v1530 = vsub.s32 4, %v1529
        %v1531 = vrot.slane %v1509, %v1530
        %v1536 = vlaneseq
        %v1537 = vshrl.u32 %v1536, 7
        %v1538 = vsub.s32 0, %v1537
        %v1539 = vrot.slane %v1519, %v1538
        %v1540 = vlaneseq
        %v1541 = vshrl.u32 %v1540, 7
        %v1542 = vsub.s32 0, %v1541
        %v1543 = vrot.slane %v1523, %v1542
        %v1544 = vlaneseq
        %v1545 = vshrl.u32 %v1544, 7
        %v1546 = vsub.s32 0, %v1545
        %v1547 = vrot.slane %v1527, %v1546
        %v1548 = vlaneseq
        %v1549 = vshrl.u32 %v1548, 7
        %v1550 = vsub.s32 0, %v1549
        %v1551 = vrot.slane %v1531, %v1550
        %v1552 = vmul.f32 %v1493, %v1539
        %v1553 = vmul.f32 %v1494, %v1543
        %v1554 = vmul.f32 %v1495, %v1547
        %v1555 = vmul.f32 %v1496, %v1551
        %v1556 = vmul.f32 %v1498, %v1539
        %v1557 = vmul.f32 %v1499, %v1543
        %v1558 = vmul.f32 %v1500, %v1547
        %v1559 = vmul.f32 %v1501, %v1551
        %v1560 = vadd.f32 %v1552, 0.0
        %v1561 = vadd.f32 %v1553, 0.0
        %v1562 = vadd.f32 %v1554, 0.0
        %v1563 = vadd.f32 %v1555, 0.0
        %v1564 = vadd.f32 %v1556, 0.0
        %v1565 = vadd.f32 %v1557, 0.0
        %v1566 = vadd.f32 %v1558, 0.0
        %v1567 = vadd.f32 %v1559, 0.0
        %v1568 = vlaneseq
        %v1569 = vshrl.u32 %v1568, 7
        %v1570 = vsub.s32 1, %v1569
        %v1571 = vrot.slane %v1508, %v1570
        %v1572 = vlaneseq
        %v1573 = vshrl.u32 %v1572, 7
        %v1574 = vsub.s32 5, %v1573
        %v1575 = vrot.slane %v1508, %v1574
        %v1576 = vlaneseq
        %v1577 = vshrl.u32 %v1576, 7
        %v1578 = vsub.s32 1, %v1577
        %v1579 = vrot.slane %v1509, %v1578
        %v1580 = vlaneseq
        %v1581 = vshrl.u32 %v1580, 7
        %v1582 = vsub.s32 5, %v1581
        %v1583 = vrot.slane %v1509, %v1582
        %v1588 = vlaneseq
        %v1589 = vshrl.u32 %v1588, 7
        %v1590 = vsub.s32 1, %v1589
        %v1591 = vrot.slane %v1571, %v1590
        %v1592 = vlaneseq
        %v1593 = vshrl.u32 %v1592, 7
        %v1594 = vsub.s32 1, %v1593
        %v1595 = vrot.slane %v1575, %v1594
        %v1596 = vlaneseq
        %v1597 = vshrl.u32 %v1596, 7
        %v1598 = vsub.s32 1, %v1597
        %v1599 = vrot.slane %v1579, %v1598
        %v1600 = vlaneseq
        %v1601 = vshrl.u32 %v1600, 7
        %v1602 = vsub.s32 1, %v1601
        %v1603 = vrot.slane %v1583, %v1602
        %1608 = vrot.lane.b32.xlu0 %v1591, 32
        %v1609 = vpop.permute.xlu0 %1608
        %1610 = vrot.lane.b32.xlu0 %v1595, 32
        %v1611 = vpop.permute.xlu0 %1610
        %1612 = vrot.lane.b32.xlu0 %v1599, 32
        %v1613 = vpop.permute.xlu0 %1612
        %1614 = vrot.lane.b32.xlu0 %v1603, 32
        %v1615 = vpop.permute.xlu0 %1614
        %v1616 = vsel %vm394, %v1609, %v1611
        %v1617 = vsel %vm394, %v1611, %v1613
        %v1618 = vsel %vm394, %v1613, %v1615
        %v1624 = vmul.f32 %v1493, %v1609
        %v1625 = vmul.f32 %v1494, %v1616
        %v1626 = vmul.f32 %v1495, %v1617
        %v1627 = vmul.f32 %v1496, %v1618
        %v1628 = vmul.f32 %v1497, %v1615
        %v1629 = vmul.f32 %v1498, %v1609
        %v1630 = vmul.f32 %v1499, %v1616
        %v1631 = vmul.f32 %v1500, %v1617
        %v1632 = vmul.f32 %v1501, %v1618
        %v1633 = vmul.f32 %v1502, %v1615
        %1644 = vrot.lane.b32.xlu0 %v1624, 96
        %v1645 = vpop.permute.xlu0 %1644
        %1646 = vrot.lane.b32.xlu0 %v1625, 96
        %v1647 = vpop.permute.xlu0 %1646
        %1648 = vrot.lane.b32.xlu0 %v1626, 96
        %v1649 = vpop.permute.xlu0 %1648
        %1650 = vrot.lane.b32.xlu0 %v1627, 96
        %v1651 = vpop.permute.xlu0 %1650
        %1652 = vrot.lane.b32.xlu0 %v1628, 96
        %v1653 = vpop.permute.xlu0 %1652
        %1654 = vrot.lane.b32.xlu0 %v1629, 96
        %v1655 = vpop.permute.xlu0 %1654
        %1656 = vrot.lane.b32.xlu0 %v1630, 96
        %v1657 = vpop.permute.xlu0 %1656
        %1658 = vrot.lane.b32.xlu0 %v1631, 96
        %v1659 = vpop.permute.xlu0 %1658
        %1660 = vrot.lane.b32.xlu0 %v1632, 96
        %v1661 = vpop.permute.xlu0 %1660
        %1662 = vrot.lane.b32.xlu0 %v1633, 96
        %v1663 = vpop.permute.xlu0 %1662
        %vm1664 = vcmask 785408
        %v1665 = vsel %vm1664, %v1645, %v1647
        %v1666 = vsel %vm1664, %v1647, %v1649
        %v1667 = vsel %vm1664, %v1649, %v1651
        %v1668 = vsel %vm1664, %v1651, %v1653
        %v1669 = vsel %vm1664, %v1655, %v1657
        %v1670 = vsel %vm1664, %v1657, %v1659
        %v1671 = vsel %vm1664, %v1659, %v1661
        %v1672 = vsel %vm1664, %v1661, %v1663
        %v1681 = vadd.f32 %v1560, %v1665
        %v1682 = vadd.f32 %v1561, %v1666
        %v1683 = vadd.f32 %v1562, %v1667
        %v1684 = vadd.f32 %v1563, %v1668
        %v1685 = vadd.f32 %v1564, %v1669
        %v1686 = vadd.f32 %v1565, %v1670
        %v1687 = vadd.f32 %v1566, %v1671
        %v1688 = vadd.f32 %v1567, %v1672
        %v1689 = vlaneseq
        %v1690 = vshrl.u32 %v1689, 7
        %v1691 = vsub.s32 2, %v1690
        %v1692 = vrot.slane %v1508, %v1691
        %v1693 = vlaneseq
        %v1694 = vshrl.u32 %v1693, 7
        %v1695 = vsub.s32 6, %v1694
        %v1696 = vrot.slane %v1508, %v1695
        %v1697 = vlaneseq
        %v1698 = vshrl.u32 %v1697, 7
        %v1699 = vsub.s32 2, %v1698
        %v1700 = vrot.slane %v1509, %v1699
        %v1701 = vlaneseq
        %v1702 = vshrl.u32 %v1701, 7
        %v1703 = vsub.s32 6, %v1702
        %v1704 = vrot.slane %v1509, %v1703
        %v1709 = vlaneseq
        %v1710 = vshrl.u32 %v1709, 7
        %v1711 = vsub.s32 2, %v1710
        %v1712 = vrot.slane %v1692, %v1711
        %v1713 = vlaneseq
        %v1714 = vshrl.u32 %v1713, 7
        %v1715 = vsub.s32 2, %v1714
        %v1716 = vrot.slane %v1696, %v1715
        %v1717 = vlaneseq
        %v1718 = vshrl.u32 %v1717, 7
        %v1719 = vsub.s32 2, %v1718
        %v1720 = vrot.slane %v1700, %v1719
        %v1721 = vlaneseq
        %v1722 = vshrl.u32 %v1721, 7
        %v1723 = vsub.s32 2, %v1722
        %v1724 = vrot.slane %v1704, %v1723
        %1729 = vrot.lane.b32.xlu0 %v1712, 64
        %v1730 = vpop.permute.xlu0 %1729
        %1731 = vrot.lane.b32.xlu0 %v1716, 64
        %v1732 = vpop.permute.xlu0 %1731
        %1733 = vrot.lane.b32.xlu0 %v1720, 64
        %v1734 = vpop.permute.xlu0 %1733
        %1735 = vrot.lane.b32.xlu0 %v1724, 64
        %v1736 = vpop.permute.xlu0 %1735
        %v1737 = vsel %vm830, %v1730, %v1732
        %v1738 = vsel %vm830, %v1732, %v1734
        %v1739 = vsel %vm830, %v1734, %v1736
        %v1745 = vmul.f32 %v1493, %v1730
        %v1746 = vmul.f32 %v1494, %v1737
        %v1747 = vmul.f32 %v1495, %v1738
        %v1748 = vmul.f32 %v1496, %v1739
        %v1749 = vmul.f32 %v1497, %v1736
        %v1750 = vmul.f32 %v1498, %v1730
        %v1751 = vmul.f32 %v1499, %v1737
        %v1752 = vmul.f32 %v1500, %v1738
        %v1753 = vmul.f32 %v1501, %v1739
        %v1754 = vmul.f32 %v1502, %v1736
        %1765 = vrot.lane.b32.xlu0 %v1745, 64
        %v1766 = vpop.permute.xlu0 %1765
        %1767 = vrot.lane.b32.xlu0 %v1746, 64
        %v1768 = vpop.permute.xlu0 %1767
        %1769 = vrot.lane.b32.xlu0 %v1747, 64
        %v1770 = vpop.permute.xlu0 %1769
        %1771 = vrot.lane.b32.xlu0 %v1748, 64
        %v1772 = vpop.permute.xlu0 %1771
        %1773 = vrot.lane.b32.xlu0 %v1749, 64
        %v1774 = vpop.permute.xlu0 %1773
        %1775 = vrot.lane.b32.xlu0 %v1750, 64
        %v1776 = vpop.permute.xlu0 %1775
        %1777 = vrot.lane.b32.xlu0 %v1751, 64
        %v1778 = vpop.permute.xlu0 %1777
        %1779 = vrot.lane.b32.xlu0 %v1752, 64
        %v1780 = vpop.permute.xlu0 %1779
        %1781 = vrot.lane.b32.xlu0 %v1753, 64
        %v1782 = vpop.permute.xlu0 %1781
        %1783 = vrot.lane.b32.xlu0 %v1754, 64
        %v1784 = vpop.permute.xlu0 %1783
        %v1785 = vsel %vm830, %v1766, %v1768
        %v1786 = vsel %vm830, %v1768, %v1770
        %v1787 = vsel %vm830, %v1770, %v1772
        %v1788 = vsel %vm830, %v1772, %v1774
        %v1789 = vsel %vm830, %v1776, %v1778
        %v1790 = vsel %vm830, %v1778, %v1780
        %v1791 = vsel %vm830, %v1780, %v1782
        %v1792 = vsel %vm830, %v1782, %v1784
        %v1801 = vadd.f32 %v1681, %v1785
        %v1802 = vadd.f32 %v1682, %v1786
        %v1803 = vadd.f32 %v1683, %v1787
        %v1804 = vadd.f32 %v1684, %v1788
        %v1805 = vadd.f32 %v1685, %v1789
        %v1806 = vadd.f32 %v1686, %v1790
        %v1807 = vadd.f32 %v1687, %v1791
        %v1808 = vadd.f32 %v1688, %v1792
        %v1811 = vlaneseq
        %v1812 = vshrl.u32 %v1811, 7
        %v1813 = vsub.s32 0, %v1812
        %v1814 = vrot.slane %v1510, %v1813
        %v1815 = vlaneseq
        %v1816 = vshrl.u32 %v1815, 7
        %v1817 = vsub.s32 4, %v1816
        %v1818 = vrot.slane %v1510, %v1817
        %v1819 = vlaneseq
        %v1820 = vshrl.u32 %v1819, 7
        %v1821 = vsub.s32 0, %v1820
        %v1822 = vrot.slane %v1511, %v1821
        %v1823 = vlaneseq
        %v1824 = vshrl.u32 %v1823, 7
        %v1825 = vsub.s32 4, %v1824
        %v1826 = vrot.slane %v1511, %v1825
        %v1831 = vlaneseq
        %v1832 = vshrl.u32 %v1831, 7
        %v1833 = vsub.s32 0, %v1832
        %v1834 = vrot.slane %v1814, %v1833
        %v1835 = vlaneseq
        %v1836 = vshrl.u32 %v1835, 7
        %v1837 = vsub.s32 0, %v1836
        %v1838 = vrot.slane %v1818, %v1837
        %v1839 = vlaneseq
        %v1840 = vshrl.u32 %v1839, 7
        %v1841 = vsub.s32 0, %v1840
        %v1842 = vrot.slane %v1822, %v1841
        %v1843 = vlaneseq
        %v1844 = vshrl.u32 %v1843, 7
        %v1845 = vsub.s32 0, %v1844
        %v1846 = vrot.slane %v1826, %v1845
        %v1847 = vmul.f32 %v1493, %v1834
        %v1848 = vmul.f32 %v1494, %v1838
        %v1849 = vmul.f32 %v1495, %v1842
        %v1850 = vmul.f32 %v1496, %v1846
        %v1851 = vmul.f32 %v1498, %v1834
        %v1852 = vmul.f32 %v1499, %v1838
        %v1853 = vmul.f32 %v1500, %v1842
        %v1854 = vmul.f32 %v1501, %v1846
        %v1855 = vmul.f32 %v1503, %v1834
        %v1856 = vmul.f32 %v1504, %v1838
        %v1857 = vmul.f32 %v1505, %v1842
        %v1858 = vmul.f32 %v1506, %v1846
        %vm1871 = vcmask 1046528
        %v1872 = vrot.slane %v1847, 1
        %v1873 = vrot.slane %v1851, 1
        %v1874 = vsel %vm1871, %v1872, %v1873
        %v1875 = vrot.slane %v1848, 1
        %v1876 = vrot.slane %v1852, 1
        %v1877 = vsel %vm1871, %v1875, %v1876
        %v1878 = vrot.slane %v1849, 1
        %v1879 = vrot.slane %v1853, 1
        %v1880 = vsel %vm1871, %v1878, %v1879
        %v1881 = vrot.slane %v1850, 1
        %v1882 = vrot.slane %v1854, 1
        %v1883 = vsel %vm1871, %v1881, %v1882
        %v1884 = vrot.slane %v1855, 1
        %v1885 = vsel %vm1871, %v1873, %v1884
        %v1886 = vrot.slane %v1856, 1
        %v1887 = vsel %vm1871, %v1876, %v1886
        %v1888 = vrot.slane %v1857, 1
        %v1889 = vsel %vm1871, %v1879, %v1888
        %v1890 = vrot.slane %v1858, 1
        %v1891 = vsel %vm1871, %v1882, %v1890
        %v1900 = vadd.f32 %v1801, %v1874
        %v1901 = vadd.f32 %v1802, %v1877
        %v1902 = vadd.f32 %v1803, %v1880
        %v1903 = vadd.f32 %v1804, %v1883
        %v1904 = vadd.f32 %v1805, %v1885
        %v1905 = vadd.f32 %v1806, %v1887
        %v1906 = vadd.f32 %v1807, %v1889
        %v1907 = vadd.f32 %v1808, %v1891
        %v1908 = vlaneseq
        %v1909 = vshrl.u32 %v1908, 7
        %v1910 = vsub.s32 1, %v1909
        %v1911 = vrot.slane %v1510, %v1910
        %v1912 = vlaneseq
        %v1913 = vshrl.u32 %v1912, 7
        %v1914 = vsub.s32 5, %v1913
        %v1915 = vrot.slane %v1510, %v1914
        %v1916 = vlaneseq
        %v1917 = vshrl.u32 %v1916, 7
        %v1918 = vsub.s32 1, %v1917
        %v1919 = vrot.slane %v1511, %v1918
        %v1920 = vlaneseq
        %v1921 = vshrl.u32 %v1920, 7
        %v1922 = vsub.s32 5, %v1921
        %v1923 = vrot.slane %v1511, %v1922
        %v1928 = vlaneseq
        %v1929 = vshrl.u32 %v1928, 7
        %v1930 = vsub.s32 1, %v1929
        %v1931 = vrot.slane %v1911, %v1930
        %v1932 = vlaneseq
        %v1933 = vshrl.u32 %v1932, 7
        %v1934 = vsub.s32 1, %v1933
        %v1935 = vrot.slane %v1915, %v1934
        %v1936 = vlaneseq
        %v1937 = vshrl.u32 %v1936, 7
        %v1938 = vsub.s32 1, %v1937
        %v1939 = vrot.slane %v1919, %v1938
        %v1940 = vlaneseq
        %v1941 = vshrl.u32 %v1940, 7
        %v1942 = vsub.s32 1, %v1941
        %v1943 = vrot.slane %v1923, %v1942
        %1948 = vrot.lane.b32.xlu0 %v1931, 32
        %v1949 = vpop.permute.xlu0 %1948
        %1950 = vrot.lane.b32.xlu0 %v1935, 32
        %v1951 = vpop.permute.xlu0 %1950
        %1952 = vrot.lane.b32.xlu0 %v1939, 32
        %v1953 = vpop.permute.xlu0 %1952
        %1954 = vrot.lane.b32.xlu0 %v1943, 32
        %v1955 = vpop.permute.xlu0 %1954
        %v1956 = vsel %vm394, %v1949, %v1951
        %v1957 = vsel %vm394, %v1951, %v1953
        %v1958 = vsel %vm394, %v1953, %v1955
        %v1964 = vmul.f32 %v1493, %v1949
        %v1965 = vmul.f32 %v1494, %v1956
        %v1966 = vmul.f32 %v1495, %v1957
        %v1967 = vmul.f32 %v1496, %v1958
        %v1968 = vmul.f32 %v1497, %v1955
        %v1969 = vmul.f32 %v1498, %v1949
        %v1970 = vmul.f32 %v1499, %v1956
        %v1971 = vmul.f32 %v1500, %v1957
        %v1972 = vmul.f32 %v1501, %v1958
        %v1973 = vmul.f32 %v1502, %v1955
        %v1974 = vmul.f32 %v1503, %v1949
        %v1975 = vmul.f32 %v1504, %v1956
        %v1976 = vmul.f32 %v1505, %v1957
        %v1977 = vmul.f32 %v1506, %v1958
        %v1978 = vmul.f32 %v1507, %v1955
        %v1994 = vrot.slane %v1964, 1
        %v1995 = vrot.slane %v1969, 1
        %v1996 = vsel %vm1871, %v1994, %v1995
        %v1997 = vrot.slane %v1965, 1
        %v1998 = vrot.slane %v1970, 1
        %v1999 = vsel %vm1871, %v1997, %v1998
        %v2000 = vrot.slane %v1966, 1
        %v2001 = vrot.slane %v1971, 1
        %v2002 = vsel %vm1871, %v2000, %v2001
        %v2003 = vrot.slane %v1967, 1
        %v2004 = vrot.slane %v1972, 1
        %v2005 = vsel %vm1871, %v2003, %v2004
        %v2006 = vrot.slane %v1968, 1
        %v2007 = vrot.slane %v1973, 1
        %v2008 = vsel %vm1871, %v2006, %v2007
        %v2009 = vrot.slane %v1974, 1
        %v2010 = vsel %vm1871, %v1995, %v2009
        %v2011 = vrot.slane %v1975, 1
        %v2012 = vsel %vm1871, %v1998, %v2011
        %v2013 = vrot.slane %v1976, 1
        %v2014 = vsel %vm1871, %v2001, %v2013
        %v2015 = vrot.slane %v1977, 1
        %v2016 = vsel %vm1871, %v2004, %v2015
        %v2017 = vrot.slane %v1978, 1
        %v2018 = vsel %vm1871, %v2007, %v2017
        %2019 = vrot.lane.b32.xlu0 %v1996, 96
        %v2020 = vpop.permute.xlu0 %2019
        %2021 = vrot.lane.b32.xlu0 %v1999, 96
        %v2022 = vpop.permute.xlu0 %2021
        %2023 = vrot.lane.b32.xlu0 %v2002, 96
        %v2024 = vpop.permute.xlu0 %2023
        %2025 = vrot.lane.b32.xlu0 %v2005, 96
        %v2026 = vpop.permute.xlu0 %2025
        %2027 = vrot.lane.b32.xlu0 %v2008, 96
        %v2028 = vpop.permute.xlu0 %2027
        %2029 = vrot.lane.b32.xlu0 %v2010, 96
        %v2030 = vpop.permute.xlu0 %2029
        %2031 = vrot.lane.b32.xlu0 %v2012, 96
        %v2032 = vpop.permute.xlu0 %2031
        %2033 = vrot.lane.b32.xlu0 %v2014, 96
        %v2034 = vpop.permute.xlu0 %2033
        %2035 = vrot.lane.b32.xlu0 %v2016, 96
        %v2036 = vpop.permute.xlu0 %2035
        %2037 = vrot.lane.b32.xlu0 %v2018, 96
        %v2038 = vpop.permute.xlu0 %2037
        %v2039 = vsel %vm1664, %v2020, %v2022
        %v2040 = vsel %vm1664, %v2022, %v2024
        %v2041 = vsel %vm1664, %v2024, %v2026
        %v2042 = vsel %vm1664, %v2026, %v2028
        %v2043 = vsel %vm1664, %v2030, %v2032
        %v2044 = vsel %vm1664, %v2032, %v2034
        %v2045 = vsel %vm1664, %v2034, %v2036
        %v2046 = vsel %vm1664, %v2036, %v2038
        %v2055 = vadd.f32 %v1900, %v2039
        %v2056 = vadd.f32 %v1901, %v2040
        %v2057 = vadd.f32 %v1902, %v2041
        %v2058 = vadd.f32 %v1903, %v2042
        %v2059 = vadd.f32 %v1904, %v2043
        %v2060 = vadd.f32 %v1905, %v2044
        %v2061 = vadd.f32 %v1906, %v2045
        %v2062 = vadd.f32 %v1907, %v2046
        %v2063 = vlaneseq
        %v2064 = vshrl.u32 %v2063, 7
        %v2065 = vsub.s32 2, %v2064
        %v2066 = vrot.slane %v1510, %v2065
        %v2067 = vlaneseq
        %v2068 = vshrl.u32 %v2067, 7
        %v2069 = vsub.s32 6, %v2068
        %v2070 = vrot.slane %v1510, %v2069
        %v2071 = vlaneseq
        %v2072 = vshrl.u32 %v2071, 7
        %v2073 = vsub.s32 2, %v2072
        %v2074 = vrot.slane %v1511, %v2073
        %v2075 = vlaneseq
        %v2076 = vshrl.u32 %v2075, 7
        %v2077 = vsub.s32 6, %v2076
        %v2078 = vrot.slane %v1511, %v2077
        %v2083 = vlaneseq
        %v2084 = vshrl.u32 %v2083, 7
        %v2085 = vsub.s32 2, %v2084
        %v2086 = vrot.slane %v2066, %v2085
        %v2087 = vlaneseq
        %v2088 = vshrl.u32 %v2087, 7
        %v2089 = vsub.s32 2, %v2088
        %v2090 = vrot.slane %v2070, %v2089
        %v2091 = vlaneseq
        %v2092 = vshrl.u32 %v2091, 7
        %v2093 = vsub.s32 2, %v2092
        %v2094 = vrot.slane %v2074, %v2093
        %v2095 = vlaneseq
        %v2096 = vshrl.u32 %v2095, 7
        %v2097 = vsub.s32 2, %v2096
        %v2098 = vrot.slane %v2078, %v2097
        %2103 = vrot.lane.b32.xlu0 %v2086, 64
        %v2104 = vpop.permute.xlu0 %2103
        %2105 = vrot.lane.b32.xlu0 %v2090, 64
        %v2106 = vpop.permute.xlu0 %2105
        %2107 = vrot.lane.b32.xlu0 %v2094, 64
        %v2108 = vpop.permute.xlu0 %2107
        %2109 = vrot.lane.b32.xlu0 %v2098, 64
        %v2110 = vpop.permute.xlu0 %2109
        %v2111 = vsel %vm830, %v2104, %v2106
        %v2112 = vsel %vm830, %v2106, %v2108
        %v2113 = vsel %vm830, %v2108, %v2110
        %v2119 = vmul.f32 %v1493, %v2104
        %v2120 = vmul.f32 %v1494, %v2111
        %v2121 = vmul.f32 %v1495, %v2112
        %v2122 = vmul.f32 %v1496, %v2113
        %v2123 = vmul.f32 %v1497, %v2110
        %v2124 = vmul.f32 %v1498, %v2104
        %v2125 = vmul.f32 %v1499, %v2111
        %v2126 = vmul.f32 %v1500, %v2112
        %v2127 = vmul.f32 %v1501, %v2113
        %v2128 = vmul.f32 %v1502, %v2110
        %v2129 = vmul.f32 %v1503, %v2104
        %v2130 = vmul.f32 %v1504, %v2111
        %v2131 = vmul.f32 %v1505, %v2112
        %v2132 = vmul.f32 %v1506, %v2113
        %v2133 = vmul.f32 %v1507, %v2110
        %v2149 = vrot.slane %v2119, 1
        %v2150 = vrot.slane %v2124, 1
        %v2151 = vsel %vm1871, %v2149, %v2150
        %v2152 = vrot.slane %v2120, 1
        %v2153 = vrot.slane %v2125, 1
        %v2154 = vsel %vm1871, %v2152, %v2153
        %v2155 = vrot.slane %v2121, 1
        %v2156 = vrot.slane %v2126, 1
        %v2157 = vsel %vm1871, %v2155, %v2156
        %v2158 = vrot.slane %v2122, 1
        %v2159 = vrot.slane %v2127, 1
        %v2160 = vsel %vm1871, %v2158, %v2159
        %v2161 = vrot.slane %v2123, 1
        %v2162 = vrot.slane %v2128, 1
        %v2163 = vsel %vm1871, %v2161, %v2162
        %v2164 = vrot.slane %v2129, 1
        %v2165 = vsel %vm1871, %v2150, %v2164
        %v2166 = vrot.slane %v2130, 1
        %v2167 = vsel %vm1871, %v2153, %v2166
        %v2168 = vrot.slane %v2131, 1
        %v2169 = vsel %vm1871, %v2156, %v2168
        %v2170 = vrot.slane %v2132, 1
        %v2171 = vsel %vm1871, %v2159, %v2170
        %v2172 = vrot.slane %v2133, 1
        %v2173 = vsel %vm1871, %v2162, %v2172
        %2174 = vrot.lane.b32.xlu0 %v2151, 64
        %v2175 = vpop.permute.xlu0 %2174
        %2176 = vrot.lane.b32.xlu0 %v2154, 64
        %v2177 = vpop.permute.xlu0 %2176
        %2178 = vrot.lane.b32.xlu0 %v2157, 64
        %v2179 = vpop.permute.xlu0 %2178
        %2180 = vrot.lane.b32.xlu0 %v2160, 64
        %v2181 = vpop.permute.xlu0 %2180
        %2182 = vrot.lane.b32.xlu0 %v2163, 64
        %v2183 = vpop.permute.xlu0 %2182
        %2184 = vrot.lane.b32.xlu0 %v2165, 64
        %v2185 = vpop.permute.xlu0 %2184
        %2186 = vrot.lane.b32.xlu0 %v2167, 64
        %v2187 = vpop.permute.xlu0 %2186
        %2188 = vrot.lane.b32.xlu0 %v2169, 64
        %v2189 = vpop.permute.xlu0 %2188
        %2190 = vrot.lane.b32.xlu0 %v2171, 64
        %v2191 = vpop.permute.xlu0 %2190
        %2192 = vrot.lane.b32.xlu0 %v2173, 64
        %v2193 = vpop.permute.xlu0 %2192
        %v2194 = vsel %vm830, %v2175, %v2177
        %v2195 = vsel %vm830, %v2177, %v2179
        %v2196 = vsel %vm830, %v2179, %v2181
        %v2197 = vsel %vm830, %v2181, %v2183
        %v2198 = vsel %vm830, %v2185, %v2187
        %v2199 = vsel %vm830, %v2187, %v2189
        %v2200 = vsel %vm830, %v2189, %v2191
        %v2201 = vsel %vm830, %v2191, %v2193
        %v2210 = vadd.f32 %v2055, %v2194
        %v2211 = vadd.f32 %v2056, %v2195
        %v2212 = vadd.f32 %v2057, %v2196
        %v2213 = vadd.f32 %v2058, %v2197
        %v2214 = vadd.f32 %v2059, %v2198
        %v2215 = vadd.f32 %v2060, %v2199
        %v2216 = vadd.f32 %v2061, %v2200
        %v2217 = vadd.f32 %v2062, %v2201
        %v2220 = vlaneseq
        %v2221 = vshrl.u32 %v2220, 7
        %v2222 = vsub.s32 0, %v2221
        %v2223 = vrot.slane %v1512, %v2222
        %v2224 = vlaneseq
        %v2225 = vshrl.u32 %v2224, 7
        %v2226 = vsub.s32 4, %v2225
        %v2227 = vrot.slane %v1512, %v2226
        %v2228 = vlaneseq
        %v2229 = vshrl.u32 %v2228, 7
        %v2230 = vsub.s32 0, %v2229
        %v2231 = vrot.slane %v1513, %v2230
        %v2232 = vlaneseq
        %v2233 = vshrl.u32 %v2232, 7
        %v2234 = vsub.s32 4, %v2233
        %v2235 = vrot.slane %v1513, %v2234
        %v2240 = vlaneseq
        %v2241 = vshrl.u32 %v2240, 7
        %v2242 = vsub.s32 0, %v2241
        %v2243 = vrot.slane %v2223, %v2242
        %v2244 = vlaneseq
        %v2245 = vshrl.u32 %v2244, 7
        %v2246 = vsub.s32 0, %v2245
        %v2247 = vrot.slane %v2227, %v2246
        %v2248 = vlaneseq
        %v2249 = vshrl.u32 %v2248, 7
        %v2250 = vsub.s32 0, %v2249
        %v2251 = vrot.slane %v2231, %v2250
        %v2252 = vlaneseq
        %v2253 = vshrl.u32 %v2252, 7
        %v2254 = vsub.s32 0, %v2253
        %v2255 = vrot.slane %v2235, %v2254
        %v2256 = vmul.f32 %v1493, %v2243
        %v2257 = vmul.f32 %v1494, %v2247
        %v2258 = vmul.f32 %v1495, %v2251
        %v2259 = vmul.f32 %v1496, %v2255
        %v2260 = vmul.f32 %v1498, %v2243
        %v2261 = vmul.f32 %v1499, %v2247
        %v2262 = vmul.f32 %v1500, %v2251
        %v2263 = vmul.f32 %v1501, %v2255
        %v2264 = vmul.f32 %v1503, %v2243
        %v2265 = vmul.f32 %v1504, %v2247
        %v2266 = vmul.f32 %v1505, %v2251
        %v2267 = vmul.f32 %v1506, %v2255
        %vm2280 = vcmask 1045504
        %v2281 = vrot.slane %v2256, 2
        %v2282 = vrot.slane %v2260, 2
        %v2283 = vsel %vm2280, %v2281, %v2282
        %v2284 = vrot.slane %v2257, 2
        %v2285 = vrot.slane %v2261, 2
        %v2286 = vsel %vm2280, %v2284, %v2285
        %v2287 = vrot.slane %v2258, 2
        %v2288 = vrot.slane %v2262, 2
        %v2289 = vsel %vm2280, %v2287, %v2288
        %v2290 = vrot.slane %v2259, 2
        %v2291 = vrot.slane %v2263, 2
        %v2292 = vsel %vm2280, %v2290, %v2291
        %v2293 = vrot.slane %v2264, 2
        %v2294 = vsel %vm2280, %v2282, %v2293
        %v2295 = vrot.slane %v2265, 2
        %v2296 = vsel %vm2280, %v2285, %v2295
        %v2297 = vrot.slane %v2266, 2
        %v2298 = vsel %vm2280, %v2288, %v2297
        %v2299 = vrot.slane %v2267, 2
        %v2300 = vsel %vm2280, %v2291, %v2299
        %v2309 = vadd.f32 %v2210, %v2283
        %v2310 = vadd.f32 %v2211, %v2286
        %v2311 = vadd.f32 %v2212, %v2289
        %v2312 = vadd.f32 %v2213, %v2292
        %v2313 = vadd.f32 %v2214, %v2294
        %v2314 = vadd.f32 %v2215, %v2296
        %v2315 = vadd.f32 %v2216, %v2298
        %v2316 = vadd.f32 %v2217, %v2300
        %v2317 = vlaneseq
        %v2318 = vshrl.u32 %v2317, 7
        %v2319 = vsub.s32 1, %v2318
        %v2320 = vrot.slane %v1512, %v2319
        %v2321 = vlaneseq
        %v2322 = vshrl.u32 %v2321, 7
        %v2323 = vsub.s32 5, %v2322
        %v2324 = vrot.slane %v1512, %v2323
        %v2325 = vlaneseq
        %v2326 = vshrl.u32 %v2325, 7
        %v2327 = vsub.s32 1, %v2326
        %v2328 = vrot.slane %v1513, %v2327
        %v2329 = vlaneseq
        %v2330 = vshrl.u32 %v2329, 7
        %v2331 = vsub.s32 5, %v2330
        %v2332 = vrot.slane %v1513, %v2331
        %v2337 = vlaneseq
        %v2338 = vshrl.u32 %v2337, 7
        %v2339 = vsub.s32 1, %v2338
        %v2340 = vrot.slane %v2320, %v2339
        %v2341 = vlaneseq
        %v2342 = vshrl.u32 %v2341, 7
        %v2343 = vsub.s32 1, %v2342
        %v2344 = vrot.slane %v2324, %v2343
        %v2345 = vlaneseq
        %v2346 = vshrl.u32 %v2345, 7
        %v2347 = vsub.s32 1, %v2346
        %v2348 = vrot.slane %v2328, %v2347
        %v2349 = vlaneseq
        %v2350 = vshrl.u32 %v2349, 7
        %v2351 = vsub.s32 1, %v2350
        %v2352 = vrot.slane %v2332, %v2351
        %2357 = vrot.lane.b32.xlu0 %v2340, 32
        %v2358 = vpop.permute.xlu0 %2357
        %2359 = vrot.lane.b32.xlu0 %v2344, 32
        %v2360 = vpop.permute.xlu0 %2359
        %2361 = vrot.lane.b32.xlu0 %v2348, 32
        %v2362 = vpop.permute.xlu0 %2361
        %2363 = vrot.lane.b32.xlu0 %v2352, 32
        %v2364 = vpop.permute.xlu0 %2363
        %v2365 = vsel %vm394, %v2358, %v2360
        %v2366 = vsel %vm394, %v2360, %v2362
        %v2367 = vsel %vm394, %v2362, %v2364
        %v2373 = vmul.f32 %v1493, %v2358
        %v2374 = vmul.f32 %v1494, %v2365
        %v2375 = vmul.f32 %v1495, %v2366
        %v2376 = vmul.f32 %v1496, %v2367
        %v2377 = vmul.f32 %v1497, %v2364
        %v2378 = vmul.f32 %v1498, %v2358
        %v2379 = vmul.f32 %v1499, %v2365
        %v2380 = vmul.f32 %v1500, %v2366
        %v2381 = vmul.f32 %v1501, %v2367
        %v2382 = vmul.f32 %v1502, %v2364
        %v2383 = vmul.f32 %v1503, %v2358
        %v2384 = vmul.f32 %v1504, %v2365
        %v2385 = vmul.f32 %v1505, %v2366
        %v2386 = vmul.f32 %v1506, %v2367
        %v2387 = vmul.f32 %v1507, %v2364
        %v2403 = vrot.slane %v2373, 2
        %v2404 = vrot.slane %v2378, 2
        %v2405 = vsel %vm2280, %v2403, %v2404
        %v2406 = vrot.slane %v2374, 2
        %v2407 = vrot.slane %v2379, 2
        %v2408 = vsel %vm2280, %v2406, %v2407
        %v2409 = vrot.slane %v2375, 2
        %v2410 = vrot.slane %v2380, 2
        %v2411 = vsel %vm2280, %v2409, %v2410
        %v2412 = vrot.slane %v2376, 2
        %v2413 = vrot.slane %v2381, 2
        %v2414 = vsel %vm2280, %v2412, %v2413
        %v2415 = vrot.slane %v2377, 2
        %v2416 = vrot.slane %v2382, 2
        %v2417 = vsel %vm2280, %v2415, %v2416
        %v2418 = vrot.slane %v2383, 2
        %v2419 = vsel %vm2280, %v2404, %v2418
        %v2420 = vrot.slane %v2384, 2
        %v2421 = vsel %vm2280, %v2407, %v2420
        %v2422 = vrot.slane %v2385, 2
        %v2423 = vsel %vm2280, %v2410, %v2422
        %v2424 = vrot.slane %v2386, 2
        %v2425 = vsel %vm2280, %v2413, %v2424
        %v2426 = vrot.slane %v2387, 2
        %v2427 = vsel %vm2280, %v2416, %v2426
        %2428 = vrot.lane.b32.xlu0 %v2405, 96
        %v2429 = vpop.permute.xlu0 %2428
        %2430 = vrot.lane.b32.xlu0 %v2408, 96
        %v2431 = vpop.permute.xlu0 %2430
        %2432 = vrot.lane.b32.xlu0 %v2411, 96
        %v2433 = vpop.permute.xlu0 %2432
        %2434 = vrot.lane.b32.xlu0 %v2414, 96
        %v2435 = vpop.permute.xlu0 %2434
        %2436 = vrot.lane.b32.xlu0 %v2417, 96
        %v2437 = vpop.permute.xlu0 %2436
        %2438 = vrot.lane.b32.xlu0 %v2419, 96
        %v2439 = vpop.permute.xlu0 %2438
        %2440 = vrot.lane.b32.xlu0 %v2421, 96
        %v2441 = vpop.permute.xlu0 %2440
        %2442 = vrot.lane.b32.xlu0 %v2423, 96
        %v2443 = vpop.permute.xlu0 %2442
        %2444 = vrot.lane.b32.xlu0 %v2425, 96
        %v2445 = vpop.permute.xlu0 %2444
        %2446 = vrot.lane.b32.xlu0 %v2427, 96
        %v2447 = vpop.permute.xlu0 %2446
        %v2448 = vsel %vm1664, %v2429, %v2431
        %v2449 = vsel %vm1664, %v2431, %v2433
        %v2450 = vsel %vm1664, %v2433, %v2435
        %v2451 = vsel %vm1664, %v2435, %v2437
        %v2452 = vsel %vm1664, %v2439, %v2441
        %v2453 = vsel %vm1664, %v2441, %v2443
        %v2454 = vsel %vm1664, %v2443, %v2445
        %v2455 = vsel %vm1664, %v2445, %v2447
        %v2464 = vadd.f32 %v2309, %v2448
        %v2465 = vadd.f32 %v2310, %v2449
        %v2466 = vadd.f32 %v2311, %v2450
        %v2467 = vadd.f32 %v2312, %v2451
        %v2468 = vadd.f32 %v2313, %v2452
        %v2469 = vadd.f32 %v2314, %v2453
        %v2470 = vadd.f32 %v2315, %v2454
        %v2471 = vadd.f32 %v2316, %v2455
        %v2472 = vlaneseq
        %v2473 = vshrl.u32 %v2472, 7
        %v2474 = vsub.s32 2, %v2473
        %v2475 = vrot.slane %v1512, %v2474
        %v2476 = vlaneseq
        %v2477 = vshrl.u32 %v2476, 7
        %v2478 = vsub.s32 6, %v2477
        %v2479 = vrot.slane %v1512, %v2478
        %v2480 = vlaneseq
        %v2481 = vshrl.u32 %v2480, 7
        %v2482 = vsub.s32 2, %v2481
        %v2483 = vrot.slane %v1513, %v2482
        %v2484 = vlaneseq
        %v2485 = vshrl.u32 %v2484, 7
        %v2486 = vsub.s32 6, %v2485
        %v2487 = vrot.slane %v1513, %v2486
        %v2492 = vlaneseq
        %v2493 = vshrl.u32 %v2492, 7
        %v2494 = vsub.s32 2, %v2493
        %v2495 = vrot.slane %v2475, %v2494
        %v2496 = vlaneseq
        %v2497 = vshrl.u32 %v2496, 7
        %v2498 = vsub.s32 2, %v2497
        %v2499 = vrot.slane %v2479, %v2498
        %v2500 = vlaneseq
        %v2501 = vshrl.u32 %v2500, 7
        %v2502 = vsub.s32 2, %v2501
        %v2503 = vrot.slane %v2483, %v2502
        %v2504 = vlaneseq
        %v2505 = vshrl.u32 %v2504, 7
        %v2506 = vsub.s32 2, %v2505
        %v2507 = vrot.slane %v2487, %v2506
        %2512 = vrot.lane.b32.xlu0 %v2495, 64
        %v2513 = vpop.permute.xlu0 %2512
        %2514 = vrot.lane.b32.xlu0 %v2499, 64
        %v2515 = vpop.permute.xlu0 %2514
        %2516 = vrot.lane.b32.xlu0 %v2503, 64
        %v2517 = vpop.permute.xlu0 %2516
        %2518 = vrot.lane.b32.xlu0 %v2507, 64
        %v2519 = vpop.permute.xlu0 %2518
        %v2520 = vsel %vm830, %v2513, %v2515
        %v2521 = vsel %vm830, %v2515, %v2517
        %v2522 = vsel %vm830, %v2517, %v2519
        %v2528 = vmul.f32 %v1493, %v2513
        %v2529 = vmul.f32 %v1494, %v2520
        %v2530 = vmul.f32 %v1495, %v2521
        %v2531 = vmul.f32 %v1496, %v2522
        %v2532 = vmul.f32 %v1497, %v2519
        %v2533 = vmul.f32 %v1498, %v2513
        %v2534 = vmul.f32 %v1499, %v2520
        %v2535 = vmul.f32 %v1500, %v2521
        %v2536 = vmul.f32 %v1501, %v2522
        %v2537 = vmul.f32 %v1502, %v2519
        %v2538 = vmul.f32 %v1503, %v2513
        %v2539 = vmul.f32 %v1504, %v2520
        %v2540 = vmul.f32 %v1505, %v2521
        %v2541 = vmul.f32 %v1506, %v2522
        %v2542 = vmul.f32 %v1507, %v2519
        %v2558 = vrot.slane %v2528, 2
        %v2559 = vrot.slane %v2533, 2
        %v2560 = vsel %vm2280, %v2558, %v2559
        %v2561 = vrot.slane %v2529, 2
        %v2562 = vrot.slane %v2534, 2
        %v2563 = vsel %vm2280, %v2561, %v2562
        %v2564 = vrot.slane %v2530, 2
        %v2565 = vrot.slane %v2535, 2
        %v2566 = vsel %vm2280, %v2564, %v2565
        %v2567 = vrot.slane %v2531, 2
        %v2568 = vrot.slane %v2536, 2
        %v2569 = vsel %vm2280, %v2567, %v2568
        %v2570 = vrot.slane %v2532, 2
        %v2571 = vrot.slane %v2537, 2
        %v2572 = vsel %vm2280, %v2570, %v2571
        %v2573 = vrot.slane %v2538, 2
        %v2574 = vsel %vm2280, %v2559, %v2573
        %v2575 = vrot.slane %v2539, 2
        %v2576 = vsel %vm2280, %v2562, %v2575
        %v2577 = vrot.slane %v2540, 2
        %v2578 = vsel %vm2280, %v2565, %v2577
        %v2579 = vrot.slane %v2541, 2
        %v2580 = vsel %vm2280, %v2568, %v2579
        %v2581 = vrot.slane %v2542, 2
        %v2582 = vsel %vm2280, %v2571, %v2581
        %2583 = vrot.lane.b32.xlu0 %v2560, 64
        %v2584 = vpop.permute.xlu0 %2583
        %2585 = vrot.lane.b32.xlu0 %v2563, 64
        %v2586 = vpop.permute.xlu0 %2585
        %2587 = vrot.lane.b32.xlu0 %v2566, 64
        %v2588 = vpop.permute.xlu0 %2587
        %2589 = vrot.lane.b32.xlu0 %v2569, 64
        %v2590 = vpop.permute.xlu0 %2589
        %2591 = vrot.lane.b32.xlu0 %v2572, 64
        %v2592 = vpop.permute.xlu0 %2591
        %2593 = vrot.lane.b32.xlu0 %v2574, 64
        %v2594 = vpop.permute.xlu0 %2593
        %2595 = vrot.lane.b32.xlu0 %v2576, 64
        %v2596 = vpop.permute.xlu0 %2595
        %2597 = vrot.lane.b32.xlu0 %v2578, 64
        %v2598 = vpop.permute.xlu0 %2597
        %2599 = vrot.lane.b32.xlu0 %v2580, 64
        %v2600 = vpop.permute.xlu0 %2599
        %2601 = vrot.lane.b32.xlu0 %v2582, 64
        %v2602 = vpop.permute.xlu0 %2601
        %v2603 = vsel %vm830, %v2584, %v2586
        %v2604 = vsel %vm830, %v2586, %v2588
        %v2605 = vsel %vm830, %v2588, %v2590
        %v2606 = vsel %vm830, %v2590, %v2592
        %v2607 = vsel %vm830, %v2594, %v2596
        %v2608 = vsel %vm830, %v2596, %v2598
        %v2609 = vsel %vm830, %v2598, %v2600
        %v2610 = vsel %vm830, %v2600, %v2602
        %v2619 = vadd.f32 %v2464, %v2603
        %v2620 = vadd.f32 %v2465, %v2604
        %v2621 = vadd.f32 %v2466, %v2605
        %v2622 = vadd.f32 %v2467, %v2606
        %v2623 = vadd.f32 %v2468, %v2607
        %v2624 = vadd.f32 %v2469, %v2608
        %v2625 = vadd.f32 %v2470, %v2609
        %v2626 = vadd.f32 %v2471, %v2610
        %v2627 = vld [vmem:[%s5] sm:$0xf]
        %v2629 = vlaneseq
        %v2630 = vshrl.u32 %v2629, 7
        %v2631 = vsub.s32 0, %v2630
        %v2632 = vrot.slane %v2627, %v2631
        %v2633 = vlaneseq
        %v2634 = vshrl.u32 %v2633, 7
        %v2635 = vsub.s32 1, %v2634
        %v2636 = vrot.slane %v2627, %v2635
        %v2637 = vlaneseq
        %v2638 = vshrl.u32 %v2637, 7
        %v2639 = vsub.s32 2, %v2638
        %v2640 = vrot.slane %v2627, %v2639
        %v2641 = vlaneseq
        %v2642 = vshrl.u32 %v2641, 7
        %v2643 = vsub.s32 3, %v2642
        %v2644 = vrot.slane %v2627, %v2643
        %v2649 = vmul.f32 %v2619, %v2632
        %v2650 = vmul.f32 %v2620, %v2636
        %v2651 = vmul.f32 %v2621, %v2640
        %v2652 = vmul.f32 %v2622, %v2644
        %v2653 = vmul.f32 %v2623, %v2632
        %v2654 = vmul.f32 %v2624, %v2636
        %v2655 = vmul.f32 %v2625, %v2640
        %v2656 = vmul.f32 %v2626, %v2644
        %v2657 = vld [vmem:[%s6] sm:$0xf]
        %v2659 = vlaneseq
        %v2660 = vshrl.u32 %v2659, 7
        %v2661 = vsub.s32 0, %v2660
        %v2662 = vrot.slane %v2657, %v2661
        %v2663 = vlaneseq
        %v2664 = vshrl.u32 %v2663, 7
        %v2665 = vsub.s32 1, %v2664
        %v2666 = vrot.slane %v2657, %v2665
        %v2667 = vlaneseq
        %v2668 = vshrl.u32 %v2667, 7
        %v2669 = vsub.s32 2, %v2668
        %v2670 = vrot.slane %v2657, %v2669
        %v2671 = vlaneseq
        %v2672 = vshrl.u32 %v2671, 7
        %v2673 = vsub.s32 3, %v2672
        %v2674 = vrot.slane %v2657, %v2673
        %v2679 = vadd.f32 %v2649, %v2662
        %v2680 = vadd.f32 %v2650, %v2666
        %v2681 = vadd.f32 %v2651, %v2670
        %v2682 = vadd.f32 %v2652, %v2674
        %v2683 = vadd.f32 %v2653, %v2662
        %v2684 = vadd.f32 %v2654, %v2666
        %v2685 = vadd.f32 %v2655, %v2670
        %v2686 = vadd.f32 %v2656, %v2674
        %v2689 = vcombine.high %v2679, %v2679
        %v2691 = vunpack.c.l.s4 1966171168
        %v2692 = vunpack.c.0.s8 %v2691
        %v2693 = vlaneseq
        %v2694 = vshrl.u32 %v2693, 7
        %v2695 = vsub.s32 %v2692, %v2694
        %v2696 = vrot.slane %v2679, %v2695
        %v2698 = vunpack.c.l.s4 1966171168
        %v2699 = vunpack.c.0.s8 %v2698
        %v2700 = vlaneseq
        %v2701 = vshrl.u32 %v2700, 7
        %v2702 = vsub.s32 %v2699, %v2701
        %v2703 = vrot.slane %v2689, %v2702
        %v2704 = vcombine.high %v2696, %v2696
        %v2705 = vcombine.high %v2703, %v2703
        %v2707 = vunpack.c.l.s4 1966171168
        %v2708 = vunpack.c.0.s8 %v2707
        %v2709 = vlaneseq
        %v2710 = vshrl.u32 %v2709, 7
        %v2711 = vsub.s32 %v2708, %v2710
        %v2712 = vrot.slane %v2696, %v2711
        %v2714 = vunpack.c.l.s4 1966171168
        %v2715 = vunpack.c.0.s8 %v2714
        %v2716 = vlaneseq
        %v2717 = vshrl.u32 %v2716, 7
        %v2718 = vsub.s32 %v2715, %v2717
        %v2719 = vrot.slane %v2703, %v2718
        %v2721 = vunpack.c.l.s4 1966171168
        %v2722 = vunpack.c.0.s8 %v2721
        %v2723 = vlaneseq
        %v2724 = vshrl.u32 %v2723, 7
        %v2725 = vsub.s32 %v2722, %v2724
        %v2726 = vrot.slane %v2704, %v2725
        %v2728 = vunpack.c.l.s4 1966171168
        %v2729 = vunpack.c.0.s8 %v2728
        %v2730 = vlaneseq
        %v2731 = vshrl.u32 %v2730, 7
        %v2732 = vsub.s32 %v2729, %v2731
        %v2733 = vrot.slane %v2705, %v2732
        %v2734 = vcombine.high %v2712, %v2712
        %v2735 = vcombine.high %v2719, %v2719
        %v2736 = vcombine.high %v2726, %v2726
        %v2737 = vcombine.high %v2733, %v2733
        %v2738 = vcombine.high %v2683, %v2683
        %v2740 = vunpack.c.l.s4 1966171168
        %v2741 = vunpack.c.0.s8 %v2740
        %v2742 = vlaneseq
        %v2743 = vshrl.u32 %v2742, 7
        %v2744 = vsub.s32 %v2741, %v2743
        %v2745 = vrot.slane %v2683, %v2744
        %v2747 = vunpack.c.l.s4 1966171168
        %v2748 = vunpack.c.0.s8 %v2747
        %v2749 = vlaneseq
        %v2750 = vshrl.u32 %v2749, 7
        %v2751 = vsub.s32 %v2748, %v2750
        %v2752 = vrot.slane %v2738, %v2751
        %v2753 = vcombine.high %v2745, %v2745
        %v2754 = vcombine.high %v2752, %v2752
        %v2756 = vunpack.c.l.s4 1966171168
        %v2757 = vunpack.c.0.s8 %v2756
        %v2758 = vlaneseq
        %v2759 = vshrl.u32 %v2758, 7
        %v2760 = vsub.s32 %v2757, %v2759
        %v2761 = vrot.slane %v2745, %v2760
        %v2763 = vunpack.c.l.s4 1966171168
        %v2764 = vunpack.c.0.s8 %v2763
        %v2765 = vlaneseq
        %v2766 = vshrl.u32 %v2765, 7
        %v2767 = vsub.s32 %v2764, %v2766
        %v2768 = vrot.slane %v2752, %v2767
        %v2770 = vunpack.c.l.s4 1966171168
        %v2771 = vunpack.c.0.s8 %v2770
        %v2772 = vlaneseq
        %v2773 = vshrl.u32 %v2772, 7
        %v2774 = vsub.s32 %v2771, %v2773
        %v2775 = vrot.slane %v2753, %v2774
        %v2777 = vunpack.c.l.s4 1966171168
        %v2778 = vunpack.c.0.s8 %v2777
        %v2779 = vlaneseq
        %v2780 = vshrl.u32 %v2779, 7
        %v2781 = vsub.s32 %v2778, %v2780
        %v2782 = vrot.slane %v2754, %v2781
        %v2783 = vcombine.high %v2761, %v2761
        %v2784 = vcombine.high %v2768, %v2768
        %v2785 = vcombine.high %v2775, %v2775
        %v2786 = vcombine.high %v2782, %v2782
        %2803 = vst.msk [vmem:[#allocation3] sm:$0x1] %vm1025, %v2712
        %2804 = vst.msk [vmem:[#allocation3 + $0x10] sm:$0x1] %vm1025, %v2726
        %2805 = vst.msk [vmem:[#allocation3 + $0x20] sm:$0x1] %vm1025, %v2734
        %2806 = vst.msk [vmem:[#allocation3 + $0x30] sm:$0x1] %vm1025, %v2736
        %2807 = vst.msk [vmem:[#allocation3 + $0x40] sm:$0x1] %vm1025, %v2719
        %2808 = vst.msk [vmem:[#allocation3 + $0x50] sm:$0x1] %vm1025, %v2733
        %2809 = vst.msk [vmem:[#allocation3 + $0x60] sm:$0x1] %vm1025, %v2735
        %2810 = vst.msk [vmem:[#allocation3 + $0x70] sm:$0x1] %vm1025, %v2737
        %2811 = vst.msk [vmem:[#allocation3 + $0x80] sm:$0x1] %vm1025, %v2761
        %2812 = vst.msk [vmem:[#allocation3 + $0x90] sm:$0x1] %vm1025, %v2775
        %2813 = vst.msk [vmem:[#allocation3 + $0xa0] sm:$0x1] %vm1025, %v2783
        %2814 = vst.msk [vmem:[#allocation3 + $0xb0] sm:$0x1] %vm1025, %v2785
        %2815 = vst.msk [vmem:[#allocation3 + $0xc0] sm:$0x1] %vm1025, %v2768
        %2816 = vst.msk [vmem:[#allocation3 + $0xd0] sm:$0x1] %vm1025, %v2782
        %2817 = vst.msk [vmem:[#allocation3 + $0xe0] sm:$0x1] %vm1025, %v2784
        %2818 = vst.msk [vmem:[#allocation3 + $0xf0] sm:$0x1] %vm1025, %v2786
        %v2819 = vlaneseq
        %v2820 = vshrl.u32 %v2819, 7
        %v2821 = vsub.s32 0, %v2820
        %v2822 = vrot.slane %v2712, %v2821
        %v2823 = vlaneseq
        %v2824 = vshrl.u32 %v2823, 7
        %v2825 = vsub.s32 0, %v2824
        %v2826 = vrot.slane %v2726, %v2825
        %v2827 = vlaneseq
        %v2828 = vshrl.u32 %v2827, 7
        %v2829 = vsub.s32 0, %v2828
        %v2830 = vrot.slane %v2734, %v2829
        %v2831 = vlaneseq
        %v2832 = vshrl.u32 %v2831, 7
        %v2833 = vsub.s32 0, %v2832
        %v2834 = vrot.slane %v2736, %v2833
        %v2835 = vlaneseq
        %v2836 = vshrl.u32 %v2835, 7
        %v2837 = vsub.s32 0, %v2836
        %v2838 = vrot.slane %v2719, %v2837
        %v2839 = vlaneseq
        %v2840 = vshrl.u32 %v2839, 7
        %v2841 = vsub.s32 0, %v2840
        %v2842 = vrot.slane %v2733, %v2841
        %v2843 = vlaneseq
        %v2844 = vshrl.u32 %v2843, 7
        %v2845 = vsub.s32 0, %v2844
        %v2846 = vrot.slane %v2735, %v2845
        %v2847 = vlaneseq
        %v2848 = vshrl.u32 %v2847, 7
        %v2849 = vsub.s32 0, %v2848
        %v2850 = vrot.slane %v2737, %v2849
        %v2851 = vlaneseq
        %v2852 = vshrl.u32 %v2851, 7
        %v2853 = vsub.s32 0, %v2852
        %v2854 = vrot.slane %v2761, %v2853
        %v2855 = vlaneseq
        %v2856 = vshrl.u32 %v2855, 7
        %v2857 = vsub.s32 0, %v2856
        %v2858 = vrot.slane %v2775, %v2857
        %v2859 = vlaneseq
        %v2860 = vshrl.u32 %v2859, 7
        %v2861 = vsub.s32 0, %v2860
        %v2862 = vrot.slane %v2783, %v2861
        %v2863 = vlaneseq
        %v2864 = vshrl.u32 %v2863, 7
        %v2865 = vsub.s32 0, %v2864
        %v2866 = vrot.slane %v2785, %v2865
        %v2867 = vlaneseq
        %v2868 = vshrl.u32 %v2867, 7
        %v2869 = vsub.s32 0, %v2868
        %v2870 = vrot.slane %v2768, %v2869
        %v2871 = vlaneseq
        %v2872 = vshrl.u32 %v2871, 7
        %v2873 = vsub.s32 0, %v2872
        %v2874 = vrot.slane %v2782, %v2873
        %v2875 = vlaneseq
        %v2876 = vshrl.u32 %v2875, 7
        %v2877 = vsub.s32 0, %v2876
        %v2878 = vrot.slane %v2784, %v2877
        %v2879 = vlaneseq
        %v2880 = vshrl.u32 %v2879, 7
        %v2881 = vsub.s32 0, %v2880
        %v2882 = vrot.slane %v2786, %v2881
        %2883 = vrot.lane.b32.xlu0 %v2822, 96
        %v2884 = vpop.permute.xlu0 %2883
        %2885 = vrot.lane.b32.xlu0 %v2826, 96
        %v2886 = vpop.permute.xlu0 %2885
        %2887 = vrot.lane.b32.xlu0 %v2830, 96
        %v2888 = vpop.permute.xlu0 %2887
        %2889 = vrot.lane.b32.xlu0 %v2834, 96
        %v2890 = vpop.permute.xlu0 %2889
        %2891 = vrot.lane.b32.xlu0 %v2838, 96
        %v2892 = vpop.permute.xlu0 %2891
        %2893 = vrot.lane.b32.xlu0 %v2842, 96
        %v2894 = vpop.permute.xlu0 %2893
        %2895 = vrot.lane.b32.xlu0 %v2846, 96
        %v2896 = vpop.permute.xlu0 %2895
        %2897 = vrot.lane.b32.xlu0 %v2850, 96
        %v2898 = vpop.permute.xlu0 %2897
        %2899 = vrot.lane.b32.xlu0 %v2854, 96
        %v2900 = vpop.permute.xlu0 %2899
        %2901 = vrot.lane.b32.xlu0 %v2858, 96
        %v2902 = vpop.permute.xlu0 %2901
        %2903 = vrot.lane.b32.xlu0 %v2862, 96
        %v2904 = vpop.permute.xlu0 %2903
        %2905 = vrot.lane.b32.xlu0 %v2866, 96
        %v2906 = vpop.permute.xlu0 %2905
        %2907 = vrot.lane.b32.xlu0 %v2870, 96
        %v2908 = vpop.permute.xlu0 %2907
        %2909 = vrot.lane.b32.xlu0 %v2874, 96
        %v2910 = vpop.permute.xlu0 %2909
        %2911 = vrot.lane.b32.xlu0 %v2878, 96
        %v2912 = vpop.permute.xlu0 %2911
        %2913 = vrot.lane.b32.xlu0 %v2882, 96
        %v2914 = vpop.permute.xlu0 %2913
        %2931 = vst.msk [vmem:[#allocation3 + $0x1] sm:$0x1] %vm1025, %v2884
        %2932 = vst.msk [vmem:[#allocation3 + $0x11] sm:$0x1] %vm1025, %v2886
        %2933 = vst.msk [vmem:[#allocation3 + $0x21] sm:$0x1] %vm1025, %v2888
        %2934 = vst.msk [vmem:[#allocation3 + $0x31] sm:$0x1] %vm1025, %v2890
        %2935 = vst.msk [vmem:[#allocation3 + $0x41] sm:$0x1] %vm1025, %v2892
        %2936 = vst.msk [vmem:[#allocation3 + $0x51] sm:$0x1] %vm1025, %v2894
        %2937 = vst.msk [vmem:[#allocation3 + $0x61] sm:$0x1] %vm1025, %v2896
        %2938 = vst.msk [vmem:[#allocation3 + $0x71] sm:$0x1] %vm1025, %v2898
        %2939 = vst.msk [vmem:[#allocation3 + $0x81] sm:$0x1] %vm1025, %v2900
        %2940 = vst.msk [vmem:[#allocation3 + $0x91] sm:$0x1] %vm1025, %v2902
        %2941 = vst.msk [vmem:[#allocation3 + $0xa1] sm:$0x1] %vm1025, %v2904
        %2942 = vst.msk [vmem:[#allocation3 + $0xb1] sm:$0x1] %vm1025, %v2906
        %2943 = vst.msk [vmem:[#allocation3 + $0xc1] sm:$0x1] %vm1025, %v2908
        %2944 = vst.msk [vmem:[#allocation3 + $0xd1] sm:$0x1] %vm1025, %v2910
        %2945 = vst.msk [vmem:[#allocation3 + $0xe1] sm:$0x1] %vm1025, %v2912
        %2946 = vst.msk [vmem:[#allocation3 + $0xf1] sm:$0x1] %vm1025, %v2914
        %2947 = vrot.lane.b32.xlu0 %v2822, 64
        %v2948 = vpop.permute.xlu0 %2947
        %2949 = vrot.lane.b32.xlu0 %v2826, 64
        %v2950 = vpop.permute.xlu0 %2949
        %2951 = vrot.lane.b32.xlu0 %v2830, 64
        %v2952 = vpop.permute.xlu0 %2951
        %2953 = vrot.lane.b32.xlu0 %v2834, 64
        %v2954 = vpop.permute.xlu0 %2953
        %2955 = vrot.lane.b32.xlu0 %v2838, 64
        %v2956 = vpop.permute.xlu0 %2955
        %2957 = vrot.lane.b32.xlu0 %v2842, 64
        %v2958 = vpop.permute.xlu0 %2957
        %2959 = vrot.lane.b32.xlu0 %v2846, 64
        %v2960 = vpop.permute.xlu0 %2959
        %2961 = vrot.lane.b32.xlu0 %v2850, 64
        %v2962 = vpop.permute.xlu0 %2961
        %2963 = vrot.lane.b32.xlu0 %v2854, 64
        %v2964 = vpop.permute.xlu0 %2963
        %2965 = vrot.lane.b32.xlu0 %v2858, 64
        %v2966 = vpop.permute.xlu0 %2965
        %2967 = vrot.lane.b32.xlu0 %v2862, 64
        %v2968 = vpop.permute.xlu0 %2967
        %2969 = vrot.lane.b32.xlu0 %v2866, 64
        %v2970 = vpop.permute.xlu0 %2969
        %2971 = vrot.lane.b32.xlu0 %v2870, 64
        %v2972 = vpop.permute.xlu0 %2971
        %2973 = vrot.lane.b32.xlu0 %v2874, 64
        %v2974 = vpop.permute.xlu0 %2973
        %2975 = vrot.lane.b32.xlu0 %v2878, 64
        %v2976 = vpop.permute.xlu0 %2975
        %2977 = vrot.lane.b32.xlu0 %v2882, 64
        %v2978 = vpop.permute.xlu0 %2977
        %2995 = vst.msk [vmem:[#allocation3 + $0x2] sm:$0x1] %vm1025, %v2948
        %2996 = vst.msk [vmem:[#allocation3 + $0x12] sm:$0x1] %vm1025, %v2950
        %2997 = vst.msk [vmem:[#allocation3 + $0x22] sm:$0x1] %vm1025, %v2952
        %2998 = vst.msk [vmem:[#allocation3 + $0x32] sm:$0x1] %vm1025, %v2954
        %2999 = vst.msk [vmem:[#allocation3 + $0x42] sm:$0x1] %vm1025, %v2956
        %3000 = vst.msk [vmem:[#allocation3 + $0x52] sm:$0x1] %vm1025, %v2958
        %3001 = vst.msk [vmem:[#allocation3 + $0x62] sm:$0x1] %vm1025, %v2960
        %3002 = vst.msk [vmem:[#allocation3 + $0x72] sm:$0x1] %vm1025, %v2962
        %3003 = vst.msk [vmem:[#allocation3 + $0x82] sm:$0x1] %vm1025, %v2964
        %3004 = vst.msk [vmem:[#allocation3 + $0x92] sm:$0x1] %vm1025, %v2966
        %3005 = vst.msk [vmem:[#allocation3 + $0xa2] sm:$0x1] %vm1025, %v2968
        %3006 = vst.msk [vmem:[#allocation3 + $0xb2] sm:$0x1] %vm1025, %v2970
        %3007 = vst.msk [vmem:[#allocation3 + $0xc2] sm:$0x1] %vm1025, %v2972
        %3008 = vst.msk [vmem:[#allocation3 + $0xd2] sm:$0x1] %vm1025, %v2974
        %3009 = vst.msk [vmem:[#allocation3 + $0xe2] sm:$0x1] %vm1025, %v2976
        %3010 = vst.msk [vmem:[#allocation3 + $0xf2] sm:$0x1] %vm1025, %v2978
        %3011 = vrot.lane.b32.xlu0 %v2822, 32
        %v3012 = vpop.permute.xlu0 %3011
        %3013 = vrot.lane.b32.xlu0 %v2826, 32
        %v3014 = vpop.permute.xlu0 %3013
        %3015 = vrot.lane.b32.xlu0 %v2830, 32
        %v3016 = vpop.permute.xlu0 %3015
        %3017 = vrot.lane.b32.xlu0 %v2834, 32
        %v3018 = vpop.permute.xlu0 %3017
        %3019 = vrot.lane.b32.xlu0 %v2838, 32
        %v3020 = vpop.permute.xlu0 %3019
        %3021 = vrot.lane.b32.xlu0 %v2842, 32
        %v3022 = vpop.permute.xlu0 %3021
        %3023 = vrot.lane.b32.xlu0 %v2846, 32
        %v3024 = vpop.permute.xlu0 %3023
        %3025 = vrot.lane.b32.xlu0 %v2850, 32
        %v3026 = vpop.permute.xlu0 %3025
        %3027 = vrot.lane.b32.xlu0 %v2854, 32
        %v3028 = vpop.permute.xlu0 %3027
        %3029 = vrot.lane.b32.xlu0 %v2858, 32
        %v3030 = vpop.permute.xlu0 %3029
        %3031 = vrot.lane.b32.xlu0 %v2862, 32
        %v3032 = vpop.permute.xlu0 %3031
        %3033 = vrot.lane.b32.xlu0 %v2866, 32
        %v3034 = vpop.permute.xlu0 %3033
        %3035 = vrot.lane.b32.xlu0 %v2870, 32
        %v3036 = vpop.permute.xlu0 %3035
        %3037 = vrot.lane.b32.xlu0 %v2874, 32
        %v3038 = vpop.permute.xlu0 %3037
        %3039 = vrot.lane.b32.xlu0 %v2878, 32
        %v3040 = vpop.permute.xlu0 %3039
        %3041 = vrot.lane.b32.xlu0 %v2882, 32
        %v3042 = vpop.permute.xlu0 %3041
        %3059 = vst.msk [vmem:[#allocation3 + $0x3] sm:$0x1] %vm1025, %v3012
        %3060 = vst.msk [vmem:[#allocation3 + $0x13] sm:$0x1] %vm1025, %v3014
        %3061 = vst.msk [vmem:[#allocation3 + $0x23] sm:$0x1] %vm1025, %v3016
        %3062 = vst.msk [vmem:[#allocation3 + $0x33] sm:$0x1] %vm1025, %v3018
        %3063 = vst.msk [vmem:[#allocation3 + $0x43] sm:$0x1] %vm1025, %v3020
        %3064 = vst.msk [vmem:[#allocation3 + $0x53] sm:$0x1] %vm1025, %v3022
        %3065 = vst.msk [vmem:[#allocation3 + $0x63] sm:$0x1] %vm1025, %v3024
        %3066 = vst.msk [vmem:[#allocation3 + $0x73] sm:$0x1] %vm1025, %v3026
        %3067 = vst.msk [vmem:[#allocation3 + $0x83] sm:$0x1] %vm1025, %v3028
        %3068 = vst.msk [vmem:[#allocation3 + $0x93] sm:$0x1] %vm1025, %v3030
        %3069 = vst.msk [vmem:[#allocation3 + $0xa3] sm:$0x1] %vm1025, %v3032
        %3070 = vst.msk [vmem:[#allocation3 + $0xb3] sm:$0x1] %vm1025, %v3034
        %3071 = vst.msk [vmem:[#allocation3 + $0xc3] sm:$0x1] %vm1025, %v3036
        %3072 = vst.msk [vmem:[#allocation3 + $0xd3] sm:$0x1] %vm1025, %v3038
        %3073 = vst.msk [vmem:[#allocation3 + $0xe3] sm:$0x1] %vm1025, %v3040
        %3074 = vst.msk [vmem:[#allocation3 + $0xf3] sm:$0x1] %vm1025, %v3042
        %v3077 = vcombine.high %v2680, %v2680
        %v3079 = vunpack.c.l.s4 1966171168
        %v3080 = vunpack.c.0.s8 %v3079
        %v3081 = vlaneseq
        %v3082 = vshrl.u32 %v3081, 7
        %v3083 = vsub.s32 %v3080, %v3082
        %v3084 = vrot.slane %v2680, %v3083
        %v3086 = vunpack.c.l.s4 1966171168
        %v3087 = vunpack.c.0.s8 %v3086
        %v3088 = vlaneseq
        %v3089 = vshrl.u32 %v3088, 7
        %v3090 = vsub.s32 %v3087, %v3089
        %v3091 = vrot.slane %v3077, %v3090
        %v3092 = vcombine.high %v3084, %v3084
        %v3093 = vcombine.high %v3091, %v3091
        %v3095 = vunpack.c.l.s4 1966171168
        %v3096 = vunpack.c.0.s8 %v3095
        %v3097 = vlaneseq
        %v3098 = vshrl.u32 %v3097, 7
        %v3099 = vsub.s32 %v3096, %v3098
        %v3100 = vrot.slane %v3084, %v3099
        %v3102 = vunpack.c.l.s4 1966171168
        %v3103 = vunpack.c.0.s8 %v3102
        %v3104 = vlaneseq
        %v3105 = vshrl.u32 %v3104, 7
        %v3106 = vsub.s32 %v3103, %v3105
        %v3107 = vrot.slane %v3091, %v3106
        %v3109 = vunpack.c.l.s4 1966171168
        %v3110 = vunpack.c.0.s8 %v3109
        %v3111 = vlaneseq
        %v3112 = vshrl.u32 %v3111, 7
        %v3113 = vsub.s32 %v3110, %v3112
        %v3114 = vrot.slane %v3092, %v3113
        %v3116 = vunpack.c.l.s4 1966171168
        %v3117 = vunpack.c.0.s8 %v3116
        %v3118 = vlaneseq
        %v3119 = vshrl.u32 %v3118, 7
        %v3120 = vsub.s32 %v3117, %v3119
        %v3121 = vrot.slane %v3093, %v3120
        %v3122 = vcombine.high %v3100, %v3100
        %v3123 = vcombine.high %v3107, %v3107
        %v3124 = vcombine.high %v3114, %v3114
        %v3125 = vcombine.high %v3121, %v3121
        %v3126 = vcombine.high %v2684, %v2684
        %v3128 = vunpack.c.l.s4 1966171168
        %v3129 = vunpack.c.0.s8 %v3128
        %v3130 = vlaneseq
        %v3131 = vshrl.u32 %v3130, 7
        %v3132 = vsub.s32 %v3129, %v3131
        %v3133 = vrot.slane %v2684, %v3132
        %v3135 = vunpack.c.l.s4 1966171168
        %v3136 = vunpack.c.0.s8 %v3135
        %v3137 = vlaneseq
        %v3138 = vshrl.u32 %v3137, 7
        %v3139 = vsub.s32 %v3136, %v3138
        %v3140 = vrot.slane %v3126, %v3139
        %v3141 = vcombine.high %v3133, %v3133
        %v3142 = vcombine.high %v3140, %v3140
        %v3144 = vunpack.c.l.s4 1966171168
        %v3145 = vunpack.c.0.s8 %v3144
        %v3146 = vlaneseq
        %v3147 = vshrl.u32 %v3146, 7
        %v3148 = vsub.s32 %v3145, %v3147
        %v3149 = vrot.slane %v3133, %v3148
        %v3151 = vunpack.c.l.s4 1966171168
        %v3152 = vunpack.c.0.s8 %v3151
        %v3153 = vlaneseq
        %v3154 = vshrl.u32 %v3153, 7
        %v3155 = vsub.s32 %v3152, %v3154
        %v3156 = vrot.slane %v3140, %v3155
        %v3158 = vunpack.c.l.s4 1966171168
        %v3159 = vunpack.c.0.s8 %v3158
        %v3160 = vlaneseq
        %v3161 = vshrl.u32 %v3160, 7
        %v3162 = vsub.s32 %v3159, %v3161
        %v3163 = vrot.slane %v3141, %v3162
        %v3165 = vunpack.c.l.s4 1966171168
        %v3166 = vunpack.c.0.s8 %v3165
        %v3167 = vlaneseq
        %v3168 = vshrl.u32 %v3167, 7
        %v3169 = vsub.s32 %v3166, %v3168
        %v3170 = vrot.slane %v3142, %v3169
        %v3171 = vcombine.high %v3149, %v3149
        %v3172 = vcombine.high %v3156, %v3156
        %v3173 = vcombine.high %v3163, %v3163
        %v3174 = vcombine.high %v3170, %v3170
        %3191 = vst.msk [vmem:[#allocation3 + $0x4] sm:$0x1] %vm1025, %v3100
        %3192 = vst.msk [vmem:[#allocation3 + $0x14] sm:$0x1] %vm1025, %v3114
        %3193 = vst.msk [vmem:[#allocation3 + $0x24] sm:$0x1] %vm1025, %v3122
        %3194 = vst.msk [vmem:[#allocation3 + $0x34] sm:$0x1] %vm1025, %v3124
        %3195 = vst.msk [vmem:[#allocation3 + $0x44] sm:$0x1] %vm1025, %v3107
        %3196 = vst.msk [vmem:[#allocation3 + $0x54] sm:$0x1] %vm1025, %v3121
        %3197 = vst.msk [vmem:[#allocation3 + $0x64] sm:$0x1] %vm1025, %v3123
        %3198 = vst.msk [vmem:[#allocation3 + $0x74] sm:$0x1] %vm1025, %v3125
        %3199 = vst.msk [vmem:[#allocation3 + $0x84] sm:$0x1] %vm1025, %v3149
        %3200 = vst.msk [vmem:[#allocation3 + $0x94] sm:$0x1] %vm1025, %v3163
        %3201 = vst.msk [vmem:[#allocation3 + $0xa4] sm:$0x1] %vm1025, %v3171
        %3202 = vst.msk [vmem:[#allocation3 + $0xb4] sm:$0x1] %vm1025, %v3173
        %3203 = vst.msk [vmem:[#allocation3 + $0xc4] sm:$0x1] %vm1025, %v3156
        %3204 = vst.msk [vmem:[#allocation3 + $0xd4] sm:$0x1] %vm1025, %v3170
        %3205 = vst.msk [vmem:[#allocation3 + $0xe4] sm:$0x1] %vm1025, %v3172
        %3206 = vst.msk [vmem:[#allocation3 + $0xf4] sm:$0x1] %vm1025, %v3174
        %v3207 = vlaneseq
        %v3208 = vshrl.u32 %v3207, 7
        %v3209 = vsub.s32 0, %v3208
        %v3210 = vrot.slane %v3100, %v3209
        %v3211 = vlaneseq
        %v3212 = vshrl.u32 %v3211, 7
        %v3213 = vsub.s32 0, %v3212
        %v3214 = vrot.slane %v3114, %v3213
        %v3215 = vlaneseq
        %v3216 = vshrl.u32 %v3215, 7
        %v3217 = vsub.s32 0, %v3216
        %v3218 = vrot.slane %v3122, %v3217
        %v3219 = vlaneseq
        %v3220 = vshrl.u32 %v3219, 7
        %v3221 = vsub.s32 0, %v3220
        %v3222 = vrot.slane %v3124, %v3221
        %v3223 = vlaneseq
        %v3224 = vshrl.u32 %v3223, 7
        %v3225 = vsub.s32 0, %v3224
        %v3226 = vrot.slane %v3107, %v3225
        %v3227 = vlaneseq
        %v3228 = vshrl.u32 %v3227, 7
        %v3229 = vsub.s32 0, %v3228
        %v3230 = vrot.slane %v3121, %v3229
        %v3231 = vlaneseq
        %v3232 = vshrl.u32 %v3231, 7
        %v3233 = vsub.s32 0, %v3232
        %v3234 = vrot.slane %v3123, %v3233
        %v3235 = vlaneseq
        %v3236 = vshrl.u32 %v3235, 7
        %v3237 = vsub.s32 0, %v3236
        %v3238 = vrot.slane %v3125, %v3237
        %v3239 = vlaneseq
        %v3240 = vshrl.u32 %v3239, 7
        %v3241 = vsub.s32 0, %v3240
        %v3242 = vrot.slane %v3149, %v3241
        %v3243 = vlaneseq
        %v3244 = vshrl.u32 %v3243, 7
        %v3245 = vsub.s32 0, %v3244
        %v3246 = vrot.slane %v3163, %v3245
        %v3247 = vlaneseq
        %v3248 = vshrl.u32 %v3247, 7
        %v3249 = vsub.s32 0, %v3248
        %v3250 = vrot.slane %v3171, %v3249
        %v3251 = vlaneseq
        %v3252 = vshrl.u32 %v3251, 7
        %v3253 = vsub.s32 0, %v3252
        %v3254 = vrot.slane %v3173, %v3253
        %v3255 = vlaneseq
        %v3256 = vshrl.u32 %v3255, 7
        %v3257 = vsub.s32 0, %v3256
        %v3258 = vrot.slane %v3156, %v3257
        %v3259 = vlaneseq
        %v3260 = vshrl.u32 %v3259, 7
        %v3261 = vsub.s32 0, %v3260
        %v3262 = vrot.slane %v3170, %v3261
        %v3263 = vlaneseq
        %v3264 = vshrl.u32 %v3263, 7
        %v3265 = vsub.s32 0, %v3264
        %v3266 = vrot.slane %v3172, %v3265
        %v3267 = vlaneseq
        %v3268 = vshrl.u32 %v3267, 7
        %v3269 = vsub.s32 0, %v3268
        %v3270 = vrot.slane %v3174, %v3269
        %3271 = vrot.lane.b32.xlu0 %v3210, 96
        %v3272 = vpop.permute.xlu0 %3271
        %3273 = vrot.lane.b32.xlu0 %v3214, 96
        %v3274 = vpop.permute.xlu0 %3273
        %3275 = vrot.lane.b32.xlu0 %v3218, 96
        %v3276 = vpop.permute.xlu0 %3275
        %3277 = vrot.lane.b32.xlu0 %v3222, 96
        %v3278 = vpop.permute.xlu0 %3277
        %3279 = vrot.lane.b32.xlu0 %v3226, 96
        %v3280 = vpop.permute.xlu0 %3279
        %3281 = vrot.lane.b32.xlu0 %v3230, 96
        %v3282 = vpop.permute.xlu0 %3281
        %3283 = vrot.lane.b32.xlu0 %v3234, 96
        %v3284 = vpop.permute.xlu0 %3283
        %3285 = vrot.lane.b32.xlu0 %v3238, 96
        %v3286 = vpop.permute.xlu0 %3285
        %3287 = vrot.lane.b32.xlu0 %v3242, 96
        %v3288 = vpop.permute.xlu0 %3287
        %3289 = vrot.lane.b32.xlu0 %v3246, 96
        %v3290 = vpop.permute.xlu0 %3289
        %3291 = vrot.lane.b32.xlu0 %v3250, 96
        %v3292 = vpop.permute.xlu0 %3291
        %3293 = vrot.lane.b32.xlu0 %v3254, 96
        %v3294 = vpop.permute.xlu0 %3293
        %3295 = vrot.lane.b32.xlu0 %v3258, 96
        %v3296 = vpop.permute.xlu0 %3295
        %3297 = vrot.lane.b32.xlu0 %v3262, 96
        %v3298 = vpop.permute.xlu0 %3297
        %3299 = vrot.lane.b32.xlu0 %v3266, 96
        %v3300 = vpop.permute.xlu0 %3299
        %3301 = vrot.lane.b32.xlu0 %v3270, 96
        %v3302 = vpop.permute.xlu0 %3301
        %3319 = vst.msk [vmem:[#allocation3 + $0x5] sm:$0x1] %vm1025, %v3272
        %3320 = vst.msk [vmem:[#allocation3 + $0x15] sm:$0x1] %vm1025, %v3274
        %3321 = vst.msk [vmem:[#allocation3 + $0x25] sm:$0x1] %vm1025, %v3276
        %3322 = vst.msk [vmem:[#allocation3 + $0x35] sm:$0x1] %vm1025, %v3278
        %3323 = vst.msk [vmem:[#allocation3 + $0x45] sm:$0x1] %vm1025, %v3280
        %3324 = vst.msk [vmem:[#allocation3 + $0x55] sm:$0x1] %vm1025, %v3282
        %3325 = vst.msk [vmem:[#allocation3 + $0x65] sm:$0x1] %vm1025, %v3284
        %3326 = vst.msk [vmem:[#allocation3 + $0x75] sm:$0x1] %vm1025, %v3286
        %3327 = vst.msk [vmem:[#allocation3 + $0x85] sm:$0x1] %vm1025, %v3288
        %3328 = vst.msk [vmem:[#allocation3 + $0x95] sm:$0x1] %vm1025, %v3290
        %3329 = vst.msk [vmem:[#allocation3 + $0xa5] sm:$0x1] %vm1025, %v3292
        %3330 = vst.msk [vmem:[#allocation3 + $0xb5] sm:$0x1] %vm1025, %v3294
        %3331 = vst.msk [vmem:[#allocation3 + $0xc5] sm:$0x1] %vm1025, %v3296
        %3332 = vst.msk [vmem:[#allocation3 + $0xd5] sm:$0x1] %vm1025, %v3298
        %3333 = vst.msk [vmem:[#allocation3 + $0xe5] sm:$0x1] %vm1025, %v3300
        %3334 = vst.msk [vmem:[#allocation3 + $0xf5] sm:$0x1] %vm1025, %v3302
        %3335 = vrot.lane.b32.xlu0 %v3210, 64
        %v3336 = vpop.permute.xlu0 %3335
        %3337 = vrot.lane.b32.xlu0 %v3214, 64
        %v3338 = vpop.permute.xlu0 %3337
        %3339 = vrot.lane.b32.xlu0 %v3218, 64
        %v3340 = vpop.permute.xlu0 %3339
        %3341 = vrot.lane.b32.xlu0 %v3222, 64
        %v3342 = vpop.permute.xlu0 %3341
        %3343 = vrot.lane.b32.xlu0 %v3226, 64
        %v3344 = vpop.permute.xlu0 %3343
        %3345 = vrot.lane.b32.xlu0 %v3230, 64
        %v3346 = vpop.permute.xlu0 %3345
        %3347 = vrot.lane.b32.xlu0 %v3234, 64
        %v3348 = vpop.permute.xlu0 %3347
        %3349 = vrot.lane.b32.xlu0 %v3238, 64
        %v3350 = vpop.permute.xlu0 %3349
        %3351 = vrot.lane.b32.xlu0 %v3242, 64
        %v3352 = vpop.permute.xlu0 %3351
        %3353 = vrot.lane.b32.xlu0 %v3246, 64
        %v3354 = vpop.permute.xlu0 %3353
        %3355 = vrot.lane.b32.xlu0 %v3250, 64
        %v3356 = vpop.permute.xlu0 %3355
        %3357 = vrot.lane.b32.xlu0 %v3254, 64
        %v3358 = vpop.permute.xlu0 %3357
        %3359 = vrot.lane.b32.xlu0 %v3258, 64
        %v3360 = vpop.permute.xlu0 %3359
        %3361 = vrot.lane.b32.xlu0 %v3262, 64
        %v3362 = vpop.permute.xlu0 %3361
        %3363 = vrot.lane.b32.xlu0 %v3266, 64
        %v3364 = vpop.permute.xlu0 %3363
        %3365 = vrot.lane.b32.xlu0 %v3270, 64
        %v3366 = vpop.permute.xlu0 %3365
        %3383 = vst.msk [vmem:[#allocation3 + $0x6] sm:$0x1] %vm1025, %v3336
        %3384 = vst.msk [vmem:[#allocation3 + $0x16] sm:$0x1] %vm1025, %v3338
        %3385 = vst.msk [vmem:[#allocation3 + $0x26] sm:$0x1] %vm1025, %v3340
        %3386 = vst.msk [vmem:[#allocation3 + $0x36] sm:$0x1] %vm1025, %v3342
        %3387 = vst.msk [vmem:[#allocation3 + $0x46] sm:$0x1] %vm1025, %v3344
        %3388 = vst.msk [vmem:[#allocation3 + $0x56] sm:$0x1] %vm1025, %v3346
        %3389 = vst.msk [vmem:[#allocation3 + $0x66] sm:$0x1] %vm1025, %v3348
        %3390 = vst.msk [vmem:[#allocation3 + $0x76] sm:$0x1] %vm1025, %v3350
        %3391 = vst.msk [vmem:[#allocation3 + $0x86] sm:$0x1] %vm1025, %v3352
        %3392 = vst.msk [vmem:[#allocation3 + $0x96] sm:$0x1] %vm1025, %v3354
        %3393 = vst.msk [vmem:[#allocation3 + $0xa6] sm:$0x1] %vm1025, %v3356
        %3394 = vst.msk [vmem:[#allocation3 + $0xb6] sm:$0x1] %vm1025, %v3358
        %3395 = vst.msk [vmem:[#allocation3 + $0xc6] sm:$0x1] %vm1025, %v3360
        %3396 = vst.msk [vmem:[#allocation3 + $0xd6] sm:$0x1] %vm1025, %v3362
        %3397 = vst.msk [vmem:[#allocation3 + $0xe6] sm:$0x1] %vm1025, %v3364
        %3398 = vst.msk [vmem:[#allocation3 + $0xf6] sm:$0x1] %vm1025, %v3366
        %3399 = vrot.lane.b32.xlu0 %v3210, 32
        %v3400 = vpop.permute.xlu0 %3399
        %3401 = vrot.lane.b32.xlu0 %v3214, 32
        %v3402 = vpop.permute.xlu0 %3401
        %3403 = vrot.lane.b32.xlu0 %v3218, 32
        %v3404 = vpop.permute.xlu0 %3403
        %3405 = vrot.lane.b32.xlu0 %v3222, 32
        %v3406 = vpop.permute.xlu0 %3405
        %3407 = vrot.lane.b32.xlu0 %v3226, 32
        %v3408 = vpop.permute.xlu0 %3407
        %3409 = vrot.lane.b32.xlu0 %v3230, 32
        %v3410 = vpop.permute.xlu0 %3409
        %3411 = vrot.lane.b32.xlu0 %v3234, 32
        %v3412 = vpop.permute.xlu0 %3411
        %3413 = vrot.lane.b32.xlu0 %v3238, 32
        %v3414 = vpop.permute.xlu0 %3413
        %3415 = vrot.lane.b32.xlu0 %v3242, 32
        %v3416 = vpop.permute.xlu0 %3415
        %3417 = vrot.lane.b32.xlu0 %v3246, 32
        %v3418 = vpop.permute.xlu0 %3417
        %3419 = vrot.lane.b32.xlu0 %v3250, 32
        %v3420 = vpop.permute.xlu0 %3419
        %3421 = vrot.lane.b32.xlu0 %v3254, 32
        %v3422 = vpop.permute.xlu0 %3421
        %3423 = vrot.lane.b32.xlu0 %v3258, 32
        %v3424 = vpop.permute.xlu0 %3423
        %3425 = vrot.lane.b32.xlu0 %v3262, 32
        %v3426 = vpop.permute.xlu0 %3425
        %3427 = vrot.lane.b32.xlu0 %v3266, 32
        %v3428 = vpop.permute.xlu0 %3427
        %3429 = vrot.lane.b32.xlu0 %v3270, 32
        %v3430 = vpop.permute.xlu0 %3429
        %3447 = vst.msk [vmem:[#allocation3 + $0x7] sm:$0x1] %vm1025, %v3400
        %3448 = vst.msk [vmem:[#allocation3 + $0x17] sm:$0x1] %vm1025, %v3402
        %3449 = vst.msk [vmem:[#allocation3 + $0x27] sm:$0x1] %vm1025, %v3404
        %3450 = vst.msk [vmem:[#allocation3 + $0x37] sm:$0x1] %vm1025, %v3406
        %3451 = vst.msk [vmem:[#allocation3 + $0x47] sm:$0x1] %vm1025, %v3408
        %3452 = vst.msk [vmem:[#allocation3 + $0x57] sm:$0x1] %vm1025, %v3410
        %3453 = vst.msk [vmem:[#allocation3 + $0x67] sm:$0x1] %vm1025, %v3412
        %3454 = vst.msk [vmem:[#allocation3 + $0x77] sm:$0x1] %vm1025, %v3414
        %3455 = vst.msk [vmem:[#allocation3 + $0x87] sm:$0x1] %vm1025, %v3416
        %3456 = vst.msk [vmem:[#allocation3 + $0x97] sm:$0x1] %vm1025, %v3418
        %3457 = vst.msk [vmem:[#allocation3 + $0xa7] sm:$0x1] %vm1025, %v3420
        %3458 = vst.msk [vmem:[#allocation3 + $0xb7] sm:$0x1] %vm1025, %v3422
        %3459 = vst.msk [vmem:[#allocation3 + $0xc7] sm:$0x1] %vm1025, %v3424
        %3460 = vst.msk [vmem:[#allocation3 + $0xd7] sm:$0x1] %vm1025, %v3426
        %3461 = vst.msk [vmem:[#allocation3 + $0xe7] sm:$0x1] %vm1025, %v3428
        %3462 = vst.msk [vmem:[#allocation3 + $0xf7] sm:$0x1] %vm1025, %v3430
        %v3465 = vcombine.high %v2681, %v2681
        %v3467 = vunpack.c.l.s4 1966171168
        %v3468 = vunpack.c.0.s8 %v3467
        %v3469 = vlaneseq
        %v3470 = vshrl.u32 %v3469, 7
        %v3471 = vsub.s32 %v3468, %v3470
        %v3472 = vrot.slane %v2681, %v3471
        %v3474 = vunpack.c.l.s4 1966171168
        %v3475 = vunpack.c.0.s8 %v3474
        %v3476 = vlaneseq
        %v3477 = vshrl.u32 %v3476, 7
        %v3478 = vsub.s32 %v3475, %v3477
        %v3479 = vrot.slane %v3465, %v3478
        %v3480 = vcombine.high %v3472, %v3472
        %v3481 = vcombine.high %v3479, %v3479
        %v3483 = vunpack.c.l.s4 1966171168
        %v3484 = vunpack.c.0.s8 %v3483
        %v3485 = vlaneseq
        %v3486 = vshrl.u32 %v3485, 7
        %v3487 = vsub.s32 %v3484, %v3486
        %v3488 = vrot.slane %v3472, %v3487
        %v3490 = vunpack.c.l.s4 1966171168
        %v3491 = vunpack.c.0.s8 %v3490
        %v3492 = vlaneseq
        %v3493 = vshrl.u32 %v3492, 7
        %v3494 = vsub.s32 %v3491, %v3493
        %v3495 = vrot.slane %v3479, %v3494
        %v3497 = vunpack.c.l.s4 1966171168
        %v3498 = vunpack.c.0.s8 %v3497
        %v3499 = vlaneseq
        %v3500 = vshrl.u32 %v3499, 7
        %v3501 = vsub.s32 %v3498, %v3500
        %v3502 = vrot.slane %v3480, %v3501
        %v3504 = vunpack.c.l.s4 1966171168
        %v3505 = vunpack.c.0.s8 %v3504
        %v3506 = vlaneseq
        %v3507 = vshrl.u32 %v3506, 7
        %v3508 = vsub.s32 %v3505, %v3507
        %v3509 = vrot.slane %v3481, %v3508
        %v3510 = vcombine.high %v3488, %v3488
        %v3511 = vcombine.high %v3495, %v3495
        %v3512 = vcombine.high %v3502, %v3502
        %v3513 = vcombine.high %v3509, %v3509
        %v3514 = vcombine.high %v2685, %v2685
        %v3516 = vunpack.c.l.s4 1966171168
        %v3517 = vunpack.c.0.s8 %v3516
        %v3518 = vlaneseq
        %v3519 = vshrl.u32 %v3518, 7
        %v3520 = vsub.s32 %v3517, %v3519
        %v3521 = vrot.slane %v2685, %v3520
        %v3523 = vunpack.c.l.s4 1966171168
        %v3524 = vunpack.c.0.s8 %v3523
        %v3525 = vlaneseq
        %v3526 = vshrl.u32 %v3525, 7
        %v3527 = vsub.s32 %v3524, %v3526
        %v3528 = vrot.slane %v3514, %v3527
        %v3529 = vcombine.high %v3521, %v3521
        %v3530 = vcombine.high %v3528, %v3528
        %v3532 = vunpack.c.l.s4 1966171168
        %v3533 = vunpack.c.0.s8 %v3532
        %v3534 = vlaneseq
        %v3535 = vshrl.u32 %v3534, 7
        %v3536 = vsub.s32 %v3533, %v3535
        %v3537 = vrot.slane %v3521, %v3536
        %v3539 = vunpack.c.l.s4 1966171168
        %v3540 = vunpack.c.0.s8 %v3539
        %v3541 = vlaneseq
        %v3542 = vshrl.u32 %v3541, 7
        %v3543 = vsub.s32 %v3540, %v3542
        %v3544 = vrot.slane %v3528, %v3543
        %v3546 = vunpack.c.l.s4 1966171168
        %v3547 = vunpack.c.0.s8 %v3546
        %v3548 = vlaneseq
        %v3549 = vshrl.u32 %v3548, 7
        %v3550 = vsub.s32 %v3547, %v3549
        %v3551 = vrot.slane %v3529, %v3550
        %v3553 = vunpack.c.l.s4 1966171168
        %v3554 = vunpack.c.0.s8 %v3553
        %v3555 = vlaneseq
        %v3556 = vshrl.u32 %v3555, 7
        %v3557 = vsub.s32 %v3554, %v3556
        %v3558 = vrot.slane %v3530, %v3557
        %v3559 = vcombine.high %v3537, %v3537
        %v3560 = vcombine.high %v3544, %v3544
        %v3561 = vcombine.high %v3551, %v3551
        %v3562 = vcombine.high %v3558, %v3558
        %3579 = vst.msk [vmem:[#allocation3 + $0x8] sm:$0x1] %vm1025, %v3488
        %3580 = vst.msk [vmem:[#allocation3 + $0x18] sm:$0x1] %vm1025, %v3502
        %3581 = vst.msk [vmem:[#allocation3 + $0x28] sm:$0x1] %vm1025, %v3510
        %3582 = vst.msk [vmem:[#allocation3 + $0x38] sm:$0x1] %vm1025, %v3512
        %3583 = vst.msk [vmem:[#allocation3 + $0x48] sm:$0x1] %vm1025, %v3495
        %3584 = vst.msk [vmem:[#allocation3 + $0x58] sm:$0x1] %vm1025, %v3509
        %3585 = vst.msk [vmem:[#allocation3 + $0x68] sm:$0x1] %vm1025, %v3511
        %3586 = vst.msk [vmem:[#allocation3 + $0x78] sm:$0x1] %vm1025, %v3513
        %3587 = vst.msk [vmem:[#allocation3 + $0x88] sm:$0x1] %vm1025, %v3537
        %3588 = vst.msk [vmem:[#allocation3 + $0x98] sm:$0x1] %vm1025, %v3551
        %3589 = vst.msk [vmem:[#allocation3 + $0xa8] sm:$0x1] %vm1025, %v3559
        %3590 = vst.msk [vmem:[#allocation3 + $0xb8] sm:$0x1] %vm1025, %v3561
        %3591 = vst.msk [vmem:[#allocation3 + $0xc8] sm:$0x1] %vm1025, %v3544
        %3592 = vst.msk [vmem:[#allocation3 + $0xd8] sm:$0x1] %vm1025, %v3558
        %3593 = vst.msk [vmem:[#allocation3 + $0xe8] sm:$0x1] %vm1025, %v3560
        %3594 = vst.msk [vmem:[#allocation3 + $0xf8] sm:$0x1] %vm1025, %v3562
        %v3595 = vlaneseq
        %v3596 = vshrl.u32 %v3595, 7
        %v3597 = vsub.s32 0, %v3596
        %v3598 = vrot.slane %v3488, %v3597
        %v3599 = vlaneseq
        %v3600 = vshrl.u32 %v3599, 7
        %v3601 = vsub.s32 0, %v3600
        %v3602 = vrot.slane %v3502, %v3601
        %v3603 = vlaneseq
        %v3604 = vshrl.u32 %v3603, 7
        %v3605 = vsub.s32 0, %v3604
        %v3606 = vrot.slane %v3510, %v3605
        %v3607 = vlaneseq
        %v3608 = vshrl.u32 %v3607, 7
        %v3609 = vsub.s32 0, %v3608
        %v3610 = vrot.slane %v3512, %v3609
        %v3611 = vlaneseq
        %v3612 = vshrl.u32 %v3611, 7
        %v3613 = vsub.s32 0, %v3612
        %v3614 = vrot.slane %v3495, %v3613
        %v3615 = vlaneseq
        %v3616 = vshrl.u32 %v3615, 7
        %v3617 = vsub.s32 0, %v3616
        %v3618 = vrot.slane %v3509, %v3617
        %v3619 = vlaneseq
        %v3620 = vshrl.u32 %v3619, 7
        %v3621 = vsub.s32 0, %v3620
        %v3622 = vrot.slane %v3511, %v3621
        %v3623 = vlaneseq
        %v3624 = vshrl.u32 %v3623, 7
        %v3625 = vsub.s32 0, %v3624
        %v3626 = vrot.slane %v3513, %v3625
        %v3627 = vlaneseq
        %v3628 = vshrl.u32 %v3627, 7
        %v3629 = vsub.s32 0, %v3628
        %v3630 = vrot.slane %v3537, %v3629
        %v3631 = vlaneseq
        %v3632 = vshrl.u32 %v3631, 7
        %v3633 = vsub.s32 0, %v3632
        %v3634 = vrot.slane %v3551, %v3633
        %v3635 = vlaneseq
        %v3636 = vshrl.u32 %v3635, 7
        %v3637 = vsub.s32 0, %v3636
        %v3638 = vrot.slane %v3559, %v3637
        %v3639 = vlaneseq
        %v3640 = vshrl.u32 %v3639, 7
        %v3641 = vsub.s32 0, %v3640
        %v3642 = vrot.slane %v3561, %v3641
        %v3643 = vlaneseq
        %v3644 = vshrl.u32 %v3643, 7
        %v3645 = vsub.s32 0, %v3644
        %v3646 = vrot.slane %v3544, %v3645
        %v3647 = vlaneseq
        %v3648 = vshrl.u32 %v3647, 7
        %v3649 = vsub.s32 0, %v3648
        %v3650 = vrot.slane %v3558, %v3649
        %v3651 = vlaneseq
        %v3652 = vshrl.u32 %v3651, 7
        %v3653 = vsub.s32 0, %v3652
        %v3654 = vrot.slane %v3560, %v3653
        %v3655 = vlaneseq
        %v3656 = vshrl.u32 %v3655, 7
        %v3657 = vsub.s32 0, %v3656
        %v3658 = vrot.slane %v3562, %v3657
        %3659 = vrot.lane.b32.xlu0 %v3598, 96
        %v3660 = vpop.permute.xlu0 %3659
        %3661 = vrot.lane.b32.xlu0 %v3602, 96
        %v3662 = vpop.permute.xlu0 %3661
        %3663 = vrot.lane.b32.xlu0 %v3606, 96
        %v3664 = vpop.permute.xlu0 %3663
        %3665 = vrot.lane.b32.xlu0 %v3610, 96
        %v3666 = vpop.permute.xlu0 %3665
        %3667 = vrot.lane.b32.xlu0 %v3614, 96
        %v3668 = vpop.permute.xlu0 %3667
        %3669 = vrot.lane.b32.xlu0 %v3618, 96
        %v3670 = vpop.permute.xlu0 %3669
        %3671 = vrot.lane.b32.xlu0 %v3622, 96
        %v3672 = vpop.permute.xlu0 %3671
        %3673 = vrot.lane.b32.xlu0 %v3626, 96
        %v3674 = vpop.permute.xlu0 %3673
        %3675 = vrot.lane.b32.xlu0 %v3630, 96
        %v3676 = vpop.permute.xlu0 %3675
        %3677 = vrot.lane.b32.xlu0 %v3634, 96
        %v3678 = vpop.permute.xlu0 %3677
        %3679 = vrot.lane.b32.xlu0 %v3638, 96
        %v3680 = vpop.permute.xlu0 %3679
        %3681 = vrot.lane.b32.xlu0 %v3642, 96
        %v3682 = vpop.permute.xlu0 %3681
        %3683 = vrot.lane.b32.xlu0 %v3646, 96
        %v3684 = vpop.permute.xlu0 %3683
        %3685 = vrot.lane.b32.xlu0 %v3650, 96
        %v3686 = vpop.permute.xlu0 %3685
        %3687 = vrot.lane.b32.xlu0 %v3654, 96
        %v3688 = vpop.permute.xlu0 %3687
        %3689 = vrot.lane.b32.xlu0 %v3658, 96
        %v3690 = vpop.permute.xlu0 %3689
        %3707 = vst.msk [vmem:[#allocation3 + $0x9] sm:$0x1] %vm1025, %v3660
        %3708 = vst.msk [vmem:[#allocation3 + $0x19] sm:$0x1] %vm1025, %v3662
        %3709 = vst.msk [vmem:[#allocation3 + $0x29] sm:$0x1] %vm1025, %v3664
        %3710 = vst.msk [vmem:[#allocation3 + $0x39] sm:$0x1] %vm1025, %v3666
        %3711 = vst.msk [vmem:[#allocation3 + $0x49] sm:$0x1] %vm1025, %v3668
        %3712 = vst.msk [vmem:[#allocation3 + $0x59] sm:$0x1] %vm1025, %v3670
        %3713 = vst.msk [vmem:[#allocation3 + $0x69] sm:$0x1] %vm1025, %v3672
        %3714 = vst.msk [vmem:[#allocation3 + $0x79] sm:$0x1] %vm1025, %v3674
        %3715 = vst.msk [vmem:[#allocation3 + $0x89] sm:$0x1] %vm1025, %v3676
        %3716 = vst.msk [vmem:[#allocation3 + $0x99] sm:$0x1] %vm1025, %v3678
        %3717 = vst.msk [vmem:[#allocation3 + $0xa9] sm:$0x1] %vm1025, %v3680
        %3718 = vst.msk [vmem:[#allocation3 + $0xb9] sm:$0x1] %vm1025, %v3682
        %3719 = vst.msk [vmem:[#allocation3 + $0xc9] sm:$0x1] %vm1025, %v3684
        %3720 = vst.msk [vmem:[#allocation3 + $0xd9] sm:$0x1] %vm1025, %v3686
        %3721 = vst.msk [vmem:[#allocation3 + $0xe9] sm:$0x1] %vm1025, %v3688
        %3722 = vst.msk [vmem:[#allocation3 + $0xf9] sm:$0x1] %vm1025, %v3690
        %3723 = vrot.lane.b32.xlu0 %v3598, 64
        %v3724 = vpop.permute.xlu0 %3723
        %3725 = vrot.lane.b32.xlu0 %v3602, 64
        %v3726 = vpop.permute.xlu0 %3725
        %3727 = vrot.lane.b32.xlu0 %v3606, 64
        %v3728 = vpop.permute.xlu0 %3727
        %3729 = vrot.lane.b32.xlu0 %v3610, 64
        %v3730 = vpop.permute.xlu0 %3729
        %3731 = vrot.lane.b32.xlu0 %v3614, 64
        %v3732 = vpop.permute.xlu0 %3731
        %3733 = vrot.lane.b32.xlu0 %v3618, 64
        %v3734 = vpop.permute.xlu0 %3733
        %3735 = vrot.lane.b32.xlu0 %v3622, 64
        %v3736 = vpop.permute.xlu0 %3735
        %3737 = vrot.lane.b32.xlu0 %v3626, 64
        %v3738 = vpop.permute.xlu0 %3737
        %3739 = vrot.lane.b32.xlu0 %v3630, 64
        %v3740 = vpop.permute.xlu0 %3739
        %3741 = vrot.lane.b32.xlu0 %v3634, 64
        %v3742 = vpop.permute.xlu0 %3741
        %3743 = vrot.lane.b32.xlu0 %v3638, 64
        %v3744 = vpop.permute.xlu0 %3743
        %3745 = vrot.lane.b32.xlu0 %v3642, 64
        %v3746 = vpop.permute.xlu0 %3745
        %3747 = vrot.lane.b32.xlu0 %v3646, 64
        %v3748 = vpop.permute.xlu0 %3747
        %3749 = vrot.lane.b32.xlu0 %v3650, 64
        %v3750 = vpop.permute.xlu0 %3749
        %3751 = vrot.lane.b32.xlu0 %v3654, 64
        %v3752 = vpop.permute.xlu0 %3751
        %3753 = vrot.lane.b32.xlu0 %v3658, 64
        %v3754 = vpop.permute.xlu0 %3753
        %3771 = vst.msk [vmem:[#allocation3 + $0xa] sm:$0x1] %vm1025, %v3724
        %3772 = vst.msk [vmem:[#allocation3 + $0x1a] sm:$0x1] %vm1025, %v3726
        %3773 = vst.msk [vmem:[#allocation3 + $0x2a] sm:$0x1] %vm1025, %v3728
        %3774 = vst.msk [vmem:[#allocation3 + $0x3a] sm:$0x1] %vm1025, %v3730
        %3775 = vst.msk [vmem:[#allocation3 + $0x4a] sm:$0x1] %vm1025, %v3732
        %3776 = vst.msk [vmem:[#allocation3 + $0x5a] sm:$0x1] %vm1025, %v3734
        %3777 = vst.msk [vmem:[#allocation3 + $0x6a] sm:$0x1] %vm1025, %v3736
        %3778 = vst.msk [vmem:[#allocation3 + $0x7a] sm:$0x1] %vm1025, %v3738
        %3779 = vst.msk [vmem:[#allocation3 + $0x8a] sm:$0x1] %vm1025, %v3740
        %3780 = vst.msk [vmem:[#allocation3 + $0x9a] sm:$0x1] %vm1025, %v3742
        %3781 = vst.msk [vmem:[#allocation3 + $0xaa] sm:$0x1] %vm1025, %v3744
        %3782 = vst.msk [vmem:[#allocation3 + $0xba] sm:$0x1] %vm1025, %v3746
        %3783 = vst.msk [vmem:[#allocation3 + $0xca] sm:$0x1] %vm1025, %v3748
        %3784 = vst.msk [vmem:[#allocation3 + $0xda] sm:$0x1] %vm1025, %v3750
        %3785 = vst.msk [vmem:[#allocation3 + $0xea] sm:$0x1] %vm1025, %v3752
        %3786 = vst.msk [vmem:[#allocation3 + $0xfa] sm:$0x1] %vm1025, %v3754
        %3787 = vrot.lane.b32.xlu0 %v3598, 32
        %v3788 = vpop.permute.xlu0 %3787
        %3789 = vrot.lane.b32.xlu0 %v3602, 32
        %v3790 = vpop.permute.xlu0 %3789
        %3791 = vrot.lane.b32.xlu0 %v3606, 32
        %v3792 = vpop.permute.xlu0 %3791
        %3793 = vrot.lane.b32.xlu0 %v3610, 32
        %v3794 = vpop.permute.xlu0 %3793
        %3795 = vrot.lane.b32.xlu0 %v3614, 32
        %v3796 = vpop.permute.xlu0 %3795
        %3797 = vrot.lane.b32.xlu0 %v3618, 32
        %v3798 = vpop.permute.xlu0 %3797
        %3799 = vrot.lane.b32.xlu0 %v3622, 32
        %v3800 = vpop.permute.xlu0 %3799
        %3801 = vrot.lane.b32.xlu0 %v3626, 32
        %v3802 = vpop.permute.xlu0 %3801
        %3803 = vrot.lane.b32.xlu0 %v3630, 32
        %v3804 = vpop.permute.xlu0 %3803
        %3805 = vrot.lane.b32.xlu0 %v3634, 32
        %v3806 = vpop.permute.xlu0 %3805
        %3807 = vrot.lane.b32.xlu0 %v3638, 32
        %v3808 = vpop.permute.xlu0 %3807
        %3809 = vrot.lane.b32.xlu0 %v3642, 32
        %v3810 = vpop.permute.xlu0 %3809
        %3811 = vrot.lane.b32.xlu0 %v3646, 32
        %v3812 = vpop.permute.xlu0 %3811
        %3813 = vrot.lane.b32.xlu0 %v3650, 32
        %v3814 = vpop.permute.xlu0 %3813
        %3815 = vrot.lane.b32.xlu0 %v3654, 32
        %v3816 = vpop.permute.xlu0 %3815
        %3817 = vrot.lane.b32.xlu0 %v3658, 32
        %v3818 = vpop.permute.xlu0 %3817
        %3835 = vst.msk [vmem:[#allocation3 + $0xb] sm:$0x1] %vm1025, %v3788
        %3836 = vst.msk [vmem:[#allocation3 + $0x1b] sm:$0x1] %vm1025, %v3790
        %3837 = vst.msk [vmem:[#allocation3 + $0x2b] sm:$0x1] %vm1025, %v3792
        %3838 = vst.msk [vmem:[#allocation3 + $0x3b] sm:$0x1] %vm1025, %v3794
        %3839 = vst.msk [vmem:[#allocation3 + $0x4b] sm:$0x1] %vm1025, %v3796
        %3840 = vst.msk [vmem:[#allocation3 + $0x5b] sm:$0x1] %vm1025, %v3798
        %3841 = vst.msk [vmem:[#allocation3 + $0x6b] sm:$0x1] %vm1025, %v3800
        %3842 = vst.msk [vmem:[#allocation3 + $0x7b] sm:$0x1] %vm1025, %v3802
        %3843 = vst.msk [vmem:[#allocation3 + $0x8b] sm:$0x1] %vm1025, %v3804
        %3844 = vst.msk [vmem:[#allocation3 + $0x9b] sm:$0x1] %vm1025, %v3806
        %3845 = vst.msk [vmem:[#allocation3 + $0xab] sm:$0x1] %vm1025, %v3808
        %3846 = vst.msk [vmem:[#allocation3 + $0xbb] sm:$0x1] %vm1025, %v3810
        %3847 = vst.msk [vmem:[#allocation3 + $0xcb] sm:$0x1] %vm1025, %v3812
        %3848 = vst.msk [vmem:[#allocation3 + $0xdb] sm:$0x1] %vm1025, %v3814
        %3849 = vst.msk [vmem:[#allocation3 + $0xeb] sm:$0x1] %vm1025, %v3816
        %3850 = vst.msk [vmem:[#allocation3 + $0xfb] sm:$0x1] %vm1025, %v3818
        %v3853 = vcombine.high %v2682, %v2682
        %v3855 = vunpack.c.l.s4 1966171168
        %v3856 = vunpack.c.0.s8 %v3855
        %v3857 = vlaneseq
        %v3858 = vshrl.u32 %v3857, 7
        %v3859 = vsub.s32 %v3856, %v3858
        %v3860 = vrot.slane %v2682, %v3859
        %v3862 = vunpack.c.l.s4 1966171168
        %v3863 = vunpack.c.0.s8 %v3862
        %v3864 = vlaneseq
        %v3865 = vshrl.u32 %v3864, 7
        %v3866 = vsub.s32 %v3863, %v3865
        %v3867 = vrot.slane %v3853, %v3866
        %v3868 = vcombine.high %v3860, %v3860
        %v3869 = vcombine.high %v3867, %v3867
        %v3871 = vunpack.c.l.s4 1966171168
        %v3872 = vunpack.c.0.s8 %v3871
        %v3873 = vlaneseq
        %v3874 = vshrl.u32 %v3873, 7
        %v3875 = vsub.s32 %v3872, %v3874
        %v3876 = vrot.slane %v3860, %v3875
        %v3878 = vunpack.c.l.s4 1966171168
        %v3879 = vunpack.c.0.s8 %v3878
        %v3880 = vlaneseq
        %v3881 = vshrl.u32 %v3880, 7
        %v3882 = vsub.s32 %v3879, %v3881
        %v3883 = vrot.slane %v3867, %v3882
        %v3885 = vunpack.c.l.s4 1966171168
        %v3886 = vunpack.c.0.s8 %v3885
        %v3887 = vlaneseq
        %v3888 = vshrl.u32 %v3887, 7
        %v3889 = vsub.s32 %v3886, %v3888
        %v3890 = vrot.slane %v3868, %v3889
        %v3892 = vunpack.c.l.s4 1966171168
        %v3893 = vunpack.c.0.s8 %v3892
        %v3894 = vlaneseq
        %v3895 = vshrl.u32 %v3894, 7
        %v3896 = vsub.s32 %v3893, %v3895
        %v3897 = vrot.slane %v3869, %v3896
        %v3898 = vcombine.high %v3876, %v3876
        %v3899 = vcombine.high %v3883, %v3883
        %v3900 = vcombine.high %v3890, %v3890
        %v3901 = vcombine.high %v3897, %v3897
        %v3902 = vcombine.high %v2686, %v2686
        %v3904 = vunpack.c.l.s4 1966171168
        %v3905 = vunpack.c.0.s8 %v3904
        %v3906 = vlaneseq
        %v3907 = vshrl.u32 %v3906, 7
        %v3908 = vsub.s32 %v3905, %v3907
        %v3909 = vrot.slane %v2686, %v3908
        %v3911 = vunpack.c.l.s4 1966171168
        %v3912 = vunpack.c.0.s8 %v3911
        %v3913 = vlaneseq
        %v3914 = vshrl.u32 %v3913, 7
        %v3915 = vsub.s32 %v3912, %v3914
        %v3916 = vrot.slane %v3902, %v3915
        %v3917 = vcombine.high %v3909, %v3909
        %v3918 = vcombine.high %v3916, %v3916
        %v3920 = vunpack.c.l.s4 1966171168
        %v3921 = vunpack.c.0.s8 %v3920
        %v3922 = vlaneseq
        %v3923 = vshrl.u32 %v3922, 7
        %v3924 = vsub.s32 %v3921, %v3923
        %v3925 = vrot.slane %v3909, %v3924
        %v3927 = vunpack.c.l.s4 1966171168
        %v3928 = vunpack.c.0.s8 %v3927
        %v3929 = vlaneseq
        %v3930 = vshrl.u32 %v3929, 7
        %v3931 = vsub.s32 %v3928, %v3930
        %v3932 = vrot.slane %v3916, %v3931
        %v3934 = vunpack.c.l.s4 1966171168
        %v3935 = vunpack.c.0.s8 %v3934
        %v3936 = vlaneseq
        %v3937 = vshrl.u32 %v3936, 7
        %v3938 = vsub.s32 %v3935, %v3937
        %v3939 = vrot.slane %v3917, %v3938
        %v3941 = vunpack.c.l.s4 1966171168
        %v3942 = vunpack.c.0.s8 %v3941
        %v3943 = vlaneseq
        %v3944 = vshrl.u32 %v3943, 7
        %v3945 = vsub.s32 %v3942, %v3944
        %v3946 = vrot.slane %v3918, %v3945
        %v3947 = vcombine.high %v3925, %v3925
        %v3948 = vcombine.high %v3932, %v3932
        %v3949 = vcombine.high %v3939, %v3939
        %v3950 = vcombine.high %v3946, %v3946
        %3967 = vst.msk [vmem:[#allocation3 + $0xc] sm:$0x1] %vm1025, %v3876
        %3968 = vst.msk [vmem:[#allocation3 + $0x1c] sm:$0x1] %vm1025, %v3890
        %3969 = vst.msk [vmem:[#allocation3 + $0x2c] sm:$0x1] %vm1025, %v3898
        %3970 = vst.msk [vmem:[#allocation3 + $0x3c] sm:$0x1] %vm1025, %v3900
        %3971 = vst.msk [vmem:[#allocation3 + $0x4c] sm:$0x1] %vm1025, %v3883
        %3972 = vst.msk [vmem:[#allocation3 + $0x5c] sm:$0x1] %vm1025, %v3897
        %3973 = vst.msk [vmem:[#allocation3 + $0x6c] sm:$0x1] %vm1025, %v3899
        %3974 = vst.msk [vmem:[#allocation3 + $0x7c] sm:$0x1] %vm1025, %v3901
        %3975 = vst.msk [vmem:[#allocation3 + $0x8c] sm:$0x1] %vm1025, %v3925
        %3976 = vst.msk [vmem:[#allocation3 + $0x9c] sm:$0x1] %vm1025, %v3939
        %3977 = vst.msk [vmem:[#allocation3 + $0xac] sm:$0x1] %vm1025, %v3947
        %3978 = vst.msk [vmem:[#allocation3 + $0xbc] sm:$0x1] %vm1025, %v3949
        %3979 = vst.msk [vmem:[#allocation3 + $0xcc] sm:$0x1] %vm1025, %v3932
        %3980 = vst.msk [vmem:[#allocation3 + $0xdc] sm:$0x1] %vm1025, %v3946
        %3981 = vst.msk [vmem:[#allocation3 + $0xec] sm:$0x1] %vm1025, %v3948
        %3982 = vst.msk [vmem:[#allocation3 + $0xfc] sm:$0x1] %vm1025, %v3950
        %v3983 = vlaneseq
        %v3984 = vshrl.u32 %v3983, 7
        %v3985 = vsub.s32 0, %v3984
        %v3986 = vrot.slane %v3876, %v3985
        %v3987 = vlaneseq
        %v3988 = vshrl.u32 %v3987, 7
        %v3989 = vsub.s32 0, %v3988
        %v3990 = vrot.slane %v3890, %v3989
        %v3991 = vlaneseq
        %v3992 = vshrl.u32 %v3991, 7
        %v3993 = vsub.s32 0, %v3992
        %v3994 = vrot.slane %v3898, %v3993
        %v3995 = vlaneseq
        %v3996 = vshrl.u32 %v3995, 7
        %v3997 = vsub.s32 0, %v3996
        %v3998 = vrot.slane %v3900, %v3997
        %v3999 = vlaneseq
        %v4000 = vshrl.u32 %v3999, 7
        %v4001 = vsub.s32 0, %v4000
        %v4002 = vrot.slane %v3883, %v4001
        %v4003 = vlaneseq
        %v4004 = vshrl.u32 %v4003, 7
        %v4005 = vsub.s32 0, %v4004
        %v4006 = vrot.slane %v3897, %v4005
        %v4007 = vlaneseq
        %v4008 = vshrl.u32 %v4007, 7
        %v4009 = vsub.s32 0, %v4008
        %v4010 = vrot.slane %v3899, %v4009
        %v4011 = vlaneseq
        %v4012 = vshrl.u32 %v4011, 7
        %v4013 = vsub.s32 0, %v4012
        %v4014 = vrot.slane %v3901, %v4013
        %v4015 = vlaneseq
        %v4016 = vshrl.u32 %v4015, 7
        %v4017 = vsub.s32 0, %v4016
        %v4018 = vrot.slane %v3925, %v4017
        %v4019 = vlaneseq
        %v4020 = vshrl.u32 %v4019, 7
        %v4021 = vsub.s32 0, %v4020
        %v4022 = vrot.slane %v3939, %v4021
        %v4023 = vlaneseq
        %v4024 = vshrl.u32 %v4023, 7
        %v4025 = vsub.s32 0, %v4024
        %v4026 = vrot.slane %v3947, %v4025
        %v4027 = vlaneseq
        %v4028 = vshrl.u32 %v4027, 7
        %v4029 = vsub.s32 0, %v4028
        %v4030 = vrot.slane %v3949, %v4029
        %v4031 = vlaneseq
        %v4032 = vshrl.u32 %v4031, 7
        %v4033 = vsub.s32 0, %v4032
        %v4034 = vrot.slane %v3932, %v4033
        %v4035 = vlaneseq
        %v4036 = vshrl.u32 %v4035, 7
        %v4037 = vsub.s32 0, %v4036
        %v4038 = vrot.slane %v3946, %v4037
        %v4039 = vlaneseq
        %v4040 = vshrl.u32 %v4039, 7
        %v4041 = vsub.s32 0, %v4040
        %v4042 = vrot.slane %v3948, %v4041
        %v4043 = vlaneseq
        %v4044 = vshrl.u32 %v4043, 7
        %v4045 = vsub.s32 0, %v4044
        %v4046 = vrot.slane %v3950, %v4045
        %4047 = vrot.lane.b32.xlu0 %v3986, 96
        %v4048 = vpop.permute.xlu0 %4047
        %4049 = vrot.lane.b32.xlu0 %v3990, 96
        %v4050 = vpop.permute.xlu0 %4049
        %4051 = vrot.lane.b32.xlu0 %v3994, 96
        %v4052 = vpop.permute.xlu0 %4051
        %4053 = vrot.lane.b32.xlu0 %v3998, 96
        %v4054 = vpop.permute.xlu0 %4053
        %4055 = vrot.lane.b32.xlu0 %v4002, 96
        %v4056 = vpop.permute.xlu0 %4055
        %4057 = vrot.lane.b32.xlu0 %v4006, 96
        %v4058 = vpop.permute.xlu0 %4057
        %4059 = vrot.lane.b32.xlu0 %v4010, 96
        %v4060 = vpop.permute.xlu0 %4059
        %4061 = vrot.lane.b32.xlu0 %v4014, 96
        %v4062 = vpop.permute.xlu0 %4061
        %4063 = vrot.lane.b32.xlu0 %v4018, 96
        %v4064 = vpop.permute.xlu0 %4063
        %4065 = vrot.lane.b32.xlu0 %v4022, 96
        %v4066 = vpop.permute.xlu0 %4065
        %4067 = vrot.lane.b32.xlu0 %v4026, 96
        %v4068 = vpop.permute.xlu0 %4067
        %4069 = vrot.lane.b32.xlu0 %v4030, 96
        %v4070 = vpop.permute.xlu0 %4069
        %4071 = vrot.lane.b32.xlu0 %v4034, 96
        %v4072 = vpop.permute.xlu0 %4071
        %4073 = vrot.lane.b32.xlu0 %v4038, 96
        %v4074 = vpop.permute.xlu0 %4073
        %4075 = vrot.lane.b32.xlu0 %v4042, 96
        %v4076 = vpop.permute.xlu0 %4075
        %4077 = vrot.lane.b32.xlu0 %v4046, 96
        %v4078 = vpop.permute.xlu0 %4077
        %4095 = vst.msk [vmem:[#allocation3 + $0xd] sm:$0x1] %vm1025, %v4048
        %4096 = vst.msk [vmem:[#allocation3 + $0x1d] sm:$0x1] %vm1025, %v4050
        %4097 = vst.msk [vmem:[#allocation3 + $0x2d] sm:$0x1] %vm1025, %v4052
        %4098 = vst.msk [vmem:[#allocation3 + $0x3d] sm:$0x1] %vm1025, %v4054
        %4099 = vst.msk [vmem:[#allocation3 + $0x4d] sm:$0x1] %vm1025, %v4056
        %4100 = vst.msk [vmem:[#allocation3 + $0x5d] sm:$0x1] %vm1025, %v4058
        %4101 = vst.msk [vmem:[#allocation3 + $0x6d] sm:$0x1] %vm1025, %v4060
        %4102 = vst.msk [vmem:[#allocation3 + $0x7d] sm:$0x1] %vm1025, %v4062
        %4103 = vst.msk [vmem:[#allocation3 + $0x8d] sm:$0x1] %vm1025, %v4064
        %4104 = vst.msk [vmem:[#allocation3 + $0x9d] sm:$0x1] %vm1025, %v4066
        %4105 = vst.msk [vmem:[#allocation3 + $0xad] sm:$0x1] %vm1025, %v4068
        %4106 = vst.msk [vmem:[#allocation3 + $0xbd] sm:$0x1] %vm1025, %v4070
        %4107 = vst.msk [vmem:[#allocation3 + $0xcd] sm:$0x1] %vm1025, %v4072
        %4108 = vst.msk [vmem:[#allocation3 + $0xdd] sm:$0x1] %vm1025, %v4074
        %4109 = vst.msk [vmem:[#allocation3 + $0xed] sm:$0x1] %vm1025, %v4076
        %4110 = vst.msk [vmem:[#allocation3 + $0xfd] sm:$0x1] %vm1025, %v4078
        %4111 = vrot.lane.b32.xlu0 %v3986, 64
        %v4112 = vpop.permute.xlu0 %4111
        %4113 = vrot.lane.b32.xlu0 %v3990, 64
        %v4114 = vpop.permute.xlu0 %4113
        %4115 = vrot.lane.b32.xlu0 %v3994, 64
        %v4116 = vpop.permute.xlu0 %4115
        %4117 = vrot.lane.b32.xlu0 %v3998, 64
        %v4118 = vpop.permute.xlu0 %4117
        %4119 = vrot.lane.b32.xlu0 %v4002, 64
        %v4120 = vpop.permute.xlu0 %4119
        %4121 = vrot.lane.b32.xlu0 %v4006, 64
        %v4122 = vpop.permute.xlu0 %4121
        %4123 = vrot.lane.b32.xlu0 %v4010, 64
        %v4124 = vpop.permute.xlu0 %4123
        %4125 = vrot.lane.b32.xlu0 %v4014, 64
        %v4126 = vpop.permute.xlu0 %4125
        %4127 = vrot.lane.b32.xlu0 %v4018, 64
        %v4128 = vpop.permute.xlu0 %4127
        %4129 = vrot.lane.b32.xlu0 %v4022, 64
        %v4130 = vpop.permute.xlu0 %4129
        %4131 = vrot.lane.b32.xlu0 %v4026, 64
        %v4132 = vpop.permute.xlu0 %4131
        %4133 = vrot.lane.b32.xlu0 %v4030, 64
        %v4134 = vpop.permute.xlu0 %4133
        %4135 = vrot.lane.b32.xlu0 %v4034, 64
        %v4136 = vpop.permute.xlu0 %4135
        %4137 = vrot.lane.b32.xlu0 %v4038, 64
        %v4138 = vpop.permute.xlu0 %4137
        %4139 = vrot.lane.b32.xlu0 %v4042, 64
        %v4140 = vpop.permute.xlu0 %4139
        %4141 = vrot.lane.b32.xlu0 %v4046, 64
        %v4142 = vpop.permute.xlu0 %4141
        %4159 = vst.msk [vmem:[#allocation3 + $0xe] sm:$0x1] %vm1025, %v4112
        %4160 = vst.msk [vmem:[#allocation3 + $0x1e] sm:$0x1] %vm1025, %v4114
        %4161 = vst.msk [vmem:[#allocation3 + $0x2e] sm:$0x1] %vm1025, %v4116
        %4162 = vst.msk [vmem:[#allocation3 + $0x3e] sm:$0x1] %vm1025, %v4118
        %4163 = vst.msk [vmem:[#allocation3 + $0x4e] sm:$0x1] %vm1025, %v4120
        %4164 = vst.msk [vmem:[#allocation3 + $0x5e] sm:$0x1] %vm1025, %v4122
        %4165 = vst.msk [vmem:[#allocation3 + $0x6e] sm:$0x1] %vm1025, %v4124
        %4166 = vst.msk [vmem:[#allocation3 + $0x7e] sm:$0x1] %vm1025, %v4126
        %4167 = vst.msk [vmem:[#allocation3 + $0x8e] sm:$0x1] %vm1025, %v4128
        %4168 = vst.msk [vmem:[#allocation3 + $0x9e] sm:$0x1] %vm1025, %v4130
        %4169 = vst.msk [vmem:[#allocation3 + $0xae] sm:$0x1] %vm1025, %v4132
        %4170 = vst.msk [vmem:[#allocation3 + $0xbe] sm:$0x1] %vm1025, %v4134
        %4171 = vst.msk [vmem:[#allocation3 + $0xce] sm:$0x1] %vm1025, %v4136
        %4172 = vst.msk [vmem:[#allocation3 + $0xde] sm:$0x1] %vm1025, %v4138
        %4173 = vst.msk [vmem:[#allocation3 + $0xee] sm:$0x1] %vm1025, %v4140
        %4174 = vst.msk [vmem:[#allocation3 + $0xfe] sm:$0x1] %vm1025, %v4142
        %4175 = vrot.lane.b32.xlu0 %v3986, 32
        %v4176 = vpop.permute.xlu0 %4175
        %4177 = vrot.lane.b32.xlu0 %v3990, 32
        %v4178 = vpop.permute.xlu0 %4177
        %4179 = vrot.lane.b32.xlu0 %v3994, 32
        %v4180 = vpop.permute.xlu0 %4179
        %4181 = vrot.lane.b32.xlu0 %v3998, 32
        %v4182 = vpop.permute.xlu0 %4181
        %4183 = vrot.lane.b32.xlu0 %v4002, 32
        %v4184 = vpop.permute.xlu0 %4183
        %4185 = vrot.lane.b32.xlu0 %v4006, 32
        %v4186 = vpop.permute.xlu0 %4185
        %4187 = vrot.lane.b32.xlu0 %v4010, 32
        %v4188 = vpop.permute.xlu0 %4187
        %4189 = vrot.lane.b32.xlu0 %v4014, 32
        %v4190 = vpop.permute.xlu0 %4189
        %4191 = vrot.lane.b32.xlu0 %v4018, 32
        %v4192 = vpop.permute.xlu0 %4191
        %4193 = vrot.lane.b32.xlu0 %v4022, 32
        %v4194 = vpop.permute.xlu0 %4193
        %4195 = vrot.lane.b32.xlu0 %v4026, 32
        %v4196 = vpop.permute.xlu0 %4195
        %4197 = vrot.lane.b32.xlu0 %v4030, 32
        %v4198 = vpop.permute.xlu0 %4197
        %4199 = vrot.lane.b32.xlu0 %v4034, 32
        %v4200 = vpop.permute.xlu0 %4199
        %4201 = vrot.lane.b32.xlu0 %v4038, 32
        %v4202 = vpop.permute.xlu0 %4201
        %4203 = vrot.lane.b32.xlu0 %v4042, 32
        %v4204 = vpop.permute.xlu0 %4203
        %4205 = vrot.lane.b32.xlu0 %v4046, 32
        %v4206 = vpop.permute.xlu0 %4205
        %4223 = vst.msk [vmem:[#allocation3 + $0xf] sm:$0x1] %vm1025, %v4176
        %4224 = vst.msk [vmem:[#allocation3 + $0x1f] sm:$0x1] %vm1025, %v4178
        %4225 = vst.msk [vmem:[#allocation3 + $0x2f] sm:$0x1] %vm1025, %v4180
        %4226 = vst.msk [vmem:[#allocation3 + $0x3f] sm:$0x1] %vm1025, %v4182
        %4227 = vst.msk [vmem:[#allocation3 + $0x4f] sm:$0x1] %vm1025, %v4184
        %4228 = vst.msk [vmem:[#allocation3 + $0x5f] sm:$0x1] %vm1025, %v4186
        %4229 = vst.msk [vmem:[#allocation3 + $0x6f] sm:$0x1] %vm1025, %v4188
        %4230 = vst.msk [vmem:[#allocation3 + $0x7f] sm:$0x1] %vm1025, %v4190
        %4231 = vst.msk [vmem:[#allocation3 + $0x8f] sm:$0x1] %vm1025, %v4192
        %4232 = vst.msk [vmem:[#allocation3 + $0x9f] sm:$0x1] %vm1025, %v4194
        %4233 = vst.msk [vmem:[#allocation3 + $0xaf] sm:$0x1] %vm1025, %v4196
        %4234 = vst.msk [vmem:[#allocation3 + $0xbf] sm:$0x1] %vm1025, %v4198
        %4235 = vst.msk [vmem:[#allocation3 + $0xcf] sm:$0x1] %vm1025, %v4200
        %4236 = vst.msk [vmem:[#allocation3 + $0xdf] sm:$0x1] %vm1025, %v4202
        %4237 = vst.msk [vmem:[#allocation3 + $0xef] sm:$0x1] %vm1025, %v4204
        %4238 = vst.msk [vmem:[#allocation3 + $0xff] sm:$0x1] %vm1025, %v4206
        %v4239 = vld [vmem:[#allocation3] sm:$0xff]
        %v4240 = vld [vmem:[#allocation3 + $0x8] sm:$0xff]
        %v4241 = vld [vmem:[#allocation3 + $0x10] sm:$0xff]
        %v4242 = vld [vmem:[#allocation3 + $0x18] sm:$0xff]
        %v4243 = vld [vmem:[#allocation3 + $0x20] sm:$0xff]
        %v4244 = vld [vmem:[#allocation3 + $0x28] sm:$0xff]
        %v4245 = vld [vmem:[#allocation3 + $0x30] sm:$0xff]
        %v4246 = vld [vmem:[#allocation3 + $0x38] sm:$0xff]
        %v4247 = vld [vmem:[#allocation3 + $0x40] sm:$0xff]
        %v4248 = vld [vmem:[#allocation3 + $0x48] sm:$0xff]
        %v4249 = vld [vmem:[#allocation3 + $0x50] sm:$0xff]
        %v4250 = vld [vmem:[#allocation3 + $0x58] sm:$0xff]
        %v4251 = vld [vmem:[#allocation3 + $0x60] sm:$0xff]
        %v4252 = vld [vmem:[#allocation3 + $0x68] sm:$0xff]
        %v4253 = vld [vmem:[#allocation3 + $0x70] sm:$0xff]
        %v4254 = vld [vmem:[#allocation3 + $0x78] sm:$0xff]
        %v4255 = vld [vmem:[#allocation3 + $0x80] sm:$0xff]
        %v4256 = vld [vmem:[#allocation3 + $0x88] sm:$0xff]
        %v4257 = vld [vmem:[#allocation3 + $0x90] sm:$0xff]
        %v4258 = vld [vmem:[#allocation3 + $0x98] sm:$0xff]
        %v4259 = vld [vmem:[#allocation3 + $0xa0] sm:$0xff]
        %v4260 = vld [vmem:[#allocation3 + $0xa8] sm:$0xff]
        %v4261 = vld [vmem:[#allocation3 + $0xb0] sm:$0xff]
        %v4262 = vld [vmem:[#allocation3 + $0xb8] sm:$0xff]
        %v4263 = vld [vmem:[#allocation3 + $0xc0] sm:$0xff]
        %v4264 = vld [vmem:[#allocation3 + $0xc8] sm:$0xff]
        %v4265 = vld [vmem:[#allocation3 + $0xd0] sm:$0xff]
        %v4266 = vld [vmem:[#allocation3 + $0xd8] sm:$0xff]
        %v4267 = vld [vmem:[#allocation3 + $0xe0] sm:$0xff]
        %v4268 = vld [vmem:[#allocation3 + $0xe8] sm:$0xff]
        %v4269 = vld [vmem:[#allocation3 + $0xf0] sm:$0xff]
        %v4270 = vld [vmem:[#allocation3 + $0xf8] sm:$0xff]
        %v4271 = vld [vmem:[%s7] sm:$0xff]
        %v4272 = vld [vmem:[%s7 + $0x8] sm:$0xff]
        %v4273 = vld [vmem:[%s7 + $0x10] sm:$0xff]
        %v4274 = vld [vmem:[%s7 + $0x18] sm:$0xff]
        %v4276 = vsel %vm394, %v4239, 0
        %v4279 = vsel %vm394, %v4240, 0
        %v4282 = vsel %vm394, %v4241, 0
        %v4285 = vsel %vm394, %v4242, 0
        %v4288 = vsel %vm394, %v4243, 0
        %v4291 = vsel %vm394, %v4244, 0
        %v4294 = vsel %vm394, %v4245, 0
        %v4297 = vsel %vm394, %v4246, 0
        %v4300 = vsel %vm394, %v4247, 0
        %v4303 = vsel %vm394, %v4248, 0
        %v4306 = vsel %vm394, %v4249, 0
        %v4309 = vsel %vm394, %v4250, 0
        %v4312 = vsel %vm394, %v4251, 0
        %v4315 = vsel %vm394, %v4252, 0
        %v4318 = vsel %vm394, %v4253, 0
        %v4321 = vsel %vm394, %v4254, 0
        %v4324 = vsel %vm394, %v4255, 0
        %v4327 = vsel %vm394, %v4256, 0
        %v4330 = vsel %vm394, %v4257, 0
        %v4333 = vsel %vm394, %v4258, 0
        %v4336 = vsel %vm394, %v4259, 0
        %v4339 = vsel %vm394, %v4260, 0
        %v4342 = vsel %vm394, %v4261, 0
        %v4345 = vsel %vm394, %v4262, 0
        %v4348 = vsel %vm394, %v4263, 0
        %v4351 = vsel %vm394, %v4264, 0
        %v4354 = vsel %vm394, %v4265, 0
        %v4357 = vsel %vm394, %v4266, 0
        %v4360 = vsel %vm394, %v4267, 0
        %v4363 = vsel %vm394, %v4268, 0
        %v4366 = vsel %vm394, %v4269, 0
        %v4369 = vsel %vm394, %v4270, 0
        %4371 = vmatprep.subr.mxu0 0.0
        %4372 = vmatpush1.msra.mxu0 %v4271
        %4373 = vmatprep.subr.mxu0 0.0
        %4374 = vmatpush1.msra.mxu0 %v4272
        %4375 = vmatprep.subr.mxu0 0.0
        %4376 = vmatpush1.msra.mxu0 %v4273
        %4377 = vmatprep.subr.mxu0 0.0
        %4378 = vmatpush1.msra.mxu0 %v4274
        %4379 = vmatprep.subr.mxu0 0.0
        %4380 = vmatpush1.msra.mxu0 0.0
        %4381 = vmatprep.subr.mxu0 0.0
        %4382 = vmatpush1.msra.mxu0 0.0
        %4383 = vmatprep.subr.mxu0 0.0
        %4384 = vmatpush1.msra.mxu0 0.0
        %4385 = vmatprep.subr.mxu0 0.0
        %4386 = vmatpush1.msra.mxu0 0.0
        %4387 = vmatprep.subr.mxu0 0.0
        %4388 = vmatpush1.msra.mxu0 0.0
        %4389 = vmatprep.subr.mxu0 0.0
        %4390 = vmatpush1.msra.mxu0 0.0
        %4391 = vmatprep.subr.mxu0 0.0
        %4392 = vmatpush1.msra.mxu0 0.0
        %4393 = vmatprep.subr.mxu0 0.0
        %4394 = vmatpush1.msra.mxu0 0.0
        %4395 = vmatprep.subr.mxu0 0.0
        %4396 = vmatpush1.msra.mxu0 0.0
        %4397 = vmatprep.subr.mxu0 0.0
        %4398 = vmatpush1.msra.mxu0 0.0
        %4399 = vmatprep.subr.mxu0 0.0
        %4400 = vmatpush1.msra.mxu0 0.0
        %4401 = vmatprep.subr.mxu0 0.0
        %4402 = vmatpush1.msra.mxu0 0.0
        %4403 = vmatprep.subr.mxu0 0.0
        %4404 = vmatpush1.msra.mxu0 0.0
        %4405 = vmatprep.subr.mxu0 0.0
        %4406 = vmatpush1.msra.mxu0 0.0
        %4407 = vmatprep.subr.mxu0 0.0
        %4408 = vmatpush1.msra.mxu0 0.0
        %4409 = vmatprep.subr.mxu0 0.0
        %4410 = vmatpush1.msra.mxu0 0.0
        %4411 = vmatprep.subr.mxu0 0.0
        %4412 = vmatpush1.msra.mxu0 0.0
        %4413 = vmatprep.subr.mxu0 0.0
        %4414 = vmatpush1.msra.mxu0 0.0
        %4415 = vmatprep.subr.mxu0 0.0
        %4416 = vmatpush1.msra.mxu0 0.0
        %4417 = vmatprep.subr.mxu0 0.0
        %4418 = vmatpush1.msra.mxu0 0.0
        %4419 = vmatprep.subr.mxu0 0.0
        %4420 = vmatpush1.msra.mxu0 0.0
        %4421 = vmatprep.subr.mxu0 0.0
        %4422 = vmatpush1.msra.mxu0 0.0
        %4423 = vmatprep.subr.mxu0 0.0
        %4424 = vmatpush1.msra.mxu0 0.0
        %4425 = vmatprep.subr.mxu0 0.0
        %4426 = vmatpush1.msra.mxu0 0.0
        %4427 = vmatprep.subr.mxu0 0.0
        %4428 = vmatpush1.msra.mxu0 0.0
        %4429 = vmatprep.subr.mxu0 0.0
        %4430 = vmatpush1.msra.mxu0 0.0
        %4431 = vmatprep.subr.mxu0 0.0
        %4432 = vmatpush1.msra.mxu0 0.0
        %4433 = vmatprep.subr.mxu0 0.0
        %4434 = vmatpush1.msra.mxu0 0.0
        %4435 = vmatprep.mubr.f32.mxu0 0.0
        %4436 = vmatmul.mubr.f32.gmra.mrb[0].mxu0 %v4276
        %v4437 = vpop.f32.mrb[0].mxu0
        %v4438 = vadd.f32 0.0, %v4437
        %v4439 = vpop.f32.mrb[0].mxu0
        %4440 = vmatprep.mubr.f32.mxu0 0.0
        %4441 = vmatmul.mubr.f32.gmra.mrb[0].mxu0 %v4279
        %v4442 = vpop.f32.mrb[0].mxu0
        %v4443 = vadd.f32 0.0, %v4442
        %v4444 = vpop.f32.mrb[0].mxu0
        %4445 = vmatprep.mubr.f32.mxu0 0.0
        %4446 = vmatmul.mubr.f32.gmra.mrb[0].mxu0 %v4282
        %v4447 = vpop.f32.mrb[0].mxu0
        %v4448 = vadd.f32 0.0, %v4447
        %v4449 = vpop.f32.mrb[0].mxu0
        %4450 = vmatprep.mubr.f32.mxu0 0.0
        %4451 = vmatmul.mubr.f32.gmra.mrb[0].mxu0 %v4285
        %v4452 = vpop.f32.mrb[0].mxu0
        %v4453 = vadd.f32 0.0, %v4452
        %v4454 = vpop.f32.mrb[0].mxu0
        %4455 = vmatprep.mubr.f32.mxu0 0.0
        %4456 = vmatmul.mubr.f32.gmra.mrb[0].mxu0 %v4288
        %v4457 = vpop.f32.mrb[0].mxu0
        %v4458 = vadd.f32 0.0, %v4457
        %v4459 = vpop.f32.mrb[0].mxu0
        %4460 = vmatprep.mubr.f32.mxu0 0.0
        %4461 = vmatmul.mubr.f32.gmra.mrb[0].mxu0 %v4291
        %v4462 = vpop.f32.mrb[0].mxu0
        %v4463 = vadd.f32 0.0, %v4462
        %v4464 = vpop.f32.mrb[0].mxu0
        %4465 = vmatprep.mubr.f32.mxu0 0.0
        %4466 = vmatmul.mubr.f32.gmra.mrb[0].mxu0 %v4294
        %v4467 = vpop.f32.mrb[0].mxu0
        %v4468 = vadd.f32 0.0, %v4467
        %v4469 = vpop.f32.mrb[0].mxu0
        %4470 = vmatprep.mubr.f32.mxu0 0.0
        %4471 = vmatmul.mubr.f32.gmra.mrb[0].mxu0 %v4297
        %v4472 = vpop.f32.mrb[0].mxu0
        %v4473 = vadd.f32 0.0, %v4472
        %v4474 = vpop.f32.mrb[0].mxu0
        %4475 = vmatprep.mubr.f32.mxu0 0.0
        %4476 = vmatmul.mubr.f32.gmra.mrb[0].mxu0 %v4300
        %v4477 = vpop.f32.mrb[0].mxu0
        %v4478 = vadd.f32 0.0, %v4477
        %v4479 = vpop.f32.mrb[0].mxu0
        %4480 = vmatprep.mubr.f32.mxu0 0.0
        %4481 = vmatmul.mubr.f32.gmra.mrb[0].mxu0 %v4303
        %v4482 = vpop.f32.mrb[0].mxu0
        %v4483 = vadd.f32 0.0, %v4482
        %v4484 = vpop.f32.mrb[0].mxu0
        %4485 = vmatprep.mubr.f32.mxu0 0.0
        %4486 = vmatmul.mubr.f32.gmra.mrb[0].mxu0 %v4306
        %v4487 = vpop.f32.mrb[0].mxu0
        %v4488 = vadd.f32 0.0, %v4487
        %v4489 = vpop.f32.mrb[0].mxu0
        %4490 = vmatprep.mubr.f32.mxu0 0.0
        %4491 = vmatmul.mubr.f32.gmra.mrb[0].mxu0 %v4309
        %v4492 = vpop.f32.mrb[0].mxu0
        %v4493 = vadd.f32 0.0, %v4492
        %v4494 = vpop.f32.mrb[0].mxu0
        %4495 = vmatprep.mubr.f32.mxu0 0.0
        %4496 = vmatmul.mubr.f32.gmra.mrb[0].mxu0 %v4312
        %v4497 = vpop.f32.mrb[0].mxu0
        %v4498 = vadd.f32 0.0, %v4497
        %v4499 = vpop.f32.mrb[0].mxu0
        %4500 = vmatprep.mubr.f32.mxu0 0.0
        %4501 = vmatmul.mubr.f32.gmra.mrb[0].mxu0 %v4315
        %v4502 = vpop.f32.mrb[0].mxu0
        %v4503 = vadd.f32 0.0, %v4502
        %v4504 = vpop.f32.mrb[0].mxu0
        %4505 = vmatprep.mubr.f32.mxu0 0.0
        %4506 = vmatmul.mubr.f32.gmra.mrb[0].mxu0 %v4318
        %v4507 = vpop.f32.mrb[0].mxu0
        %v4508 = vadd.f32 0.0, %v4507
        %v4509 = vpop.f32.mrb[0].mxu0
        %4510 = vmatprep.mubr.f32.mxu0 0.0
        %4511 = vmatmul.mubr.f32.gmra.mrb[0].mxu0 %v4321
        %v4512 = vpop.f32.mrb[0].mxu0
        %v4513 = vadd.f32 0.0, %v4512
        %v4514 = vpop.f32.mrb[0].mxu0
        %4515 = vmatprep.mubr.f32.mxu0 0.0
        %4516 = vmatmul.mubr.f32.gmra.mrb[0].mxu0 %v4324
        %v4517 = vpop.f32.mrb[0].mxu0
        %v4518 = vadd.f32 0.0, %v4517
        %v4519 = vpop.f32.mrb[0].mxu0
        %4520 = vmatprep.mubr.f32.mxu0 0.0
        %4521 = vmatmul.mubr.f32.gmra.mrb[0].mxu0 %v4327
        %v4522 = vpop.f32.mrb[0].mxu0
        %v4523 = vadd.f32 0.0, %v4522
        %v4524 = vpop.f32.mrb[0].mxu0
        %4525 = vmatprep.mubr.f32.mxu0 0.0
        %4526 = vmatmul.mubr.f32.gmra.mrb[0].mxu0 %v4330
        %v4527 = vpop.f32.mrb[0].mxu0
        %v4528 = vadd.f32 0.0, %v4527
        %v4529 = vpop.f32.mrb[0].mxu0
        %4530 = vmatprep.mubr.f32.mxu0 0.0
        %4531 = vmatmul.mubr.f32.gmra.mrb[0].mxu0 %v4333
        %v4532 = vpop.f32.mrb[0].mxu0
        %v4533 = vadd.f32 0.0, %v4532
        %v4534 = vpop.f32.mrb[0].mxu0
        %4535 = vmatprep.mubr.f32.mxu0 0.0
        %4536 = vmatmul.mubr.f32.gmra.mrb[0].mxu0 %v4336
        %v4537 = vpop.f32.mrb[0].mxu0
        %v4538 = vadd.f32 0.0, %v4537
        %v4539 = vpop.f32.mrb[0].mxu0
        %4540 = vmatprep.mubr.f32.mxu0 0.0
        %4541 = vmatmul.mubr.f32.gmra.mrb[0].mxu0 %v4339
        %v4542 = vpop.f32.mrb[0].mxu0
        %v4543 = vadd.f32 0.0, %v4542
        %v4544 = vpop.f32.mrb[0].mxu0
        %4545 = vmatprep.mubr.f32.mxu0 0.0
        %4546 = vmatmul.mubr.f32.gmra.mrb[0].mxu0 %v4342
        %v4547 = vpop.f32.mrb[0].mxu0
        %v4548 = vadd.f32 0.0, %v4547
        %v4549 = vpop.f32.mrb[0].mxu0
        %4550 = vmatprep.mubr.f32.mxu0 0.0
        %4551 = vmatmul.mubr.f32.gmra.mrb[0].mxu0 %v4345
        %v4552 = vpop.f32.mrb[0].mxu0
        %v4553 = vadd.f32 0.0, %v4552
        %v4554 = vpop.f32.mrb[0].mxu0
        %4555 = vmatprep.mubr.f32.mxu0 0.0
        %4556 = vmatmul.mubr.f32.gmra.mrb[0].mxu0 %v4348
        %v4557 = vpop.f32.mrb[0].mxu0
        %v4558 = vadd.f32 0.0, %v4557
        %v4559 = vpop.f32.mrb[0].mxu0
        %4560 = vmatprep.mubr.f32.mxu0 0.0
        %4561 = vmatmul.mubr.f32.gmra.mrb[0].mxu0 %v4351
        %v4562 = vpop.f32.mrb[0].mxu0
        %v4563 = vadd.f32 0.0, %v4562
        %v4564 = vpop.f32.mrb[0].mxu0
        %4565 = vmatprep.mubr.f32.mxu0 0.0
        %4566 = vmatmul.mubr.f32.gmra.mrb[0].mxu0 %v4354
        %v4567 = vpop.f32.mrb[0].mxu0
        %v4568 = vadd.f32 0.0, %v4567
        %v4569 = vpop.f32.mrb[0].mxu0
        %4570 = vmatprep.mubr.f32.mxu0 0.0
        %4571 = vmatmul.mubr.f32.gmra.mrb[0].mxu0 %v4357
        %v4572 = vpop.f32.mrb[0].mxu0
        %v4573 = vadd.f32 0.0, %v4572
        %v4574 = vpop.f32.mrb[0].mxu0
        %4575 = vmatprep.mubr.f32.mxu0 0.0
        %4576 = vmatmul.mubr.f32.gmra.mrb[0].mxu0 %v4360
        %v4577 = vpop.f32.mrb[0].mxu0
        %v4578 = vadd.f32 0.0, %v4577
        %v4579 = vpop.f32.mrb[0].mxu0
        %4580 = vmatprep.mubr.f32.mxu0 0.0
        %4581 = vmatmul.mubr.f32.gmra.mrb[0].mxu0 %v4363
        %v4582 = vpop.f32.mrb[0].mxu0
        %v4583 = vadd.f32 0.0, %v4582
        %v4584 = vpop.f32.mrb[0].mxu0
        %4585 = vmatprep.mubr.f32.mxu0 0.0
        %4586 = vmatmul.mubr.f32.gmra.mrb[0].mxu0 %v4366
        %v4587 = vpop.f32.mrb[0].mxu0
        %v4588 = vadd.f32 0.0, %v4587
        %v4589 = vpop.f32.mrb[0].mxu0
        %4590 = vmatprep.mubr.f32.mxu0 0.0
        %4591 = vmatmul.mubr.f32.gmra.mrb[0].mxu0 %v4369
        %v4592 = vpop.f32.mrb[0].mxu0
        %v4593 = vadd.f32 0.0, %v4592
        %v4594 = vpop.f32.mrb[0].mxu0
        %4595 = vdwg.mxu0
        %v4596 = vld [vmem:[%s8] sm:$0x1]
        %v4598 = vlaneseq
        %v4599 = vshrl.u32 %v4598, 7
        %v4600 = vsub.s32 0, %v4599
        %v4601 = vrot.slane %v4596, %v4600
        %v4603 = vmul.f32 %v4438, %v4601
        %v4604 = vmul.f32 %v4443, %v4601
        %v4605 = vmul.f32 %v4448, %v4601
        %v4606 = vmul.f32 %v4453, %v4601
        %v4607 = vmul.f32 %v4458, %v4601
        %v4608 = vmul.f32 %v4463, %v4601
        %v4609 = vmul.f32 %v4468, %v4601
        %v4610 = vmul.f32 %v4473, %v4601
        %v4611 = vmul.f32 %v4478, %v4601
        %v4612 = vmul.f32 %v4483, %v4601
        %v4613 = vmul.f32 %v4488, %v4601
        %v4614 = vmul.f32 %v4493, %v4601
        %v4615 = vmul.f32 %v4498, %v4601
        %v4616 = vmul.f32 %v4503, %v4601
        %v4617 = vmul.f32 %v4508, %v4601
        %v4618 = vmul.f32 %v4513, %v4601
        %v4619 = vmul.f32 %v4518, %v4601
        %v4620 = vmul.f32 %v4523, %v4601
        %v4621 = vmul.f32 %v4528, %v4601
        %v4622 = vmul.f32 %v4533, %v4601
        %v4623 = vmul.f32 %v4538, %v4601
        %v4624 = vmul.f32 %v4543, %v4601
        %v4625 = vmul.f32 %v4548, %v4601
        %v4626 = vmul.f32 %v4553, %v4601
        %v4627 = vmul.f32 %v4558, %v4601
        %v4628 = vmul.f32 %v4563, %v4601
        %v4629 = vmul.f32 %v4568, %v4601
        %v4630 = vmul.f32 %v4573, %v4601
        %v4631 = vmul.f32 %v4578, %v4601
        %v4632 = vmul.f32 %v4583, %v4601
        %v4633 = vmul.f32 %v4588, %v4601
        %v4634 = vmul.f32 %v4593, %v4601
        %v4635 = vld [vmem:[%s9] sm:$0x1]
        %v4637 = vlaneseq
        %v4638 = vshrl.u32 %v4637, 7
        %v4639 = vsub.s32 0, %v4638
        %v4640 = vrot.slane %v4635, %v4639
        %v4642 = vadd.f32 %v4603, %v4640
        %v4643 = vadd.f32 %v4604, %v4640
        %v4644 = vadd.f32 %v4605, %v4640
        %v4645 = vadd.f32 %v4606, %v4640
        %v4646 = vadd.f32 %v4607, %v4640
        %v4647 = vadd.f32 %v4608, %v4640
        %v4648 = vadd.f32 %v4609, %v4640
        %v4649 = vadd.f32 %v4610, %v4640
        %v4650 = vadd.f32 %v4611, %v4640
        %v4651 = vadd.f32 %v4612, %v4640
        %v4652 = vadd.f32 %v4613, %v4640
        %v4653 = vadd.f32 %v4614, %v4640
        %v4654 = vadd.f32 %v4615, %v4640
        %v4655 = vadd.f32 %v4616, %v4640
        %v4656 = vadd.f32 %v4617, %v4640
        %v4657 = vadd.f32 %v4618, %v4640
        %v4658 = vadd.f32 %v4619, %v4640
        %v4659 = vadd.f32 %v4620, %v4640
        %v4660 = vadd.f32 %v4621, %v4640
        %v4661 = vadd.f32 %v4622, %v4640
        %v4662 = vadd.f32 %v4623, %v4640
        %v4663 = vadd.f32 %v4624, %v4640
        %v4664 = vadd.f32 %v4625, %v4640
        %v4665 = vadd.f32 %v4626, %v4640
        %v4666 = vadd.f32 %v4627, %v4640
        %v4667 = vadd.f32 %v4628, %v4640
        %v4668 = vadd.f32 %v4629, %v4640
        %v4669 = vadd.f32 %v4630, %v4640
        %v4670 = vadd.f32 %v4631, %v4640
        %v4671 = vadd.f32 %v4632, %v4640
        %v4672 = vadd.f32 %v4633, %v4640
        %v4673 = vadd.f32 %v4634, %v4640
        %v4674 = vadd.f32 %v4642, %v358
        %v4675 = vadd.f32 %v4643, %v359
        %v4676 = vadd.f32 %v4644, %v360
        %v4677 = vadd.f32 %v4645, %v361
        %v4678 = vadd.f32 %v4646, %v362
        %v4679 = vadd.f32 %v4647, %v363
        %v4680 = vadd.f32 %v4648, %v364
        %v4681 = vadd.f32 %v4649, %v365
        %v4682 = vadd.f32 %v4650, %v366
        %v4683 = vadd.f32 %v4651, %v367
        %v4684 = vadd.f32 %v4652, %v368
        %v4685 = vadd.f32 %v4653, %v369
        %v4686 = vadd.f32 %v4654, %v370
        %v4687 = vadd.f32 %v4655, %v371
        %v4688 = vadd.f32 %v4656, %v372
        %v4689 = vadd.f32 %v4657, %v373
        %v4690 = vadd.f32 %v4658, %v374
        %v4691 = vadd.f32 %v4659, %v375
        %v4692 = vadd.f32 %v4660, %v376
        %v4693 = vadd.f32 %v4661, %v377
        %v4694 = vadd.f32 %v4662, %v378
        %v4695 = vadd.f32 %v4663, %v379
        %v4696 = vadd.f32 %v4664, %v380
        %v4697 = vadd.f32 %v4665, %v381
        %v4698 = vadd.f32 %v4666, %v382
        %v4699 = vadd.f32 %v4667, %v383
        %v4700 = vadd.f32 %v4668, %v384
        %v4701 = vadd.f32 %v4669, %v385
        %v4702 = vadd.f32 %v4670, %v386
        %v4703 = vadd.f32 %v4671, %v387
        %v4704 = vadd.f32 %v4672, %v388
        %v4705 = vadd.f32 %v4673, %v389
        %v4706 = vmax.f32 %v4674, 0.0
        %v4707 = vmax.f32 %v4675, 0.0
        %v4708 = vmax.f32 %v4676, 0.0
        %v4709 = vmax.f32 %v4677, 0.0
        %v4710 = vmax.f32 %v4678, 0.0
        %v4711 = vmax.f32 %v4679, 0.0
        %v4712 = vmax.f32 %v4680, 0.0
        %v4713 = vmax.f32 %v4681, 0.0
        %v4714 = vmax.f32 %v4682, 0.0
        %v4715 = vmax.f32 %v4683, 0.0
        %v4716 = vmax.f32 %v4684, 0.0
        %v4717 = vmax.f32 %v4685, 0.0
        %v4718 = vmax.f32 %v4686, 0.0
        %v4719 = vmax.f32 %v4687, 0.0
        %v4720 = vmax.f32 %v4688, 0.0
        %v4721 = vmax.f32 %v4689, 0.0
        %v4722 = vmax.f32 %v4690, 0.0
        %v4723 = vmax.f32 %v4691, 0.0
        %v4724 = vmax.f32 %v4692, 0.0
        %v4725 = vmax.f32 %v4693, 0.0
        %v4726 = vmax.f32 %v4694, 0.0
        %v4727 = vmax.f32 %v4695, 0.0
        %v4728 = vmax.f32 %v4696, 0.0
        %v4729 = vmax.f32 %v4697, 0.0
        %v4730 = vmax.f32 %v4698, 0.0
        %v4731 = vmax.f32 %v4699, 0.0
        %v4732 = vmax.f32 %v4700, 0.0
        %v4733 = vmax.f32 %v4701, 0.0
        %v4734 = vmax.f32 %v4702, 0.0
        %v4735 = vmax.f32 %v4703, 0.0
        %v4736 = vmax.f32 %v4704, 0.0
        %v4737 = vmax.f32 %v4705, 0.0
        %v4754 = vrot.slane %v4708, 7
        %v4755 = vsel %vm879, %v4754, %v4706
        %v4756 = vrot.slane %v4710, 6
        %v4757 = vsel %vm861, %v4756, %v4755
        %v4758 = vrot.slane %v4712, 5
        %v4759 = vsel %vm864, %v4758, %v4757
        %v4760 = vrot.slane %v4714, 4
        %v4761 = vsel %vm867, %v4760, %v4759
        %v4762 = vrot.slane %v4716, 3
        %v4763 = vsel %vm870, %v4762, %v4761
        %v4764 = vrot.slane %v4718, 2
        %v4765 = vsel %vm873, %v4764, %v4763
        %v4766 = vrot.slane %v4720, 1
        %v4767 = vsel %vm876, %v4766, %v4765
        %v4768 = vrot.slane %v4724, 7
        %v4769 = vsel %vm879, %v4768, %v4722
        %v4770 = vrot.slane %v4726, 6
        %v4771 = vsel %vm861, %v4770, %v4769
        %v4772 = vrot.slane %v4728, 5
        %v4773 = vsel %vm864, %v4772, %v4771
        %v4774 = vrot.slane %v4730, 4
        %v4775 = vsel %vm867, %v4774, %v4773
        %v4776 = vrot.slane %v4732, 3
        %v4777 = vsel %vm870, %v4776, %v4775
        %v4778 = vrot.slane %v4734, 2
        %v4779 = vsel %vm873, %v4778, %v4777
        %v4780 = vrot.slane %v4736, 1
        %v4781 = vsel %vm876, %v4780, %v4779
        %4784 = vst.msk [vmem:[%s352] sm:$0xff] %vm394, %v4767
        %4785 = vst.msk [vmem:[%s352 + $0x20] sm:$0xff] %vm394, %v4781
        %v4786 = vrot.slane %v4706, 1
        %v4787 = vsel %vm879, %v4708, %v4786
        %v4788 = vrot.slane %v4710, 7
        %v4789 = vsel %vm861, %v4788, %v4787
        %v4790 = vrot.slane %v4712, 6
        %v4791 = vsel %vm864, %v4790, %v4789
        %v4792 = vrot.slane %v4714, 5
        %v4793 = vsel %vm867, %v4792, %v4791
        %v4794 = vrot.slane %v4716, 4
        %v4795 = vsel %vm870, %v4794, %v4793
        %v4796 = vrot.slane %v4718, 3
        %v4797 = vsel %vm873, %v4796, %v4795
        %v4798 = vrot.slane %v4720, 2
        %v4799 = vsel %vm876, %v4798, %v4797
        %v4800 = vrot.slane %v4722, 1
        %v4801 = vsel %vm879, %v4724, %v4800
        %v4802 = vrot.slane %v4726, 7
        %v4803 = vsel %vm861, %v4802, %v4801
        %v4804 = vrot.slane %v4728, 6
        %v4805 = vsel %vm864, %v4804, %v4803
        %v4806 = vrot.slane %v4730, 5
        %v4807 = vsel %vm867, %v4806, %v4805
        %v4808 = vrot.slane %v4732, 4
        %v4809 = vsel %vm870, %v4808, %v4807
        %v4810 = vrot.slane %v4734, 3
        %v4811 = vsel %vm873, %v4810, %v4809
        %v4812 = vrot.slane %v4736, 2
        %v4813 = vsel %vm876, %v4812, %v4811
        %4814 = vrot.lane.b32.xlu0 %v4799, 32
        %v4815 = vpop.permute.xlu0 %4814
        %4816 = vrot.lane.b32.xlu0 %v4813, 32
        %v4817 = vpop.permute.xlu0 %4816
        %4820 = vst.msk [vmem:[%s352] sm:$0xff] %vm904, %v4815
        %4821 = vst.msk [vmem:[%s352 + $0x20] sm:$0xff] %vm904, %v4817
        %v4822 = vrot.slane %v4706, 2
        %v4823 = vrot.slane %v4708, 1
        %v4824 = vsel %vm879, %v4823, %v4822
        %v4825 = vsel %vm861, %v4710, %v4824
        %v4826 = vrot.slane %v4712, 7
        %v4827 = vsel %vm864, %v4826, %v4825
        %v4828 = vrot.slane %v4714, 6
        %v4829 = vsel %vm867, %v4828, %v4827
        %v4830 = vrot.slane %v4716, 5
        %v4831 = vsel %vm870, %v4830, %v4829
        %v4832 = vrot.slane %v4718, 4
        %v4833 = vsel %vm873, %v4832, %v4831
        %v4834 = vrot.slane %v4720, 3
        %v4835 = vsel %vm876, %v4834, %v4833
        %v4836 = vrot.slane %v4722, 2
        %v4837 = vrot.slane %v4724, 1
        %v4838 = vsel %vm879, %v4837, %v4836
        %v4839 = vsel %vm861, %v4726, %v4838
        %v4840 = vrot.slane %v4728, 7
        %v4841 = vsel %vm864, %v4840, %v4839
        %v4842 = vrot.slane %v4730, 6
        %v4843 = vsel %vm867, %v4842, %v4841
        %v4844 = vrot.slane %v4732, 5
        %v4845 = vsel %vm870, %v4844, %v4843
        %v4846 = vrot.slane %v4734, 4
        %v4847 = vsel %vm873, %v4846, %v4845
        %v4848 = vrot.slane %v4736, 3
        %v4849 = vsel %vm876, %v4848, %v4847
        %4850 = vrot.lane.b32.xlu0 %v4835, 64
        %v4851 = vpop.permute.xlu0 %4850
        %4852 = vrot.lane.b32.xlu0 %v4849, 64
        %v4853 = vpop.permute.xlu0 %4852
        %4856 = vst.msk [vmem:[%s352] sm:$0xff] %vm946, %v4851
        %4857 = vst.msk [vmem:[%s352 + $0x20] sm:$0xff] %vm946, %v4853
        %v4858 = vrot.slane %v4706, 3
        %v4859 = vrot.slane %v4708, 2
        %v4860 = vsel %vm879, %v4859, %v4858
        %v4861 = vrot.slane %v4710, 1
        %v4862 = vsel %vm861, %v4861, %v4860
        %v4863 = vsel %vm864, %v4712, %v4862
        %v4864 = vrot.slane %v4714, 7
        %v4865 = vsel %vm867, %v4864, %v4863
        %v4866 = vrot.slane %v4716, 6
        %v4867 = vsel %vm870, %v4866, %v4865
        %v4868 = vrot.slane %v4718, 5
        %v4869 = vsel %vm873, %v4868, %v4867
        %v4870 = vrot.slane %v4720, 4
        %v4871 = vsel %vm876, %v4870, %v4869
        %v4872 = vrot.slane %v4722, 3
        %v4873 = vrot.slane %v4724, 2
        %v4874 = vsel %vm879, %v4873, %v4872
        %v4875 = vrot.slane %v4726, 1
        %v4876 = vsel %vm861, %v4875, %v4874
        %v4877 = vsel %vm864, %v4728, %v4876
        %v4878 = vrot.slane %v4730, 7
        %v4879 = vsel %vm867, %v4878, %v4877
        %v4880 = vrot.slane %v4732, 6
        %v4881 = vsel %vm870, %v4880, %v4879
        %v4882 = vrot.slane %v4734, 5
        %v4883 = vsel %vm873, %v4882, %v4881
        %v4884 = vrot.slane %v4736, 4
        %v4885 = vsel %vm876, %v4884, %v4883
        %4886 = vrot.lane.b32.xlu0 %v4871, 96
        %v4887 = vpop.permute.xlu0 %4886
        %4888 = vrot.lane.b32.xlu0 %v4885, 96
        %v4889 = vpop.permute.xlu0 %4888
        %4892 = vst.msk [vmem:[%s352] sm:$0xff] %vm988, %v4887
        %4893 = vst.msk [vmem:[%s352 + $0x20] sm:$0xff] %vm988, %v4889
        %v4894 = vrot.slane %v4706, 4
        %v4895 = vrot.slane %v4708, 3
        %v4896 = vsel %vm879, %v4895, %v4894
        %v4897 = vrot.slane %v4710, 2
        %v4898 = vsel %vm861, %v4897, %v4896
        %v4899 = vrot.slane %v4712, 1
        %v4900 = vsel %vm864, %v4899, %v4898
        %v4901 = vsel %vm867, %v4714, %v4900
        %v4902 = vrot.slane %v4716, 7
        %v4903 = vsel %vm870, %v4902, %v4901
        %v4904 = vrot.slane %v4718, 6
        %v4905 = vsel %vm873, %v4904, %v4903
        %v4906 = vrot.slane %v4720, 5
        %v4907 = vsel %vm876, %v4906, %v4905
        %v4908 = vrot.slane %v4722, 4
        %v4909 = vrot.slane %v4724, 3
        %v4910 = vsel %vm879, %v4909, %v4908
        %v4911 = vrot.slane %v4726, 2
        %v4912 = vsel %vm861, %v4911, %v4910
        %v4913 = vrot.slane %v4728, 1
        %v4914 = vsel %vm864, %v4913, %v4912
        %v4915 = vsel %vm867, %v4730, %v4914
        %v4916 = vrot.slane %v4732, 7
        %v4917 = vsel %vm870, %v4916, %v4915
        %v4918 = vrot.slane %v4734, 6
        %v4919 = vsel %vm873, %v4918, %v4917
        %v4920 = vrot.slane %v4736, 5
        %v4921 = vsel %vm876, %v4920, %v4919
        %4924 = vst.msk [vmem:[%s352 + $0x8] sm:$0xff] %vm394, %v4907
        %4925 = vst.msk [vmem:[%s352 + $0x28] sm:$0xff] %vm394, %v4921
        %v4926 = vrot.slane %v4706, 5
        %v4927 = vrot.slane %v4708, 4
        %v4928 = vsel %vm879, %v4927, %v4926
        %v4929 = vrot.slane %v4710, 3
        %v4930 = vsel %vm861, %v4929, %v4928
        %v4931 = vrot.slane %v4712, 2
        %v4932 = vsel %vm864, %v4931, %v4930
        %v4933 = vrot.slane %v4714, 1
        %v4934 = vsel %vm867, %v4933, %v4932
        %v4935 = vsel %vm870, %v4716, %v4934
        %v4936 = vrot.slane %v4718, 7
        %v4937 = vsel %vm873, %v4936, %v4935
        %v4938 = vrot.slane %v4720, 6
        %v4939 = vsel %vm876, %v4938, %v4937
        %v4940 = vrot.slane %v4722, 5
        %v4941 = vrot.slane %v4724, 4
        %v4942 = vsel %vm879, %v4941, %v4940
        %v4943 = vrot.slane %v4726, 3
        %v4944 = vsel %vm861, %v4943, %v4942
        %v4945 = vrot.slane %v4728, 2
        %v4946 = vsel %vm864, %v4945, %v4944
        %v4947 = vrot.slane %v4730, 1
        %v4948 = vsel %vm867, %v4947, %v4946
        %v4949 = vsel %vm870, %v4732, %v4948
        %v4950 = vrot.slane %v4734, 7
        %v4951 = vsel %vm873, %v4950, %v4949
        %v4952 = vrot.slane %v4736, 6
        %v4953 = vsel %vm876, %v4952, %v4951
        %4954 = vrot.lane.b32.xlu0 %v4939, 32
        %v4955 = vpop.permute.xlu0 %4954
        %4956 = vrot.lane.b32.xlu0 %v4953, 32
        %v4957 = vpop.permute.xlu0 %4956
        %4960 = vst.msk [vmem:[%s352 + $0x8] sm:$0xff] %vm904, %v4955
        %4961 = vst.msk [vmem:[%s352 + $0x28] sm:$0xff] %vm904, %v4957
        %v4962 = vrot.slane %v4706, 6
        %v4963 = vrot.slane %v4708, 5
        %v4964 = vsel %vm879, %v4963, %v4962
        %v4965 = vrot.slane %v4710, 4
        %v4966 = vsel %vm861, %v4965, %v4964
        %v4967 = vrot.slane %v4712, 3
        %v4968 = vsel %vm864, %v4967, %v4966
        %v4969 = vrot.slane %v4714, 2
        %v4970 = vsel %vm867, %v4969, %v4968
        %v4971 = vrot.slane %v4716, 1
        %v4972 = vsel %vm870, %v4971, %v4970
        %v4973 = vsel %vm873, %v4718, %v4972
        %v4974 = vrot.slane %v4720, 7
        %v4975 = vsel %vm876, %v4974, %v4973
        %v4976 = vrot.slane %v4722, 6
        %v4977 = vrot.slane %v4724, 5
        %v4978 = vsel %vm879, %v4977, %v4976
        %v4979 = vrot.slane %v4726, 4
        %v4980 = vsel %vm861, %v4979, %v4978
        %v4981 = vrot.slane %v4728, 3
        %v4982 = vsel %vm864, %v4981, %v4980
        %v4983 = vrot.slane %v4730, 2
        %v4984 = vsel %vm867, %v4983, %v4982
        %v4985 = vrot.slane %v4732, 1
        %v4986 = vsel %vm870, %v4985, %v4984
        %v4987 = vsel %vm873, %v4734, %v4986
        %v4988 = vrot.slane %v4736, 7
        %v4989 = vsel %vm876, %v4988, %v4987
        %4990 = vrot.lane.b32.xlu0 %v4975, 64
        %v4991 = vpop.permute.xlu0 %4990
        %4992 = vrot.lane.b32.xlu0 %v4989, 64
        %v4993 = vpop.permute.xlu0 %4992
        %4996 = vst.msk [vmem:[%s352 + $0x8] sm:$0xff] %vm946, %v4991
        %4997 = vst.msk [vmem:[%s352 + $0x28] sm:$0xff] %vm946, %v4993
        %v4998 = vrot.slane %v4706, 7
        %v4999 = vrot.slane %v4708, 6
        %v5000 = vsel %vm879, %v4999, %v4998
        %v5001 = vrot.slane %v4710, 5
        %v5002 = vsel %vm861, %v5001, %v5000
        %v5003 = vrot.slane %v4712, 4
        %v5004 = vsel %vm864, %v5003, %v5002
        %v5005 = vrot.slane %v4714, 3
        %v5006 = vsel %vm867, %v5005, %v5004
        %v5007 = vrot.slane %v4716, 2
        %v5008 = vsel %vm870, %v5007, %v5006
        %v5009 = vrot.slane %v4718, 1
        %v5010 = vsel %vm873, %v5009, %v5008
        %v5011 = vsel %vm876, %v4720, %v5010
        %v5012 = vrot.slane %v4722, 7
        %v5013 = vrot.slane %v4724, 6
        %v5014 = vsel %vm879, %v5013, %v5012
        %v5015 = vrot.slane %v4726, 5
        %v5016 = vsel %vm861, %v5015, %v5014
        %v5017 = vrot.slane %v4728, 4
        %v5018 = vsel %vm864, %v5017, %v5016
        %v5019 = vrot.slane %v4730, 3
        %v5020 = vsel %vm867, %v5019, %v5018
        %v5021 = vrot.slane %v4732, 2
        %v5022 = vsel %vm870, %v5021, %v5020
        %v5023 = vrot.slane %v4734, 1
        %v5024 = vsel %vm873, %v5023, %v5022
        %v5025 = vsel %vm876, %v4736, %v5024
        %5026 = vrot.lane.b32.xlu0 %v5011, 96
        %v5027 = vpop.permute.xlu0 %5026
        %5028 = vrot.lane.b32.xlu0 %v5025, 96
        %v5029 = vpop.permute.xlu0 %5028
        %5032 = vst.msk [vmem:[%s352 + $0x8] sm:$0xff] %vm988, %v5027
        %5033 = vst.msk [vmem:[%s352 + $0x28] sm:$0xff] %vm988, %v5029
        %v5050 = vrot.slane %v4709, 7
        %v5051 = vsel %vm879, %v5050, %v4707
        %v5052 = vrot.slane %v4711, 6
        %v5053 = vsel %vm861, %v5052, %v5051
        %v5054 = vrot.slane %v4713, 5
        %v5055 = vsel %vm864, %v5054, %v5053
        %v5056 = vrot.slane %v4715, 4
        %v5057 = vsel %vm867, %v5056, %v5055
        %v5058 = vrot.slane %v4717, 3
        %v5059 = vsel %vm870, %v5058, %v5057
        %v5060 = vrot.slane %v4719, 2
        %v5061 = vsel %vm873, %v5060, %v5059
        %v5062 = vrot.slane %v4721, 1
        %v5063 = vsel %vm876, %v5062, %v5061
        %v5064 = vrot.slane %v4725, 7
        %v5065 = vsel %vm879, %v5064, %v4723
        %v5066 = vrot.slane %v4727, 6
        %v5067 = vsel %vm861, %v5066, %v5065
        %v5068 = vrot.slane %v4729, 5
        %v5069 = vsel %vm864, %v5068, %v5067
        %v5070 = vrot.slane %v4731, 4
        %v5071 = vsel %vm867, %v5070, %v5069
        %v5072 = vrot.slane %v4733, 3
        %v5073 = vsel %vm870, %v5072, %v5071
        %v5074 = vrot.slane %v4735, 2
        %v5075 = vsel %vm873, %v5074, %v5073
        %v5076 = vrot.slane %v4737, 1
        %v5077 = vsel %vm876, %v5076, %v5075
        %5080 = vst.msk [vmem:[%s352 + $0x10] sm:$0xff] %vm394, %v5063
        %5081 = vst.msk [vmem:[%s352 + $0x30] sm:$0xff] %vm394, %v5077
        %v5082 = vrot.slane %v4707, 1
        %v5083 = vsel %vm879, %v4709, %v5082
        %v5084 = vrot.slane %v4711, 7
        %v5085 = vsel %vm861, %v5084, %v5083
        %v5086 = vrot.slane %v4713, 6
        %v5087 = vsel %vm864, %v5086, %v5085
        %v5088 = vrot.slane %v4715, 5
        %v5089 = vsel %vm867, %v5088, %v5087
        %v5090 = vrot.slane %v4717, 4
        %v5091 = vsel %vm870, %v5090, %v5089
        %v5092 = vrot.slane %v4719, 3
        %v5093 = vsel %vm873, %v5092, %v5091
        %v5094 = vrot.slane %v4721, 2
        %v5095 = vsel %vm876, %v5094, %v5093
        %v5096 = vrot.slane %v4723, 1
        %v5097 = vsel %vm879, %v4725, %v5096
        %v5098 = vrot.slane %v4727, 7
        %v5099 = vsel %vm861, %v5098, %v5097
        %v5100 = vrot.slane %v4729, 6
        %v5101 = vsel %vm864, %v5100, %v5099
        %v5102 = vrot.slane %v4731, 5
        %v5103 = vsel %vm867, %v5102, %v5101
        %v5104 = vrot.slane %v4733, 4
        %v5105 = vsel %vm870, %v5104, %v5103
        %v5106 = vrot.slane %v4735, 3
        %v5107 = vsel %vm873, %v5106, %v5105
        %v5108 = vrot.slane %v4737, 2
        %v5109 = vsel %vm876, %v5108, %v5107
        %5110 = vrot.lane.b32.xlu0 %v5095, 32
        %v5111 = vpop.permute.xlu0 %5110
        %5112 = vrot.lane.b32.xlu0 %v5109, 32
        %v5113 = vpop.permute.xlu0 %5112
        %5116 = vst.msk [vmem:[%s352 + $0x10] sm:$0xff] %vm904, %v5111
        %5117 = vst.msk [vmem:[%s352 + $0x30] sm:$0xff] %vm904, %v5113
        %v5118 = vrot.slane %v4707, 2
        %v5119 = vrot.slane %v4709, 1
        %v5120 = vsel %vm879, %v5119, %v5118
        %v5121 = vsel %vm861, %v4711, %v5120
        %v5122 = vrot.slane %v4713, 7
        %v5123 = vsel %vm864, %v5122, %v5121
        %v5124 = vrot.slane %v4715, 6
        %v5125 = vsel %vm867, %v5124, %v5123
        %v5126 = vrot.slane %v4717, 5
        %v5127 = vsel %vm870, %v5126, %v5125
        %v5128 = vrot.slane %v4719, 4
        %v5129 = vsel %vm873, %v5128, %v5127
        %v5130 = vrot.slane %v4721, 3
        %v5131 = vsel %vm876, %v5130, %v5129
        %v5132 = vrot.slane %v4723, 2
        %v5133 = vrot.slane %v4725, 1
        %v5134 = vsel %vm879, %v5133, %v5132
        %v5135 = vsel %vm861, %v4727, %v5134
        %v5136 = vrot.slane %v4729, 7
        %v5137 = vsel %vm864, %v5136, %v5135
        %v5138 = vrot.slane %v4731, 6
        %v5139 = vsel %vm867, %v5138, %v5137
        %v5140 = vrot.slane %v4733, 5
        %v5141 = vsel %vm870, %v5140, %v5139
        %v5142 = vrot.slane %v4735, 4
        %v5143 = vsel %vm873, %v5142, %v5141
        %v5144 = vrot.slane %v4737, 3
        %v5145 = vsel %vm876, %v5144, %v5143
        %5146 = vrot.lane.b32.xlu0 %v5131, 64
        %v5147 = vpop.permute.xlu0 %5146
        %5148 = vrot.lane.b32.xlu0 %v5145, 64
        %v5149 = vpop.permute.xlu0 %5148
        %5152 = vst.msk [vmem:[%s352 + $0x10] sm:$0xff] %vm946, %v5147
        %5153 = vst.msk [vmem:[%s352 + $0x30] sm:$0xff] %vm946, %v5149
        %v5154 = vrot.slane %v4707, 3
        %v5155 = vrot.slane %v4709, 2
        %v5156 = vsel %vm879, %v5155, %v5154
        %v5157 = vrot.slane %v4711, 1
        %v5158 = vsel %vm861, %v5157, %v5156
        %v5159 = vsel %vm864, %v4713, %v5158
        %v5160 = vrot.slane %v4715, 7
        %v5161 = vsel %vm867, %v5160, %v5159
        %v5162 = vrot.slane %v4717, 6
        %v5163 = vsel %vm870, %v5162, %v5161
        %v5164 = vrot.slane %v4719, 5
        %v5165 = vsel %vm873, %v5164, %v5163
        %v5166 = vrot.slane %v4721, 4
        %v5167 = vsel %vm876, %v5166, %v5165
        %v5168 = vrot.slane %v4723, 3
        %v5169 = vrot.slane %v4725, 2
        %v5170 = vsel %vm879, %v5169, %v5168
        %v5171 = vrot.slane %v4727, 1
        %v5172 = vsel %vm861, %v5171, %v5170
        %v5173 = vsel %vm864, %v4729, %v5172
        %v5174 = vrot.slane %v4731, 7
        %v5175 = vsel %vm867, %v5174, %v5173
        %v5176 = vrot.slane %v4733, 6
        %v5177 = vsel %vm870, %v5176, %v5175
        %v5178 = vrot.slane %v4735, 5
        %v5179 = vsel %vm873, %v5178, %v5177
        %v5180 = vrot.slane %v4737, 4
        %v5181 = vsel %vm876, %v5180, %v5179
        %5182 = vrot.lane.b32.xlu0 %v5167, 96
        %v5183 = vpop.permute.xlu0 %5182
        %5184 = vrot.lane.b32.xlu0 %v5181, 96
        %v5185 = vpop.permute.xlu0 %5184
        %5188 = vst.msk [vmem:[%s352 + $0x10] sm:$0xff] %vm988, %v5183
        %5189 = vst.msk [vmem:[%s352 + $0x30] sm:$0xff] %vm988, %v5185
        %v5190 = vrot.slane %v4707, 4
        %v5191 = vrot.slane %v4709, 3
        %v5192 = vsel %vm879, %v5191, %v5190
        %v5193 = vrot.slane %v4711, 2
        %v5194 = vsel %vm861, %v5193, %v5192
        %v5195 = vrot.slane %v4713, 1
        %v5196 = vsel %vm864, %v5195, %v5194
        %v5197 = vsel %vm867, %v4715, %v5196
        %v5198 = vrot.slane %v4717, 7
        %v5199 = vsel %vm870, %v5198, %v5197
        %v5200 = vrot.slane %v4719, 6
        %v5201 = vsel %vm873, %v5200, %v5199
        %v5202 = vrot.slane %v4721, 5
        %v5203 = vsel %vm876, %v5202, %v5201
        %v5204 = vrot.slane %v4723, 4
        %v5205 = vrot.slane %v4725, 3
        %v5206 = vsel %vm879, %v5205, %v5204
        %v5207 = vrot.slane %v4727, 2
        %v5208 = vsel %vm861, %v5207, %v5206
        %v5209 = vrot.slane %v4729, 1
        %v5210 = vsel %vm864, %v5209, %v5208
        %v5211 = vsel %vm867, %v4731, %v5210
        %v5212 = vrot.slane %v4733, 7
        %v5213 = vsel %vm870, %v5212, %v5211
        %v5214 = vrot.slane %v4735, 6
        %v5215 = vsel %vm873, %v5214, %v5213
        %v5216 = vrot.slane %v4737, 5
        %v5217 = vsel %vm876, %v5216, %v5215
        %5220 = vst.msk [vmem:[%s352 + $0x18] sm:$0xff] %vm394, %v5203
        %5221 = vst.msk [vmem:[%s352 + $0x38] sm:$0xff] %vm394, %v5217
        %v5222 = vrot.slane %v4707, 5
        %v5223 = vrot.slane %v4709, 4
        %v5224 = vsel %vm879, %v5223, %v5222
        %v5225 = vrot.slane %v4711, 3
        %v5226 = vsel %vm861, %v5225, %v5224
        %v5227 = vrot.slane %v4713, 2
        %v5228 = vsel %vm864, %v5227, %v5226
        %v5229 = vrot.slane %v4715, 1
        %v5230 = vsel %vm867, %v5229, %v5228
        %v5231 = vsel %vm870, %v4717, %v5230
        %v5232 = vrot.slane %v4719, 7
        %v5233 = vsel %vm873, %v5232, %v5231
        %v5234 = vrot.slane %v4721, 6
        %v5235 = vsel %vm876, %v5234, %v5233
        %v5236 = vrot.slane %v4723, 5
        %v5237 = vrot.slane %v4725, 4
        %v5238 = vsel %vm879, %v5237, %v5236
        %v5239 = vrot.slane %v4727, 3
        %v5240 = vsel %vm861, %v5239, %v5238
        %v5241 = vrot.slane %v4729, 2
        %v5242 = vsel %vm864, %v5241, %v5240
        %v5243 = vrot.slane %v4731, 1
        %v5244 = vsel %vm867, %v5243, %v5242
        %v5245 = vsel %vm870, %v4733, %v5244
        %v5246 = vrot.slane %v4735, 7
        %v5247 = vsel %vm873, %v5246, %v5245
        %v5248 = vrot.slane %v4737, 6
        %v5249 = vsel %vm876, %v5248, %v5247
        %5250 = vrot.lane.b32.xlu0 %v5235, 32
        %v5251 = vpop.permute.xlu0 %5250
        %5252 = vrot.lane.b32.xlu0 %v5249, 32
        %v5253 = vpop.permute.xlu0 %5252
        %5256 = vst.msk [vmem:[%s352 + $0x18] sm:$0xff] %vm904, %v5251
        %5257 = vst.msk [vmem:[%s352 + $0x38] sm:$0xff] %vm904, %v5253
        %v5258 = vrot.slane %v4707, 6
        %v5259 = vrot.slane %v4709, 5
        %v5260 = vsel %vm879, %v5259, %v5258
        %v5261 = vrot.slane %v4711, 4
        %v5262 = vsel %vm861, %v5261, %v5260
        %v5263 = vrot.slane %v4713, 3
        %v5264 = vsel %vm864, %v5263, %v5262
        %v5265 = vrot.slane %v4715, 2
        %v5266 = vsel %vm867, %v5265, %v5264
        %v5267 = vrot.slane %v4717, 1
        %v5268 = vsel %vm870, %v5267, %v5266
        %v5269 = vsel %vm873, %v4719, %v5268
        %v5270 = vrot.slane %v4721, 7
        %v5271 = vsel %vm876, %v5270, %v5269
        %v5272 = vrot.slane %v4723, 6
        %v5273 = vrot.slane %v4725, 5
        %v5274 = vsel %vm879, %v5273, %v5272
        %v5275 = vrot.slane %v4727, 4
        %v5276 = vsel %vm861, %v5275, %v5274
        %v5277 = vrot.slane %v4729, 3
        %v5278 = vsel %vm864, %v5277, %v5276
        %v5279 = vrot.slane %v4731, 2
        %v5280 = vsel %vm867, %v5279, %v5278
        %v5281 = vrot.slane %v4733, 1
        %v5282 = vsel %vm870, %v5281, %v5280
        %v5283 = vsel %vm873, %v4735, %v5282
        %v5284 = vrot.slane %v4737, 7
        %v5285 = vsel %vm876, %v5284, %v5283
        %5286 = vrot.lane.b32.xlu0 %v5271, 64
        %v5287 = vpop.permute.xlu0 %5286
        %5288 = vrot.lane.b32.xlu0 %v5285, 64
        %v5289 = vpop.permute.xlu0 %5288
        %5292 = vst.msk [vmem:[%s352 + $0x18] sm:$0xff] %vm946, %v5287
        %5293 = vst.msk [vmem:[%s352 + $0x38] sm:$0xff] %vm946, %v5289
        %v5294 = vrot.slane %v4707, 7
        %v5295 = vrot.slane %v4709, 6
        %v5296 = vsel %vm879, %v5295, %v5294
        %v5297 = vrot.slane %v4711, 5
        %v5298 = vsel %vm861, %v5297, %v5296
        %v5299 = vrot.slane %v4713, 4
        %v5300 = vsel %vm864, %v5299, %v5298
        %v5301 = vrot.slane %v4715, 3
        %v5302 = vsel %vm867, %v5301, %v5300
        %v5303 = vrot.slane %v4717, 2
        %v5304 = vsel %vm870, %v5303, %v5302
        %v5305 = vrot.slane %v4719, 1
        %v5306 = vsel %vm873, %v5305, %v5304
        %v5307 = vsel %vm876, %v4721, %v5306
        %v5308 = vrot.slane %v4723, 7
        %v5309 = vrot.slane %v4725, 6
        %v5310 = vsel %vm879, %v5309, %v5308
        %v5311 = vrot.slane %v4727, 5
        %v5312 = vsel %vm861, %v5311, %v5310
        %v5313 = vrot.slane %v4729, 4
        %v5314 = vsel %vm864, %v5313, %v5312
        %v5315 = vrot.slane %v4731, 3
        %v5316 = vsel %vm867, %v5315, %v5314
        %v5317 = vrot.slane %v4733, 2
        %v5318 = vsel %vm870, %v5317, %v5316
        %v5319 = vrot.slane %v4735, 1
        %v5320 = vsel %vm873, %v5319, %v5318
        %v5321 = vsel %vm876, %v4737, %v5320
        %5322 = vrot.lane.b32.xlu0 %v5307, 96
        %v5323 = vpop.permute.xlu0 %5322
        %5324 = vrot.lane.b32.xlu0 %v5321, 96
        %v5325 = vpop.permute.xlu0 %5324
        %5328 = vst.msk [vmem:[%s352 + $0x18] sm:$0xff] %vm988, %v5323
        %5329 = vst.msk [vmem:[%s352 + $0x38] sm:$0xff] %vm988, %v5325
        %s5330 = sand.u32 %s247, 1
        %s5331 = scalar_lea.sflag [#allocation5], %s5330
        %s5332 = sand.u32 %s247, 1
        %s5333 = smul.addr %s5332, 64
        %s5334 = scalar_lea.vmem [#allocation4], %s5333
        // Predicated region
        $region61: #{tpu_custom_call.1} parent=59 // pred_check
          %p5335 = pneg %p257
        $region62: #{tpu_custom_call.1} parent=59 // pred_check_branch
          %5337 = sbr.rel (%p5335) target = $region64
        $region63: #{tpu_custom_call.1} parent=59 // pred_region
          %s5339 = ssub.s32 1024, 1024
          %5340 = vsyncadd %s5331, %s5339
          %s5341 = smul.addr %s24, 8
          %s5342 = smul.addr %s5341, 128
          %s5343 = scalar_lea.hbm %s10, %s5342
          %s5344 = sshll.u32 %s5334, 4
          %s5345 = int_to_ptr.vmem [resolvable:$true] %s5344
          %5350 = dma.vmem_to_hbm [thread:$0]  %s5345, 1024, %s5343, %s5331, 512, 512, 32
        $region64: #{tpu_custom_call.1} parent=59 // pred_fallthru
          _
      $region60: #{tpu_custom_call.1} parent=5 // pred_fallthru
        _
      %p5351 = scmp.le.s32.totalorder 2, %s19
      // Predicated region
      $region65: #{tpu_custom_call.1} parent=5 // pred_check
        %p5352 = pneg %p5351
      $region66: #{tpu_custom_call.1} parent=5 // pred_check_branch
        %5354 = sbr.rel (%p5352) target = $region68
      $region67: #{tpu_custom_call.1} parent=5 // pred_region
        %s5355 = ssub.s32 %s19, 2
        // Predicated region
        $region69: #{tpu_custom_call.1} parent=67 // pred_check
          %p5356 = pneg %p263
        $region70: #{tpu_custom_call.1} parent=67 // pred_check_branch
          %5358 = sbr.rel (%p5356) target = $region72
        $region71: #{tpu_custom_call.1} parent=67 // pred_region
          %s5359 = sand.u32 %s248, 1
          %s5360 = scalar_lea.sflag [#allocation5], %s5359
          %s5361 = sand.u32 %s248, 1
          %s5362 = smul.addr %s5361, 64
          %s5363 = scalar_lea.vmem [#allocation4], %s5362
          %5364 = dma.done %s5360, 1024
        $region72: #{tpu_custom_call.1} parent=67 // pred_fallthru
          _
      $region68: #{tpu_custom_call.1} parent=5 // pred_fallthru
        _
    $region6: #{tpu_custom_call.1} parent=1 // loop_footer
      %s23 = sadd.s32 1, %s19
    $region7: #{tpu_custom_call.1} parent=1 // loop_footer_branch
      %18 = sbr.rel target = $region3
    $region8: #{tpu_custom_call.1} parent=1 // loop_exit
      _
    %5365 = vsyncpa [#allocation5], 1
    %s5366 = scalar_lea.sflag [#allocation5], 1
    %5367 = vsyncpa %s5366, 1

</llo_original>
